<compile_context>
chip_gen: v7x
topology: tpu7x:2x2x1
jax: 0.10.0
libtpu: 0.0.40
codegen_flags: <defaults>
</compile_context>

<pallas_src>
import jax
import jax.numpy as jnp
from jax.experimental import pallas as pl
from jax.experimental.pallas import tpu as pltpu

# ----------------------------- small config ---------------------------------
ENC_IN  = 4      # c_in
D_MODEL = 32
SEQ_LEN = 16     # P (backcast length)
CK      = 4      # conv kernel height
SKIP    = 4
HIGHWAY = 4      # hw
BATCH   = 2

PT     = (SEQ_LEN - CK) // SKIP      # 3
CONV_T = SEQ_LEN - CK + 1            # 13
T0     = CONV_T - PT * SKIP          # 1 (first time step used by skip GRU)
PAD    = 8                           # rows per time step (sublane aligned)
XDIM   = ENC_IN + 4                  # 8 raw input features [value | temporal]

# ---- packed GRU buffer layout: (GRU_ROWS, 3*D_MODEL) ------------------------
_R_WIH1, _R_WHH1, _R_WIH2, _R_WHH2 = 0, 32, 64, 96          # (D, 3D) each
_R_BIH1, _R_BHH1, _R_BIH2, _R_BHH2 = 128, 129, 130, 131     # (1, 3D) each
GRU_ROWS = 132

# ---- packed 32-lane buffer layout: (D32_ROWS, D_MODEL) ----------------------
_R_WCONV  = 0                        # CK blocks of 8 rows (embedding folded in)
_R_WLINR  = 32                       # (D, D)
_R_WLINS  = 64                       # SKIP blocks of D rows
_R_WHWE   = 192                      # HIGHWAY blocks of 8 rows (hw * W_emb)
_R_WDENSE = 224                      # (D, D) lanes >= ENC_IN are zero
_R_BCONV  = 256
_R_BLIN   = 257
_R_BHW    = 258
_R_BDENSE = 259
D32_ROWS  = 260


# ----------------------------- fused Pallas kernel ---------------------------
def _lstnet_kernel(xcat_ref, gru_ref, d32_ref, out_ref):
    f32 = jnp.float32
    D, T = D_MODEL, CONV_T

    xcat = xcat_ref[...]                                       # (P*PAD, XDIM)

    # ---- conv1 (embedding folded into weights) + ReLU -----------------------
    acc = jnp.dot(xcat[0:T * PAD, :], d32_ref[_R_WCONV:_R_WCONV + XDIM, :],
                  preferred_element_type=f32)
    for k in range(1, CK):
        w_k = d32_ref[_R_WCONV + k * XDIM:_R_WCONV + (k + 1) * XDIM, :]
        acc = acc + jnp.dot(xcat[k * PAD:(k + T) * PAD, :], w_k,
                            preferred_element_type=f32)
    c_tm = jnp.maximum(acc + d32_ref[_R_BCONV:_R_BCONV + 1, :], 0.0)  # (T*PAD, D)

    # ---- GRU: gate-concatenated weights, fully unrolled recurrence ----------
    def gru(x_tm, n_steps, rows, r_wih, r_whh, r_bih, r_bhh):
        wih = gru_ref[r_wih:r_wih + D, :]                      # (D, 3D)
        whh = gru_ref[r_whh:r_whh + D, :]                      # (D, 3D)
        bih = gru_ref[r_bih:r_bih + 1, :]                      # (1, 3D)
        bhh = gru_ref[r_bhh:r_bhh + 1, :]                      # (1, 3D)
        gi = jnp.dot(x_tm, wih, preferred_element_type=f32) + bih   # hoisted
        h = jnp.zeros((rows, D), f32)
        for t in range(n_steps):                               # static unroll
            gi_t = gi[t * rows:(t + 1) * rows, :]
            gh = jnp.dot(h, whh, preferred_element_type=f32) + bhh  # (rows, 3D)
            rz = jax.nn.sigmoid(gi_t[:, 0:2 * D] + gh[:, 0:2 * D])  # fused r|z
            r = rz[:, 0:D]
            z = rz[:, D:2 * D]
            n = jnp.tanh(gi_t[:, 2 * D:3 * D] + r * gh[:, 2 * D:3 * D])
            h = (1.0 - z) * n + z * h
        return h

    # ---- GRU1 over the full conv sequence (rows t*PAD + b) -------------------
    r_fin = gru(c_tm, T, PAD, _R_WIH1, _R_WHH1, _R_BIH1, _R_BHH1)       # (PAD, D)

    # ---- skip GRU over last pt*skip steps; step chunk = skip*PAD rows --------
    s_in = c_tm[T0 * PAD:(T0 + PT * SKIP) * PAD, :]                     # (PT*SKIP*PAD, D)
    hs = gru(s_in, PT, SKIP * PAD, _R_WIH2, _R_WHH2, _R_BIH2, _R_BHH2)  # (SKIP*PAD, D)

    # ---- linear1: cat(r, s) @ W_lin1 without a concat ------------------------
    res = jnp.dot(r_fin, d32_ref[_R_WLINR:_R_WLINR + D, :],
                  preferred_element_type=f32) + d32_ref[_R_BLIN:_R_BLIN + 1, :]
    for s in range(SKIP):
        w_s = d32_ref[_R_WLINS + s * D:_R_WLINS + (s + 1) * D, :]
        res = res + jnp.dot(hs[s * PAD:(s + 1) * PAD, :], w_s,
                            preferred_element_type=f32)                 # (PAD, D)

    # ---- highway (AR over last hw *embedded* steps), embedding folded --------
    z_hw = jnp.zeros((PAD, D), f32) + d32_ref[_R_BHW:_R_BHW + 1, :]
    for k in range(HIGHWAY):
        row = (SEQ_LEN - HIGHWAY + k) * PAD
        w_k = d32_ref[_R_WHWE + k * XDIM:_R_WHWE + (k + 1) * XDIM, :]
        z_hw = z_hw + jnp.dot(xcat[row:row + PAD, :], w_k,
                              preferred_element_type=f32)
    res = res + z_hw

    # ---- final dense (output lanes >= ENC_IN are zero-padded) ----------------
    out = jnp.dot(res, d32_ref[_R_WDENSE:_R_WDENSE + D, :],
                  preferred_element_type=f32) + d32_ref[_R_BDENSE:_R_BDENSE + 1, :]
    out_ref[...] = out.astype(out_ref.dtype)


# ----------------------------- parameters ------------------------------------
def init_params(key):
    ks = jax.random.split(key, 16)
    D = D_MODEL

    def u(k, shape, fan_in):
        b = 1.0 / (fan_in ** 0.5)
        return jax.random.uniform(k, shape, jnp.float32, -b, b)

    # embedding approximation: value Linear(enc_in->D) + temporal Linear(4->D)
    w_val = u(ks[0], (ENC_IN, D), ENC_IN)
    b_val = u(ks[1], (D,), ENC_IN)
    w_tmp = u(ks[2], (4, D), 4)
    b_tmp = u(ks[3], (D,), 4)
    W_emb = jnp.concatenate([w_val, w_tmp], axis=0)             # (8, D)
    b_emb = (b_val + b_tmp).reshape(1, D)

    # conv1: PyTorch weight (D_out, 1, Ck, D_in) -> (Ck, D_in, D_out)
    w_conv_pt = u(ks[4], (D, 1, CK, D), CK * D)
    W_conv = jnp.transpose(w_conv_pt[:, 0, :, :], (1, 2, 0))    # (Ck, D_in, D_out)
    b_conv = u(ks[5], (D,), CK * D).reshape(1, D)

    # fold embedding into conv
    W_conv_eff = jnp.einsum('xd,kdo->kxo', W_emb, W_conv)       # (Ck, 8, D)
    b_conv_eff = b_conv + jnp.einsum('d,kdo->o', b_emb[0], W_conv).reshape(1, D)

    # GRUs: PyTorch (3D, D) gate order (r, z, n) -> packed (D_in, 3D_out)
    def gru_p(k):
        k1, k2, k3, k4 = jax.random.split(k, 4)
        wih = jnp.transpose(u(k1, (3 * D, D), D))               # (D, 3D)
        whh = jnp.transpose(u(k2, (3 * D, D), D))
        bih = u(k3, (3 * D,), D).reshape(1, 3 * D)
        bhh = u(k4, (3 * D,), D).reshape(1, 3 * D)
        return wih, whh, bih, bhh

    Wih1, Whh1, bih1, bhh1 = gru_p(ks[6])
    Wih2, Whh2, bih2, bhh2 = gru_p(ks[7])

    # linear1: PyTorch Linear(D + skip*D, D) weight (out, in) -> transposed split
    fan1 = D + SKIP * D
    w_lin_t = jnp.transpose(u(ks[8], (D, fan1), fan1))          # (in, out)
    W_lin_r = w_lin_t[:D, :]                                    # (D, D)
    W_lin_s = w_lin_t[D:, :]                                    # (skip*D, D)
    b_lin1 = u(ks[9], (D,), fan1).reshape(1, D)

    # highway Linear(hw, 1) folded with the (linear) embedding
    w_hw_pt = u(ks[10], (1, HIGHWAY), HIGHWAY)                  # (1, hw)
    b_hw_pt = u(ks[11], (1,), HIGHWAY)
    W_hw_emb = w_hw_pt.reshape(HIGHWAY, 1, 1) * W_emb[None, :, :]   # (hw, 8, D)
    b_hw_eff = jnp.sum(w_hw_pt) * b_emb + b_hw_pt[0]                # (1, D)

    # final dense Linear(D, enc_in), lane-padded to D
    w_dense_t = jnp.transpose(u(ks[12], (ENC_IN, D), D))        # (D, enc_in)
    W_dense_pad = jnp.zeros((D, D), jnp.float32).at[:, :ENC_IN].set(w_dense_t)
    b_dense_pad = jnp.zeros((1, D), jnp.float32).at[:, :ENC_IN].set(
        u(ks[13], (ENC_IN,), D).reshape(1, ENC_IN))

    # ---- pack into two flat VMEM buffers -------------------------------------
    gru_buf = jnp.zeros((GRU_ROWS, 3 * D), jnp.float32)
    gru_buf = gru_buf.at[_R_WIH1:_R_WIH1 + D].set(Wih1)
    gru_buf = gru_buf.at[_R_WHH1:_R_WHH1 + D].set(Whh1)
    gru_buf = gru_buf.at[_R_WIH2:_R_WIH2 + D].set(Wih2)
    gru_buf = gru_buf.at[_R_WHH2:_R_WHH2 + D].set(Whh2)
    gru_buf = gru_buf.at[_R_BIH1].set(bih1[0])
    gru_buf = gru_buf.at[_R_BHH1].set(bhh1[0])
    gru_buf = gru_buf.at[_R_BIH2].set(bih2[0])
    gru_buf = gru_buf.at[_R_BHH2].set(bhh2[0])

    d32_buf = jnp.zeros((D32_ROWS, D), jnp.float32)
    d32_buf = d32_buf.at[_R_WCONV:_R_WCONV + CK * XDIM].set(
        W_conv_eff.reshape(CK * XDIM, D))
    d32_buf = d32_buf.at[_R_WLINR:_R_WLINR + D].set(W_lin_r)
    d32_buf = d32_buf.at[_R_WLINS:_R_WLINS + SKIP * D].set(W_lin_s)
    d32_buf = d32_buf.at[_R_WHWE:_R_WHWE + HIGHWAY * XDIM].set(
        W_hw_emb.reshape(HIGHWAY * XDIM, D))
    d32_buf = d32_buf.at[_R_WDENSE:_R_WDENSE + D].set(W_dense_pad)
    d32_buf = d32_buf.at[_R_BCONV].set(b_conv_eff[0])
    d32_buf = d32_buf.at[_R_BLIN].set(b_lin1[0])
    d32_buf = d32_buf.at[_R_BHW].set(b_hw_eff[0])
    d32_buf = d32_buf.at[_R_BDENSE].set(b_dense_pad[0])

    return gru_buf, d32_buf


# ----------------------------- forward pass ----------------------------------
def lstnet_forward(packed, x_enc, x_mark_enc):
    gru_buf, d32_buf = packed
    B, P, c_in = x_enc.shape

    # time-major [value | temporal] features, each time step padded to PAD rows
    xcat = jnp.concatenate([x_enc, x_mark_enc], axis=-1).astype(jnp.float32)
    xcat_tm = jnp.transpose(xcat, (1, 0, 2))                       # (P, B, XDIM)
    xcat_pad = jnp.zeros((P, PAD, XDIM), jnp.float32).at[:, :B, :].set(xcat_tm)
    xcat_pad = xcat_pad.reshape(P * PAD, XDIM)

    out = pl.pallas_call(
        _lstnet_kernel,
        out_shape=jax.ShapeDtypeStruct((PAD, D_MODEL), jnp.float32),
        in_specs=[pl.BlockSpec(memory_space=pltpu.MemorySpace.VMEM)] * 3,
        out_specs=pl.BlockSpec(memory_space=pltpu.MemorySpace.VMEM),
    )(xcat_pad, gru_buf, d32_buf)
    return out[:B, :ENC_IN].reshape(B, 1, ENC_IN)


# ----------------------------- main -------------------------------------------
if __name__ == "__main__":
    key = jax.random.PRNGKey(0)
    k_p, k_x, k_m = jax.random.split(key, 3)

    packed = init_params(k_p)
    x_enc = jax.random.normal(k_x, (BATCH, SEQ_LEN, ENC_IN), jnp.float32)
    x_mark_enc = jax.random.normal(k_m, (BATCH, SEQ_LEN, 4), jnp.float32)

    out = jax.jit(lstnet_forward)(packed, x_enc, x_mark_enc)
    out = jax.block_until_ready(out)

    assert out.shape == (BATCH, 1, ENC_IN), out.shape
    assert bool(jnp.all(jnp.isfinite(out)))
    print("KERNEL_OK")
</pallas_src>

<mosaic_0001>
module attributes {stable_mosaic.version = 11 : i64} {
  func.func @_lstnet_kernel(%arg0: memref<128x8xf32, #tpu.memory_space<vmem>>, %arg1: memref<132x96xf32, #tpu.memory_space<vmem>>, %arg2: memref<260x32xf32, #tpu.memory_space<vmem>>, %arg3: memref<8x32xf32, #tpu.memory_space<vmem>>) attributes {dimension_semantics = [], scalar_prefetch = 0 : i64, scratch_operands = 0 : i64, tpu.core_type = #tpu.core_type<tc>} {
    %c0 = arith.constant 0 : index
    %c0_0 = arith.constant 0 : index
    %0 = vector.load %arg0[%c0, %c0_0] : memref<128x8xf32, #tpu.memory_space<vmem>>, vector<128x8xf32>
    %1 = vector.extract_strided_slice %0 {offsets = [0, 0], sizes = [104, 8], strides = [1, 1]} : vector<128x8xf32> to vector<104x8xf32>
    %c0_1 = arith.constant 0 : index
    %c0_2 = arith.constant 0 : index
    %2 = vector.load %arg2[%c0_1, %c0_2] : memref<260x32xf32, #tpu.memory_space<vmem>>, vector<8x32xf32>
    %cst = arith.constant dense<0.000000e+00> : vector<104x32xf32>
    %3 = tpu.matmul %1, %2, %cst {dimension_numbers = #tpu.dot_dimension_numbers<[1], [0], [0], [1], [0, 0, 1, 1], [], []>} : vector<104x8xf32>, vector<8x32xf32>, vector<104x32xf32> -> vector<104x32xf32>
    %c8 = arith.constant 8 : index
    %c0_3 = arith.constant 0 : index
    %4 = vector.load %arg2[%c8, %c0_3] : memref<260x32xf32, #tpu.memory_space<vmem>>, vector<8x32xf32>
    %5 = vector.extract_strided_slice %0 {offsets = [8, 0], sizes = [104, 8], strides = [1, 1]} : vector<128x8xf32> to vector<104x8xf32>
    %cst_4 = arith.constant dense<0.000000e+00> : vector<104x32xf32>
    %6 = tpu.matmul %5, %4, %cst_4 {dimension_numbers = #tpu.dot_dimension_numbers<[1], [0], [0], [1], [0, 0, 1, 1], [], []>} : vector<104x8xf32>, vector<8x32xf32>, vector<104x32xf32> -> vector<104x32xf32>
    %7 = arith.addf %3, %6 : vector<104x32xf32>
    %c16 = arith.constant 16 : index
    %c0_5 = arith.constant 0 : index
    %8 = vector.load %arg2[%c16, %c0_5] : memref<260x32xf32, #tpu.memory_space<vmem>>, vector<8x32xf32>
    %9 = vector.extract_strided_slice %0 {offsets = [16, 0], sizes = [104, 8], strides = [1, 1]} : vector<128x8xf32> to vector<104x8xf32>
    %cst_6 = arith.constant dense<0.000000e+00> : vector<104x32xf32>
    %10 = tpu.matmul %9, %8, %cst_6 {dimension_numbers = #tpu.dot_dimension_numbers<[1], [0], [0], [1], [0, 0, 1, 1], [], []>} : vector<104x8xf32>, vector<8x32xf32>, vector<104x32xf32> -> vector<104x32xf32>
    %11 = arith.addf %7, %10 : vector<104x32xf32>
    %c24 = arith.constant 24 : index
    %c0_7 = arith.constant 0 : index
    %12 = vector.load %arg2[%c24, %c0_7] : memref<260x32xf32, #tpu.memory_space<vmem>>, vector<8x32xf32>
    %13 = vector.extract_strided_slice %0 {offsets = [24, 0], sizes = [104, 8], strides = [1, 1]} : vector<128x8xf32> to vector<104x8xf32>
    %cst_8 = arith.constant dense<0.000000e+00> : vector<104x32xf32>
    %14 = tpu.matmul %13, %12, %cst_8 {dimension_numbers = #tpu.dot_dimension_numbers<[1], [0], [0], [1], [0, 0, 1, 1], [], []>} : vector<104x8xf32>, vector<8x32xf32>, vector<104x32xf32> -> vector<104x32xf32>
    %15 = arith.addf %11, %14 : vector<104x32xf32>
    %c256 = arith.constant 256 : index
    %c0_9 = arith.constant 0 : index
    %16 = vector.load %arg2[%c256, %c0_9] : memref<260x32xf32, #tpu.memory_space<vmem>>, vector<1x32xf32>
    %17 = vector.broadcast %16 : vector<1x32xf32> to vector<104x32xf32>
    %18 = arith.addf %15, %17 : vector<104x32xf32>
    %cst_10 = arith.constant 0.000000e+00 : f32
    %19 = vector.broadcast %cst_10 : f32 to vector<104x32xf32>
    %20 = arith.maximumf %18, %19 : vector<104x32xf32>
    %c0_11 = arith.constant 0 : index
    %c0_12 = arith.constant 0 : index
    %21 = vector.load %arg1[%c0_11, %c0_12] : memref<132x96xf32, #tpu.memory_space<vmem>>, vector<32x96xf32>
    %c32 = arith.constant 32 : index
    %c0_13 = arith.constant 0 : index
    %22 = vector.load %arg1[%c32, %c0_13] : memref<132x96xf32, #tpu.memory_space<vmem>>, vector<32x96xf32>
    %c128 = arith.constant 128 : index
    %c0_14 = arith.constant 0 : index
    %23 = vector.load %arg1[%c128, %c0_14] : memref<132x96xf32, #tpu.memory_space<vmem>>, vector<1x96xf32>
    %c129 = arith.constant 129 : index
    %c0_15 = arith.constant 0 : index
    %24 = vector.load %arg1[%c129, %c0_15] : memref<132x96xf32, #tpu.memory_space<vmem>>, vector<1x96xf32>
    %cst_16 = arith.constant dense<0.000000e+00> : vector<104x96xf32>
    %25 = tpu.matmul %20, %21, %cst_16 {dimension_numbers = #tpu.dot_dimension_numbers<[1], [0], [0], [1], [0, 0, 1, 1], [], []>} : vector<104x32xf32>, vector<32x96xf32>, vector<104x96xf32> -> vector<104x96xf32>
    %26 = vector.broadcast %23 : vector<1x96xf32> to vector<104x96xf32>
    %27 = arith.addf %25, %26 : vector<104x96xf32>
    %cst_17 = arith.constant 0.000000e+00 : f32
    %28 = vector.broadcast %cst_17 : f32 to vector<8x32xf32>
    %29 = vector.extract_strided_slice %27 {offsets = [0, 0], sizes = [8, 96], strides = [1, 1]} : vector<104x96xf32> to vector<8x96xf32>
    %cst_18 = arith.constant dense<0.000000e+00> : vector<8x96xf32>
    %30 = tpu.matmul %28, %22, %cst_18 {dimension_numbers = #tpu.dot_dimension_numbers<[1], [0], [0], [1], [0, 0, 1, 1], [], []>} : vector<8x32xf32>, vector<32x96xf32>, vector<8x96xf32> -> vector<8x96xf32>
    %31 = vector.broadcast %24 : vector<1x96xf32> to vector<8x96xf32>
    %32 = arith.addf %30, %31 : vector<8x96xf32>
    %33 = vector.extract_strided_slice %29 {offsets = [0, 0], sizes = [8, 64], strides = [1, 1]} : vector<8x96xf32> to vector<8x64xf32>
    %34 = vector.extract_strided_slice %32 {offsets = [0, 0], sizes = [8, 64], strides = [1, 1]} : vector<8x96xf32> to vector<8x64xf32>
    %35 = arith.addf %33, %34 : vector<8x64xf32>
    %36 = arith.negf %35 : vector<8x64xf32>
    %37 = math.exp %36 : vector<8x64xf32>
    %cst_19 = arith.constant 1.000000e+00 : f32
    %38 = vector.broadcast %cst_19 : f32 to vector<8x64xf32>
    %39 = arith.addf %38, %37 : vector<8x64xf32>
    %40 = arith.divf %38, %39 : vector<8x64xf32>
    %41 = vector.extract_strided_slice %40 {offsets = [0, 0], sizes = [8, 32], strides = [1, 1]} : vector<8x64xf32> to vector<8x32xf32>
    %42 = vector.extract_strided_slice %40 {offsets = [0, 32], sizes = [8, 32], strides = [1, 1]} : vector<8x64xf32> to vector<8x32xf32>
    %43 = vector.extract_strided_slice %29 {offsets = [0, 64], sizes = [8, 32], strides = [1, 1]} : vector<8x96xf32> to vector<8x32xf32>
    %44 = vector.extract_strided_slice %32 {offsets = [0, 64], sizes = [8, 32], strides = [1, 1]} : vector<8x96xf32> to vector<8x32xf32>
    %45 = arith.mulf %41, %44 : vector<8x32xf32>
    %46 = arith.addf %43, %45 : vector<8x32xf32>
    %47 = math.tanh %46 : vector<8x32xf32>
    %cst_20 = arith.constant 1.000000e+00 : f32
    %48 = vector.broadcast %cst_20 : f32 to vector<8x32xf32>
    %49 = arith.subf %48, %42 : vector<8x32xf32>
    %50 = arith.mulf %49, %47 : vector<8x32xf32>
    %51 = arith.mulf %42, %28 : vector<8x32xf32>
    %52 = arith.addf %50, %51 : vector<8x32xf32>
    %53 = vector.extract_strided_slice %27 {offsets = [8, 0], sizes = [8, 96], strides = [1, 1]} : vector<104x96xf32> to vector<8x96xf32>
    %cst_21 = arith.constant dense<0.000000e+00> : vector<8x96xf32>
    %54 = tpu.matmul %52, %22, %cst_21 {dimension_numbers = #tpu.dot_dimension_numbers<[1], [0], [0], [1], [0, 0, 1, 1], [], []>} : vector<8x32xf32>, vector<32x96xf32>, vector<8x96xf32> -> vector<8x96xf32>
    %55 = vector.broadcast %24 : vector<1x96xf32> to vector<8x96xf32>
    %56 = arith.addf %54, %55 : vector<8x96xf32>
    %57 = vector.extract_strided_slice %53 {offsets = [0, 0], sizes = [8, 64], strides = [1, 1]} : vector<8x96xf32> to vector<8x64xf32>
    %58 = vector.extract_strided_slice %56 {offsets = [0, 0], sizes = [8, 64], strides = [1, 1]} : vector<8x96xf32> to vector<8x64xf32>
    %59 = arith.addf %57, %58 : vector<8x64xf32>
    %60 = arith.negf %59 : vector<8x64xf32>
    %61 = math.exp %60 : vector<8x64xf32>
    %cst_22 = arith.constant 1.000000e+00 : f32
    %62 = vector.broadcast %cst_22 : f32 to vector<8x64xf32>
    %63 = arith.addf %62, %61 : vector<8x64xf32>
    %64 = arith.divf %62, %63 : vector<8x64xf32>
    %65 = vector.extract_strided_slice %64 {offsets = [0, 0], sizes = [8, 32], strides = [1, 1]} : vector<8x64xf32> to vector<8x32xf32>
    %66 = vector.extract_strided_slice %64 {offsets = [0, 32], sizes = [8, 32], strides = [1, 1]} : vector<8x64xf32> to vector<8x32xf32>
    %67 = vector.extract_strided_slice %53 {offsets = [0, 64], sizes = [8, 32], strides = [1, 1]} : vector<8x96xf32> to vector<8x32xf32>
    %68 = vector.extract_strided_slice %56 {offsets = [0, 64], sizes = [8, 32], strides = [1, 1]} : vector<8x96xf32> to vector<8x32xf32>
    %69 = arith.mulf %65, %68 : vector<8x32xf32>
    %70 = arith.addf %67, %69 : vector<8x32xf32>
    %71 = math.tanh %70 : vector<8x32xf32>
    %cst_23 = arith.constant 1.000000e+00 : f32
    %72 = vector.broadcast %cst_23 : f32 to vector<8x32xf32>
    %73 = arith.subf %72, %66 : vector<8x32xf32>
    %74 = arith.mulf %73, %71 : vector<8x32xf32>
    %75 = arith.mulf %66, %52 : vector<8x32xf32>
    %76 = arith.addf %74, %75 : vector<8x32xf32>
    %77 = vector.extract_strided_slice %27 {offsets = [16, 0], sizes = [8, 96], strides = [1, 1]} : vector<104x96xf32> to vector<8x96xf32>
    %cst_24 = arith.constant dense<0.000000e+00> : vector<8x96xf32>
    %78 = tpu.matmul %76, %22, %cst_24 {dimension_numbers = #tpu.dot_dimension_numbers<[1], [0], [0], [1], [0, 0, 1, 1], [], []>} : vector<8x32xf32>, vector<32x96xf32>, vector<8x96xf32> -> vector<8x96xf32>
    %79 = vector.broadcast %24 : vector<1x96xf32> to vector<8x96xf32>
    %80 = arith.addf %78, %79 : vector<8x96xf32>
    %81 = vector.extract_strided_slice %77 {offsets = [0, 0], sizes = [8, 64], strides = [1, 1]} : vector<8x96xf32> to vector<8x64xf32>
    %82 = vector.extract_strided_slice %80 {offsets = [0, 0], sizes = [8, 64], strides = [1, 1]} : vector<8x96xf32> to vector<8x64xf32>
    %83 = arith.addf %81, %82 : vector<8x64xf32>
    %84 = arith.negf %83 : vector<8x64xf32>
    %85 = math.exp %84 : vector<8x64xf32>
    %cst_25 = arith.constant 1.000000e+00 : f32
    %86 = vector.broadcast %cst_25 : f32 to vector<8x64xf32>
    %87 = arith.addf %86, %85 : vector<8x64xf32>
    %88 = arith.divf %86, %87 : vector<8x64xf32>
    %89 = vector.extract_strided_slice %88 {offsets = [0, 0], sizes = [8, 32], strides = [1, 1]} : vector<8x64xf32> to vector<8x32xf32>
    %90 = vector.extract_strided_slice %88 {offsets = [0, 32], sizes = [8, 32], strides = [1, 1]} : vector<8x64xf32> to vector<8x32xf32>
    %91 = vector.extract_strided_slice %77 {offsets = [0, 64], sizes = [8, 32], strides = [1, 1]} : vector<8x96xf32> to vector<8x32xf32>
    %92 = vector.extract_strided_slice %80 {offsets = [0, 64], sizes = [8, 32], strides = [1, 1]} : vector<8x96xf32> to vector<8x32xf32>
    %93 = arith.mulf %89, %92 : vector<8x32xf32>
    %94 = arith.addf %91, %93 : vector<8x32xf32>
    %95 = math.tanh %94 : vector<8x32xf32>
    %cst_26 = arith.constant 1.000000e+00 : f32
    %96 = vector.broadcast %cst_26 : f32 to vector<8x32xf32>
    %97 = arith.subf %96, %90 : vector<8x32xf32>
    %98 = arith.mulf %97, %95 : vector<8x32xf32>
    %99 = arith.mulf %90, %76 : vector<8x32xf32>
    %100 = arith.addf %98, %99 : vector<8x32xf32>
    %101 = vector.extract_strided_slice %27 {offsets = [24, 0], sizes = [8, 96], strides = [1, 1]} : vector<104x96xf32> to vector<8x96xf32>
    %cst_27 = arith.constant dense<0.000000e+00> : vector<8x96xf32>
    %102 = tpu.matmul %100, %22, %cst_27 {dimension_numbers = #tpu.dot_dimension_numbers<[1], [0], [0], [1], [0, 0, 1, 1], [], []>} : vector<8x32xf32>, vector<32x96xf32>, vector<8x96xf32> -> vector<8x96xf32>
    %103 = vector.broadcast %24 : vector<1x96xf32> to vector<8x96xf32>
    %104 = arith.addf %102, %103 : vector<8x96xf32>
    %105 = vector.extract_strided_slice %101 {offsets = [0, 0], sizes = [8, 64], strides = [1, 1]} : vector<8x96xf32> to vector<8x64xf32>
    %106 = vector.extract_strided_slice %104 {offsets = [0, 0], sizes = [8, 64], strides = [1, 1]} : vector<8x96xf32> to vector<8x64xf32>
    %107 = arith.addf %105, %106 : vector<8x64xf32>
    %108 = arith.negf %107 : vector<8x64xf32>
    %109 = math.exp %108 : vector<8x64xf32>
    %cst_28 = arith.constant 1.000000e+00 : f32
    %110 = vector.broadcast %cst_28 : f32 to vector<8x64xf32>
    %111 = arith.addf %110, %109 : vector<8x64xf32>
    %112 = arith.divf %110, %111 : vector<8x64xf32>
    %113 = vector.extract_strided_slice %112 {offsets = [0, 0], sizes = [8, 32], strides = [1, 1]} : vector<8x64xf32> to vector<8x32xf32>
    %114 = vector.extract_strided_slice %112 {offsets = [0, 32], sizes = [8, 32], strides = [1, 1]} : vector<8x64xf32> to vector<8x32xf32>
    %115 = vector.extract_strided_slice %101 {offsets = [0, 64], sizes = [8, 32], strides = [1, 1]} : vector<8x96xf32> to vector<8x32xf32>
    %116 = vector.extract_strided_slice %104 {offsets = [0, 64], sizes = [8, 32], strides = [1, 1]} : vector<8x96xf32> to vector<8x32xf32>
    %117 = arith.mulf %113, %116 : vector<8x32xf32>
    %118 = arith.addf %115, %117 : vector<8x32xf32>
    %119 = math.tanh %118 : vector<8x32xf32>
    %cst_29 = arith.constant 1.000000e+00 : f32
    %120 = vector.broadcast %cst_29 : f32 to vector<8x32xf32>
    %121 = arith.subf %120, %114 : vector<8x32xf32>
    %122 = arith.mulf %121, %119 : vector<8x32xf32>
    %123 = arith.mulf %114, %100 : vector<8x32xf32>
    %124 = arith.addf %122, %123 : vector<8x32xf32>
    %125 = vector.extract_strided_slice %27 {offsets = [32, 0], sizes = [8, 96], strides = [1, 1]} : vector<104x96xf32> to vector<8x96xf32>
    %cst_30 = arith.constant dense<0.000000e+00> : vector<8x96xf32>
    %126 = tpu.matmul %124, %22, %cst_30 {dimension_numbers = #tpu.dot_dimension_numbers<[1], [0], [0], [1], [0, 0, 1, 1], [], []>} : vector<8x32xf32>, vector<32x96xf32>, vector<8x96xf32> -> vector<8x96xf32>
    %127 = vector.broadcast %24 : vector<1x96xf32> to vector<8x96xf32>
    %128 = arith.addf %126, %127 : vector<8x96xf32>
    %129 = vector.extract_strided_slice %125 {offsets = [0, 0], sizes = [8, 64], strides = [1, 1]} : vector<8x96xf32> to vector<8x64xf32>
    %130 = vector.extract_strided_slice %128 {offsets = [0, 0], sizes = [8, 64], strides = [1, 1]} : vector<8x96xf32> to vector<8x64xf32>
    %131 = arith.addf %129, %130 : vector<8x64xf32>
    %132 = arith.negf %131 : vector<8x64xf32>
    %133 = math.exp %132 : vector<8x64xf32>
    %cst_31 = arith.constant 1.000000e+00 : f32
    %134 = vector.broadcast %cst_31 : f32 to vector<8x64xf32>
    %135 = arith.addf %134, %133 : vector<8x64xf32>
    %136 = arith.divf %134, %135 : vector<8x64xf32>
    %137 = vector.extract_strided_slice %136 {offsets = [0, 0], sizes = [8, 32], strides = [1, 1]} : vector<8x64xf32> to vector<8x32xf32>
    %138 = vector.extract_strided_slice %136 {offsets = [0, 32], sizes = [8, 32], strides = [1, 1]} : vector<8x64xf32> to vector<8x32xf32>
    %139 = vector.extract_strided_slice %125 {offsets = [0, 64], sizes = [8, 32], strides = [1, 1]} : vector<8x96xf32> to vector<8x32xf32>
    %140 = vector.extract_strided_slice %128 {offsets = [0, 64], sizes = [8, 32], strides = [1, 1]} : vector<8x96xf32> to vector<8x32xf32>
    %141 = arith.mulf %137, %140 : vector<8x32xf32>
    %142 = arith.addf %139, %141 : vector<8x32xf32>
    %143 = math.tanh %142 : vector<8x32xf32>
    %cst_32 = arith.constant 1.000000e+00 : f32
    %144 = vector.broadcast %cst_32 : f32 to vector<8x32xf32>
    %145 = arith.subf %144, %138 : vector<8x32xf32>
    %146 = arith.mulf %145, %143 : vector<8x32xf32>
    %147 = arith.mulf %138, %124 : vector<8x32xf32>
    %148 = arith.addf %146, %147 : vector<8x32xf32>
    %149 = vector.extract_strided_slice %27 {offsets = [40, 0], sizes = [8, 96], strides = [1, 1]} : vector<104x96xf32> to vector<8x96xf32>
    %cst_33 = arith.constant dense<0.000000e+00> : vector<8x96xf32>
    %150 = tpu.matmul %148, %22, %cst_33 {dimension_numbers = #tpu.dot_dimension_numbers<[1], [0], [0], [1], [0, 0, 1, 1], [], []>} : vector<8x32xf32>, vector<32x96xf32>, vector<8x96xf32> -> vector<8x96xf32>
    %151 = vector.broadcast %24 : vector<1x96xf32> to vector<8x96xf32>
    %152 = arith.addf %150, %151 : vector<8x96xf32>
    %153 = vector.extract_strided_slice %149 {offsets = [0, 0], sizes = [8, 64], strides = [1, 1]} : vector<8x96xf32> to vector<8x64xf32>
    %154 = vector.extract_strided_slice %152 {offsets = [0, 0], sizes = [8, 64], strides = [1, 1]} : vector<8x96xf32> to vector<8x64xf32>
    %155 = arith.addf %153, %154 : vector<8x64xf32>
    %156 = arith.negf %155 : vector<8x64xf32>
    %157 = math.exp %156 : vector<8x64xf32>
    %cst_34 = arith.constant 1.000000e+00 : f32
    %158 = vector.broadcast %cst_34 : f32 to vector<8x64xf32>
    %159 = arith.addf %158, %157 : vector<8x64xf32>
    %160 = arith.divf %158, %159 : vector<8x64xf32>
    %161 = vector.extract_strided_slice %160 {offsets = [0, 0], sizes = [8, 32], strides = [1, 1]} : vector<8x64xf32> to vector<8x32xf32>
    %162 = vector.extract_strided_slice %160 {offsets = [0, 32], sizes = [8, 32], strides = [1, 1]} : vector<8x64xf32> to vector<8x32xf32>
    %163 = vector.extract_strided_slice %149 {offsets = [0, 64], sizes = [8, 32], strides = [1, 1]} : vector<8x96xf32> to vector<8x32xf32>
    %164 = vector.extract_strided_slice %152 {offsets = [0, 64], sizes = [8, 32], strides = [1, 1]} : vector<8x96xf32> to vector<8x32xf32>
    %165 = arith.mulf %161, %164 : vector<8x32xf32>
    %166 = arith.addf %163, %165 : vector<8x32xf32>
    %167 = math.tanh %166 : vector<8x32xf32>
    %cst_35 = arith.constant 1.000000e+00 : f32
    %168 = vector.broadcast %cst_35 : f32 to vector<8x32xf32>
    %169 = arith.subf %168, %162 : vector<8x32xf32>
    %170 = arith.mulf %169, %167 : vector<8x32xf32>
    %171 = arith.mulf %162, %148 : vector<8x32xf32>
    %172 = arith.addf %170, %171 : vector<8x32xf32>
    %173 = vector.extract_strided_slice %27 {offsets = [48, 0], sizes = [8, 96], strides = [1, 1]} : vector<104x96xf32> to vector<8x96xf32>
    %cst_36 = arith.constant dense<0.000000e+00> : vector<8x96xf32>
    %174 = tpu.matmul %172, %22, %cst_36 {dimension_numbers = #tpu.dot_dimension_numbers<[1], [0], [0], [1], [0, 0, 1, 1], [], []>} : vector<8x32xf32>, vector<32x96xf32>, vector<8x96xf32> -> vector<8x96xf32>
    %175 = vector.broadcast %24 : vector<1x96xf32> to vector<8x96xf32>
    %176 = arith.addf %174, %175 : vector<8x96xf32>
    %177 = vector.extract_strided_slice %173 {offsets = [0, 0], sizes = [8, 64], strides = [1, 1]} : vector<8x96xf32> to vector<8x64xf32>
    %178 = vector.extract_strided_slice %176 {offsets = [0, 0], sizes = [8, 64], strides = [1, 1]} : vector<8x96xf32> to vector<8x64xf32>
    %179 = arith.addf %177, %178 : vector<8x64xf32>
    %180 = arith.negf %179 : vector<8x64xf32>
    %181 = math.exp %180 : vector<8x64xf32>
    %cst_37 = arith.constant 1.000000e+00 : f32
    %182 = vector.broadcast %cst_37 : f32 to vector<8x64xf32>
    %183 = arith.addf %182, %181 : vector<8x64xf32>
    %184 = arith.divf %182, %183 : vector<8x64xf32>
    %185 = vector.extract_strided_slice %184 {offsets = [0, 0], sizes = [8, 32], strides = [1, 1]} : vector<8x64xf32> to vector<8x32xf32>
    %186 = vector.extract_strided_slice %184 {offsets = [0, 32], sizes = [8, 32], strides = [1, 1]} : vector<8x64xf32> to vector<8x32xf32>
    %187 = vector.extract_strided_slice %173 {offsets = [0, 64], sizes = [8, 32], strides = [1, 1]} : vector<8x96xf32> to vector<8x32xf32>
    %188 = vector.extract_strided_slice %176 {offsets = [0, 64], sizes = [8, 32], strides = [1, 1]} : vector<8x96xf32> to vector<8x32xf32>
    %189 = arith.mulf %185, %188 : vector<8x32xf32>
    %190 = arith.addf %187, %189 : vector<8x32xf32>
    %191 = math.tanh %190 : vector<8x32xf32>
    %cst_38 = arith.constant 1.000000e+00 : f32
    %192 = vector.broadcast %cst_38 : f32 to vector<8x32xf32>
    %193 = arith.subf %192, %186 : vector<8x32xf32>
    %194 = arith.mulf %193, %191 : vector<8x32xf32>
    %195 = arith.mulf %186, %172 : vector<8x32xf32>
    %196 = arith.addf %194, %195 : vector<8x32xf32>
    %197 = vector.extract_strided_slice %27 {offsets = [56, 0], sizes = [8, 96], strides = [1, 1]} : vector<104x96xf32> to vector<8x96xf32>
    %cst_39 = arith.constant dense<0.000000e+00> : vector<8x96xf32>
    %198 = tpu.matmul %196, %22, %cst_39 {dimension_numbers = #tpu.dot_dimension_numbers<[1], [0], [0], [1], [0, 0, 1, 1], [], []>} : vector<8x32xf32>, vector<32x96xf32>, vector<8x96xf32> -> vector<8x96xf32>
    %199 = vector.broadcast %24 : vector<1x96xf32> to vector<8x96xf32>
    %200 = arith.addf %198, %199 : vector<8x96xf32>
    %201 = vector.extract_strided_slice %197 {offsets = [0, 0], sizes = [8, 64], strides = [1, 1]} : vector<8x96xf32> to vector<8x64xf32>
    %202 = vector.extract_strided_slice %200 {offsets = [0, 0], sizes = [8, 64], strides = [1, 1]} : vector<8x96xf32> to vector<8x64xf32>
    %203 = arith.addf %201, %202 : vector<8x64xf32>
    %204 = arith.negf %203 : vector<8x64xf32>
    %205 = math.exp %204 : vector<8x64xf32>
    %cst_40 = arith.constant 1.000000e+00 : f32
    %206 = vector.broadcast %cst_40 : f32 to vector<8x64xf32>
    %207 = arith.addf %206, %205 : vector<8x64xf32>
    %208 = arith.divf %206, %207 : vector<8x64xf32>
    %209 = vector.extract_strided_slice %208 {offsets = [0, 0], sizes = [8, 32], strides = [1, 1]} : vector<8x64xf32> to vector<8x32xf32>
    %210 = vector.extract_strided_slice %208 {offsets = [0, 32], sizes = [8, 32], strides = [1, 1]} : vector<8x64xf32> to vector<8x32xf32>
    %211 = vector.extract_strided_slice %197 {offsets = [0, 64], sizes = [8, 32], strides = [1, 1]} : vector<8x96xf32> to vector<8x32xf32>
    %212 = vector.extract_strided_slice %200 {offsets = [0, 64], sizes = [8, 32], strides = [1, 1]} : vector<8x96xf32> to vector<8x32xf32>
    %213 = arith.mulf %209, %212 : vector<8x32xf32>
    %214 = arith.addf %211, %213 : vector<8x32xf32>
    %215 = math.tanh %214 : vector<8x32xf32>
    %cst_41 = arith.constant 1.000000e+00 : f32
    %216 = vector.broadcast %cst_41 : f32 to vector<8x32xf32>
    %217 = arith.subf %216, %210 : vector<8x32xf32>
    %218 = arith.mulf %217, %215 : vector<8x32xf32>
    %219 = arith.mulf %210, %196 : vector<8x32xf32>
    %220 = arith.addf %218, %219 : vector<8x32xf32>
    %221 = vector.extract_strided_slice %27 {offsets = [64, 0], sizes = [8, 96], strides = [1, 1]} : vector<104x96xf32> to vector<8x96xf32>
    %cst_42 = arith.constant dense<0.000000e+00> : vector<8x96xf32>
    %222 = tpu.matmul %220, %22, %cst_42 {dimension_numbers = #tpu.dot_dimension_numbers<[1], [0], [0], [1], [0, 0, 1, 1], [], []>} : vector<8x32xf32>, vector<32x96xf32>, vector<8x96xf32> -> vector<8x96xf32>
    %223 = vector.broadcast %24 : vector<1x96xf32> to vector<8x96xf32>
    %224 = arith.addf %222, %223 : vector<8x96xf32>
    %225 = vector.extract_strided_slice %221 {offsets = [0, 0], sizes = [8, 64], strides = [1, 1]} : vector<8x96xf32> to vector<8x64xf32>
    %226 = vector.extract_strided_slice %224 {offsets = [0, 0], sizes = [8, 64], strides = [1, 1]} : vector<8x96xf32> to vector<8x64xf32>
    %227 = arith.addf %225, %226 : vector<8x64xf32>
    %228 = arith.negf %227 : vector<8x64xf32>
    %229 = math.exp %228 : vector<8x64xf32>
    %cst_43 = arith.constant 1.000000e+00 : f32
    %230 = vector.broadcast %cst_43 : f32 to vector<8x64xf32>
    %231 = arith.addf %230, %229 : vector<8x64xf32>
    %232 = arith.divf %230, %231 : vector<8x64xf32>
    %233 = vector.extract_strided_slice %232 {offsets = [0, 0], sizes = [8, 32], strides = [1, 1]} : vector<8x64xf32> to vector<8x32xf32>
    %234 = vector.extract_strided_slice %232 {offsets = [0, 32], sizes = [8, 32], strides = [1, 1]} : vector<8x64xf32> to vector<8x32xf32>
    %235 = vector.extract_strided_slice %221 {offsets = [0, 64], sizes = [8, 32], strides = [1, 1]} : vector<8x96xf32> to vector<8x32xf32>
    %236 = vector.extract_strided_slice %224 {offsets = [0, 64], sizes = [8, 32], strides = [1, 1]} : vector<8x96xf32> to vector<8x32xf32>
    %237 = arith.mulf %233, %236 : vector<8x32xf32>
    %238 = arith.addf %235, %237 : vector<8x32xf32>
    %239 = math.tanh %238 : vector<8x32xf32>
    %cst_44 = arith.constant 1.000000e+00 : f32
    %240 = vector.broadcast %cst_44 : f32 to vector<8x32xf32>
    %241 = arith.subf %240, %234 : vector<8x32xf32>
    %242 = arith.mulf %241, %239 : vector<8x32xf32>
    %243 = arith.mulf %234, %220 : vector<8x32xf32>
    %244 = arith.addf %242, %243 : vector<8x32xf32>
    %245 = vector.extract_strided_slice %27 {offsets = [72, 0], sizes = [8, 96], strides = [1, 1]} : vector<104x96xf32> to vector<8x96xf32>
    %cst_45 = arith.constant dense<0.000000e+00> : vector<8x96xf32>
    %246 = tpu.matmul %244, %22, %cst_45 {dimension_numbers = #tpu.dot_dimension_numbers<[1], [0], [0], [1], [0, 0, 1, 1], [], []>} : vector<8x32xf32>, vector<32x96xf32>, vector<8x96xf32> -> vector<8x96xf32>
    %247 = vector.broadcast %24 : vector<1x96xf32> to vector<8x96xf32>
    %248 = arith.addf %246, %247 : vector<8x96xf32>
    %249 = vector.extract_strided_slice %245 {offsets = [0, 0], sizes = [8, 64], strides = [1, 1]} : vector<8x96xf32> to vector<8x64xf32>
    %250 = vector.extract_strided_slice %248 {offsets = [0, 0], sizes = [8, 64], strides = [1, 1]} : vector<8x96xf32> to vector<8x64xf32>
    %251 = arith.addf %249, %250 : vector<8x64xf32>
    %252 = arith.negf %251 : vector<8x64xf32>
    %253 = math.exp %252 : vector<8x64xf32>
    %cst_46 = arith.constant 1.000000e+00 : f32
    %254 = vector.broadcast %cst_46 : f32 to vector<8x64xf32>
    %255 = arith.addf %254, %253 : vector<8x64xf32>
    %256 = arith.divf %254, %255 : vector<8x64xf32>
    %257 = vector.extract_strided_slice %256 {offsets = [0, 0], sizes = [8, 32], strides = [1, 1]} : vector<8x64xf32> to vector<8x32xf32>
    %258 = vector.extract_strided_slice %256 {offsets = [0, 32], sizes = [8, 32], strides = [1, 1]} : vector<8x64xf32> to vector<8x32xf32>
    %259 = vector.extract_strided_slice %245 {offsets = [0, 64], sizes = [8, 32], strides = [1, 1]} : vector<8x96xf32> to vector<8x32xf32>
    %260 = vector.extract_strided_slice %248 {offsets = [0, 64], sizes = [8, 32], strides = [1, 1]} : vector<8x96xf32> to vector<8x32xf32>
    %261 = arith.mulf %257, %260 : vector<8x32xf32>
    %262 = arith.addf %259, %261 : vector<8x32xf32>
    %263 = math.tanh %262 : vector<8x32xf32>
    %cst_47 = arith.constant 1.000000e+00 : f32
    %264 = vector.broadcast %cst_47 : f32 to vector<8x32xf32>
    %265 = arith.subf %264, %258 : vector<8x32xf32>
    %266 = arith.mulf %265, %263 : vector<8x32xf32>
    %267 = arith.mulf %258, %244 : vector<8x32xf32>
    %268 = arith.addf %266, %267 : vector<8x32xf32>
    %269 = vector.extract_strided_slice %27 {offsets = [80, 0], sizes = [8, 96], strides = [1, 1]} : vector<104x96xf32> to vector<8x96xf32>
    %cst_48 = arith.constant dense<0.000000e+00> : vector<8x96xf32>
    %270 = tpu.matmul %268, %22, %cst_48 {dimension_numbers = #tpu.dot_dimension_numbers<[1], [0], [0], [1], [0, 0, 1, 1], [], []>} : vector<8x32xf32>, vector<32x96xf32>, vector<8x96xf32> -> vector<8x96xf32>
    %271 = vector.broadcast %24 : vector<1x96xf32> to vector<8x96xf32>
    %272 = arith.addf %270, %271 : vector<8x96xf32>
    %273 = vector.extract_strided_slice %269 {offsets = [0, 0], sizes = [8, 64], strides = [1, 1]} : vector<8x96xf32> to vector<8x64xf32>
    %274 = vector.extract_strided_slice %272 {offsets = [0, 0], sizes = [8, 64], strides = [1, 1]} : vector<8x96xf32> to vector<8x64xf32>
    %275 = arith.addf %273, %274 : vector<8x64xf32>
    %276 = arith.negf %275 : vector<8x64xf32>
    %277 = math.exp %276 : vector<8x64xf32>
    %cst_49 = arith.constant 1.000000e+00 : f32
    %278 = vector.broadcast %cst_49 : f32 to vector<8x64xf32>
    %279 = arith.addf %278, %277 : vector<8x64xf32>
    %280 = arith.divf %278, %279 : vector<8x64xf32>
    %281 = vector.extract_strided_slice %280 {offsets = [0, 0], sizes = [8, 32], strides = [1, 1]} : vector<8x64xf32> to vector<8x32xf32>
    %282 = vector.extract_strided_slice %280 {offsets = [0, 32], sizes = [8, 32], strides = [1, 1]} : vector<8x64xf32> to vector<8x32xf32>
    %283 = vector.extract_strided_slice %269 {offsets = [0, 64], sizes = [8, 32], strides = [1, 1]} : vector<8x96xf32> to vector<8x32xf32>
    %284 = vector.extract_strided_slice %272 {offsets = [0, 64], sizes = [8, 32], strides = [1, 1]} : vector<8x96xf32> to vector<8x32xf32>
    %285 = arith.mulf %281, %284 : vector<8x32xf32>
    %286 = arith.addf %283, %285 : vector<8x32xf32>
    %287 = math.tanh %286 : vector<8x32xf32>
    %cst_50 = arith.constant 1.000000e+00 : f32
    %288 = vector.broadcast %cst_50 : f32 to vector<8x32xf32>
    %289 = arith.subf %288, %282 : vector<8x32xf32>
    %290 = arith.mulf %289, %287 : vector<8x32xf32>
    %291 = arith.mulf %282, %268 : vector<8x32xf32>
    %292 = arith.addf %290, %291 : vector<8x32xf32>
    %293 = vector.extract_strided_slice %27 {offsets = [88, 0], sizes = [8, 96], strides = [1, 1]} : vector<104x96xf32> to vector<8x96xf32>
    %cst_51 = arith.constant dense<0.000000e+00> : vector<8x96xf32>
    %294 = tpu.matmul %292, %22, %cst_51 {dimension_numbers = #tpu.dot_dimension_numbers<[1], [0], [0], [1], [0, 0, 1, 1], [], []>} : vector<8x32xf32>, vector<32x96xf32>, vector<8x96xf32> -> vector<8x96xf32>
    %295 = vector.broadcast %24 : vector<1x96xf32> to vector<8x96xf32>
    %296 = arith.addf %294, %295 : vector<8x96xf32>
    %297 = vector.extract_strided_slice %293 {offsets = [0, 0], sizes = [8, 64], strides = [1, 1]} : vector<8x96xf32> to vector<8x64xf32>
    %298 = vector.extract_strided_slice %296 {offsets = [0, 0], sizes = [8, 64], strides = [1, 1]} : vector<8x96xf32> to vector<8x64xf32>
    %299 = arith.addf %297, %298 : vector<8x64xf32>
    %300 = arith.negf %299 : vector<8x64xf32>
    %301 = math.exp %300 : vector<8x64xf32>
    %cst_52 = arith.constant 1.000000e+00 : f32
    %302 = vector.broadcast %cst_52 : f32 to vector<8x64xf32>
    %303 = arith.addf %302, %301 : vector<8x64xf32>
    %304 = arith.divf %302, %303 : vector<8x64xf32>
    %305 = vector.extract_strided_slice %304 {offsets = [0, 0], sizes = [8, 32], strides = [1, 1]} : vector<8x64xf32> to vector<8x32xf32>
    %306 = vector.extract_strided_slice %304 {offsets = [0, 32], sizes = [8, 32], strides = [1, 1]} : vector<8x64xf32> to vector<8x32xf32>
    %307 = vector.extract_strided_slice %293 {offsets = [0, 64], sizes = [8, 32], strides = [1, 1]} : vector<8x96xf32> to vector<8x32xf32>
    %308 = vector.extract_strided_slice %296 {offsets = [0, 64], sizes = [8, 32], strides = [1, 1]} : vector<8x96xf32> to vector<8x32xf32>
    %309 = arith.mulf %305, %308 : vector<8x32xf32>
    %310 = arith.addf %307, %309 : vector<8x32xf32>
    %311 = math.tanh %310 : vector<8x32xf32>
    %cst_53 = arith.constant 1.000000e+00 : f32
    %312 = vector.broadcast %cst_53 : f32 to vector<8x32xf32>
    %313 = arith.subf %312, %306 : vector<8x32xf32>
    %314 = arith.mulf %313, %311 : vector<8x32xf32>
    %315 = arith.mulf %306, %292 : vector<8x32xf32>
    %316 = arith.addf %314, %315 : vector<8x32xf32>
    %317 = vector.extract_strided_slice %27 {offsets = [96, 0], sizes = [8, 96], strides = [1, 1]} : vector<104x96xf32> to vector<8x96xf32>
    %cst_54 = arith.constant dense<0.000000e+00> : vector<8x96xf32>
    %318 = tpu.matmul %316, %22, %cst_54 {dimension_numbers = #tpu.dot_dimension_numbers<[1], [0], [0], [1], [0, 0, 1, 1], [], []>} : vector<8x32xf32>, vector<32x96xf32>, vector<8x96xf32> -> vector<8x96xf32>
    %319 = vector.broadcast %24 : vector<1x96xf32> to vector<8x96xf32>
    %320 = arith.addf %318, %319 : vector<8x96xf32>
    %321 = vector.extract_strided_slice %317 {offsets = [0, 0], sizes = [8, 64], strides = [1, 1]} : vector<8x96xf32> to vector<8x64xf32>
    %322 = vector.extract_strided_slice %320 {offsets = [0, 0], sizes = [8, 64], strides = [1, 1]} : vector<8x96xf32> to vector<8x64xf32>
    %323 = arith.addf %321, %322 : vector<8x64xf32>
    %324 = arith.negf %323 : vector<8x64xf32>
    %325 = math.exp %324 : vector<8x64xf32>
    %cst_55 = arith.constant 1.000000e+00 : f32
    %326 = vector.broadcast %cst_55 : f32 to vector<8x64xf32>
    %327 = arith.addf %326, %325 : vector<8x64xf32>
    %328 = arith.divf %326, %327 : vector<8x64xf32>
    %329 = vector.extract_strided_slice %328 {offsets = [0, 0], sizes = [8, 32], strides = [1, 1]} : vector<8x64xf32> to vector<8x32xf32>
    %330 = vector.extract_strided_slice %328 {offsets = [0, 32], sizes = [8, 32], strides = [1, 1]} : vector<8x64xf32> to vector<8x32xf32>
    %331 = vector.extract_strided_slice %317 {offsets = [0, 64], sizes = [8, 32], strides = [1, 1]} : vector<8x96xf32> to vector<8x32xf32>
    %332 = vector.extract_strided_slice %320 {offsets = [0, 64], sizes = [8, 32], strides = [1, 1]} : vector<8x96xf32> to vector<8x32xf32>
    %333 = arith.mulf %329, %332 : vector<8x32xf32>
    %334 = arith.addf %331, %333 : vector<8x32xf32>
    %335 = math.tanh %334 : vector<8x32xf32>
    %cst_56 = arith.constant 1.000000e+00 : f32
    %336 = vector.broadcast %cst_56 : f32 to vector<8x32xf32>
    %337 = arith.subf %336, %330 : vector<8x32xf32>
    %338 = arith.mulf %337, %335 : vector<8x32xf32>
    %339 = arith.mulf %330, %316 : vector<8x32xf32>
    %340 = arith.addf %338, %339 : vector<8x32xf32>
    %341 = vector.extract_strided_slice %20 {offsets = [8, 0], sizes = [96, 32], strides = [1, 1]} : vector<104x32xf32> to vector<96x32xf32>
    %c64 = arith.constant 64 : index
    %c0_57 = arith.constant 0 : index
    %342 = vector.load %arg1[%c64, %c0_57] : memref<132x96xf32, #tpu.memory_space<vmem>>, vector<32x96xf32>
    %c96 = arith.constant 96 : index
    %c0_58 = arith.constant 0 : index
    %343 = vector.load %arg1[%c96, %c0_58] : memref<132x96xf32, #tpu.memory_space<vmem>>, vector<32x96xf32>
    %c130 = arith.constant 130 : index
    %c0_59 = arith.constant 0 : index
    %344 = vector.load %arg1[%c130, %c0_59] : memref<132x96xf32, #tpu.memory_space<vmem>>, vector<1x96xf32>
    %c131 = arith.constant 131 : index
    %c0_60 = arith.constant 0 : index
    %345 = vector.load %arg1[%c131, %c0_60] : memref<132x96xf32, #tpu.memory_space<vmem>>, vector<1x96xf32>
    %cst_61 = arith.constant dense<0.000000e+00> : vector<96x96xf32>
    %346 = tpu.matmul %341, %342, %cst_61 {dimension_numbers = #tpu.dot_dimension_numbers<[1], [0], [0], [1], [0, 0, 1, 1], [], []>} : vector<96x32xf32>, vector<32x96xf32>, vector<96x96xf32> -> vector<96x96xf32>
    %347 = vector.broadcast %344 : vector<1x96xf32> to vector<96x96xf32>
    %348 = arith.addf %346, %347 : vector<96x96xf32>
    %cst_62 = arith.constant 0.000000e+00 : f32
    %349 = vector.broadcast %cst_62 : f32 to vector<32x32xf32>
    %350 = vector.extract_strided_slice %348 {offsets = [0, 0], sizes = [32, 96], strides = [1, 1]} : vector<96x96xf32> to vector<32x96xf32>
    %cst_63 = arith.constant dense<0.000000e+00> : vector<32x96xf32>
    %351 = tpu.matmul %349, %343, %cst_63 {dimension_numbers = #tpu.dot_dimension_numbers<[1], [0], [0], [1], [0, 0, 1, 1], [], []>} : vector<32x32xf32>, vector<32x96xf32>, vector<32x96xf32> -> vector<32x96xf32>
    %352 = vector.broadcast %345 : vector<1x96xf32> to vector<32x96xf32>
    %353 = arith.addf %351, %352 : vector<32x96xf32>
    %354 = vector.extract_strided_slice %350 {offsets = [0, 0], sizes = [32, 64], strides = [1, 1]} : vector<32x96xf32> to vector<32x64xf32>
    %355 = vector.extract_strided_slice %353 {offsets = [0, 0], sizes = [32, 64], strides = [1, 1]} : vector<32x96xf32> to vector<32x64xf32>
    %356 = arith.addf %354, %355 : vector<32x64xf32>
    %357 = arith.negf %356 : vector<32x64xf32>
    %358 = math.exp %357 : vector<32x64xf32>
    %cst_64 = arith.constant 1.000000e+00 : f32
    %359 = vector.broadcast %cst_64 : f32 to vector<32x64xf32>
    %360 = arith.addf %359, %358 : vector<32x64xf32>
    %361 = arith.divf %359, %360 : vector<32x64xf32>
    %362 = vector.extract_strided_slice %361 {offsets = [0, 0], sizes = [32, 32], strides = [1, 1]} : vector<32x64xf32> to vector<32x32xf32>
    %363 = vector.extract_strided_slice %361 {offsets = [0, 32], sizes = [32, 32], strides = [1, 1]} : vector<32x64xf32> to vector<32x32xf32>
    %364 = vector.extract_strided_slice %350 {offsets = [0, 64], sizes = [32, 32], strides = [1, 1]} : vector<32x96xf32> to vector<32x32xf32>
    %365 = vector.extract_strided_slice %353 {offsets = [0, 64], sizes = [32, 32], strides = [1, 1]} : vector<32x96xf32> to vector<32x32xf32>
    %366 = arith.mulf %362, %365 : vector<32x32xf32>
    %367 = arith.addf %364, %366 : vector<32x32xf32>
    %368 = math.tanh %367 : vector<32x32xf32>
    %cst_65 = arith.constant 1.000000e+00 : f32
    %369 = vector.broadcast %cst_65 : f32 to vector<32x32xf32>
    %370 = arith.subf %369, %363 : vector<32x32xf32>
    %371 = arith.mulf %370, %368 : vector<32x32xf32>
    %372 = arith.mulf %363, %349 : vector<32x32xf32>
    %373 = arith.addf %371, %372 : vector<32x32xf32>
    %374 = vector.extract_strided_slice %348 {offsets = [32, 0], sizes = [32, 96], strides = [1, 1]} : vector<96x96xf32> to vector<32x96xf32>
    %cst_66 = arith.constant dense<0.000000e+00> : vector<32x96xf32>
    %375 = tpu.matmul %373, %343, %cst_66 {dimension_numbers = #tpu.dot_dimension_numbers<[1], [0], [0], [1], [0, 0, 1, 1], [], []>} : vector<32x32xf32>, vector<32x96xf32>, vector<32x96xf32> -> vector<32x96xf32>
    %376 = vector.broadcast %345 : vector<1x96xf32> to vector<32x96xf32>
    %377 = arith.addf %375, %376 : vector<32x96xf32>
    %378 = vector.extract_strided_slice %374 {offsets = [0, 0], sizes = [32, 64], strides = [1, 1]} : vector<32x96xf32> to vector<32x64xf32>
    %379 = vector.extract_strided_slice %377 {offsets = [0, 0], sizes = [32, 64], strides = [1, 1]} : vector<32x96xf32> to vector<32x64xf32>
    %380 = arith.addf %378, %379 : vector<32x64xf32>
    %381 = arith.negf %380 : vector<32x64xf32>
    %382 = math.exp %381 : vector<32x64xf32>
    %cst_67 = arith.constant 1.000000e+00 : f32
    %383 = vector.broadcast %cst_67 : f32 to vector<32x64xf32>
    %384 = arith.addf %383, %382 : vector<32x64xf32>
    %385 = arith.divf %383, %384 : vector<32x64xf32>
    %386 = vector.extract_strided_slice %385 {offsets = [0, 0], sizes = [32, 32], strides = [1, 1]} : vector<32x64xf32> to vector<32x32xf32>
    %387 = vector.extract_strided_slice %385 {offsets = [0, 32], sizes = [32, 32], strides = [1, 1]} : vector<32x64xf32> to vector<32x32xf32>
    %388 = vector.extract_strided_slice %374 {offsets = [0, 64], sizes = [32, 32], strides = [1, 1]} : vector<32x96xf32> to vector<32x32xf32>
    %389 = vector.extract_strided_slice %377 {offsets = [0, 64], sizes = [32, 32], strides = [1, 1]} : vector<32x96xf32> to vector<32x32xf32>
    %390 = arith.mulf %386, %389 : vector<32x32xf32>
    %391 = arith.addf %388, %390 : vector<32x32xf32>
    %392 = math.tanh %391 : vector<32x32xf32>
    %cst_68 = arith.constant 1.000000e+00 : f32
    %393 = vector.broadcast %cst_68 : f32 to vector<32x32xf32>
    %394 = arith.subf %393, %387 : vector<32x32xf32>
    %395 = arith.mulf %394, %392 : vector<32x32xf32>
    %396 = arith.mulf %387, %373 : vector<32x32xf32>
    %397 = arith.addf %395, %396 : vector<32x32xf32>
    %398 = vector.extract_strided_slice %348 {offsets = [64, 0], sizes = [32, 96], strides = [1, 1]} : vector<96x96xf32> to vector<32x96xf32>
    %cst_69 = arith.constant dense<0.000000e+00> : vector<32x96xf32>
    %399 = tpu.matmul %397, %343, %cst_69 {dimension_numbers = #tpu.dot_dimension_numbers<[1], [0], [0], [1], [0, 0, 1, 1], [], []>} : vector<32x32xf32>, vector<32x96xf32>, vector<32x96xf32> -> vector<32x96xf32>
    %400 = vector.broadcast %345 : vector<1x96xf32> to vector<32x96xf32>
    %401 = arith.addf %399, %400 : vector<32x96xf32>
    %402 = vector.extract_strided_slice %398 {offsets = [0, 0], sizes = [32, 64], strides = [1, 1]} : vector<32x96xf32> to vector<32x64xf32>
    %403 = vector.extract_strided_slice %401 {offsets = [0, 0], sizes = [32, 64], strides = [1, 1]} : vector<32x96xf32> to vector<32x64xf32>
    %404 = arith.addf %402, %403 : vector<32x64xf32>
    %405 = arith.negf %404 : vector<32x64xf32>
    %406 = math.exp %405 : vector<32x64xf32>
    %cst_70 = arith.constant 1.000000e+00 : f32
    %407 = vector.broadcast %cst_70 : f32 to vector<32x64xf32>
    %408 = arith.addf %407, %406 : vector<32x64xf32>
    %409 = arith.divf %407, %408 : vector<32x64xf32>
    %410 = vector.extract_strided_slice %409 {offsets = [0, 0], sizes = [32, 32], strides = [1, 1]} : vector<32x64xf32> to vector<32x32xf32>
    %411 = vector.extract_strided_slice %409 {offsets = [0, 32], sizes = [32, 32], strides = [1, 1]} : vector<32x64xf32> to vector<32x32xf32>
    %412 = vector.extract_strided_slice %398 {offsets = [0, 64], sizes = [32, 32], strides = [1, 1]} : vector<32x96xf32> to vector<32x32xf32>
    %413 = vector.extract_strided_slice %401 {offsets = [0, 64], sizes = [32, 32], strides = [1, 1]} : vector<32x96xf32> to vector<32x32xf32>
    %414 = arith.mulf %410, %413 : vector<32x32xf32>
    %415 = arith.addf %412, %414 : vector<32x32xf32>
    %416 = math.tanh %415 : vector<32x32xf32>
    %cst_71 = arith.constant 1.000000e+00 : f32
    %417 = vector.broadcast %cst_71 : f32 to vector<32x32xf32>
    %418 = arith.subf %417, %411 : vector<32x32xf32>
    %419 = arith.mulf %418, %416 : vector<32x32xf32>
    %420 = arith.mulf %411, %397 : vector<32x32xf32>
    %421 = arith.addf %419, %420 : vector<32x32xf32>
    %c32_72 = arith.constant 32 : index
    %c0_73 = arith.constant 0 : index
    %422 = vector.load %arg2[%c32_72, %c0_73] : memref<260x32xf32, #tpu.memory_space<vmem>>, vector<32x32xf32>
    %cst_74 = arith.constant dense<0.000000e+00> : vector<8x32xf32>
    %423 = tpu.matmul %340, %422, %cst_74 {dimension_numbers = #tpu.dot_dimension_numbers<[1], [0], [0], [1], [0, 0, 1, 1], [], []>} : vector<8x32xf32>, vector<32x32xf32>, vector<8x32xf32> -> vector<8x32xf32>
    %c257 = arith.constant 257 : index
    %c0_75 = arith.constant 0 : index
    %424 = vector.load %arg2[%c257, %c0_75] : memref<260x32xf32, #tpu.memory_space<vmem>>, vector<1x32xf32>
    %425 = vector.broadcast %424 : vector<1x32xf32> to vector<8x32xf32>
    %426 = arith.addf %423, %425 : vector<8x32xf32>
    %c64_76 = arith.constant 64 : index
    %c0_77 = arith.constant 0 : index
    %427 = vector.load %arg2[%c64_76, %c0_77] : memref<260x32xf32, #tpu.memory_space<vmem>>, vector<32x32xf32>
    %428 = vector.extract_strided_slice %421 {offsets = [0, 0], sizes = [8, 32], strides = [1, 1]} : vector<32x32xf32> to vector<8x32xf32>
    %cst_78 = arith.constant dense<0.000000e+00> : vector<8x32xf32>
    %429 = tpu.matmul %428, %427, %cst_78 {dimension_numbers = #tpu.dot_dimension_numbers<[1], [0], [0], [1], [0, 0, 1, 1], [], []>} : vector<8x32xf32>, vector<32x32xf32>, vector<8x32xf32> -> vector<8x32xf32>
    %430 = arith.addf %426, %429 : vector<8x32xf32>
    %c96_79 = arith.constant 96 : index
    %c0_80 = arith.constant 0 : index
    %431 = vector.load %arg2[%c96_79, %c0_80] : memref<260x32xf32, #tpu.memory_space<vmem>>, vector<32x32xf32>
    %432 = vector.extract_strided_slice %421 {offsets = [8, 0], sizes = [8, 32], strides = [1, 1]} : vector<32x32xf32> to vector<8x32xf32>
    %cst_81 = arith.constant dense<0.000000e+00> : vector<8x32xf32>
    %433 = tpu.matmul %432, %431, %cst_81 {dimension_numbers = #tpu.dot_dimension_numbers<[1], [0], [0], [1], [0, 0, 1, 1], [], []>} : vector<8x32xf32>, vector<32x32xf32>, vector<8x32xf32> -> vector<8x32xf32>
    %434 = arith.addf %430, %433 : vector<8x32xf32>
    %c128_82 = arith.constant 128 : index
    %c0_83 = arith.constant 0 : index
    %435 = vector.load %arg2[%c128_82, %c0_83] : memref<260x32xf32, #tpu.memory_space<vmem>>, vector<32x32xf32>
    %436 = vector.extract_strided_slice %421 {offsets = [16, 0], sizes = [8, 32], strides = [1, 1]} : vector<32x32xf32> to vector<8x32xf32>
    %cst_84 = arith.constant dense<0.000000e+00> : vector<8x32xf32>
    %437 = tpu.matmul %436, %435, %cst_84 {dimension_numbers = #tpu.dot_dimension_numbers<[1], [0], [0], [1], [0, 0, 1, 1], [], []>} : vector<8x32xf32>, vector<32x32xf32>, vector<8x32xf32> -> vector<8x32xf32>
    %438 = arith.addf %434, %437 : vector<8x32xf32>
    %c160 = arith.constant 160 : index
    %c0_85 = arith.constant 0 : index
    %439 = vector.load %arg2[%c160, %c0_85] : memref<260x32xf32, #tpu.memory_space<vmem>>, vector<32x32xf32>
    %440 = vector.extract_strided_slice %421 {offsets = [24, 0], sizes = [8, 32], strides = [1, 1]} : vector<32x32xf32> to vector<8x32xf32>
    %cst_86 = arith.constant dense<0.000000e+00> : vector<8x32xf32>
    %441 = tpu.matmul %440, %439, %cst_86 {dimension_numbers = #tpu.dot_dimension_numbers<[1], [0], [0], [1], [0, 0, 1, 1], [], []>} : vector<8x32xf32>, vector<32x32xf32>, vector<8x32xf32> -> vector<8x32xf32>
    %442 = arith.addf %438, %441 : vector<8x32xf32>
    %cst_87 = arith.constant 0.000000e+00 : f32
    %443 = vector.broadcast %cst_87 : f32 to vector<8x32xf32>
    %c258 = arith.constant 258 : index
    %c0_88 = arith.constant 0 : index
    %444 = vector.load %arg2[%c258, %c0_88] : memref<260x32xf32, #tpu.memory_space<vmem>>, vector<1x32xf32>
    %445 = vector.broadcast %444 : vector<1x32xf32> to vector<8x32xf32>
    %446 = arith.addf %443, %445 : vector<8x32xf32>
    %c192 = arith.constant 192 : index
    %c0_89 = arith.constant 0 : index
    %447 = vector.load %arg2[%c192, %c0_89] : memref<260x32xf32, #tpu.memory_space<vmem>>, vector<8x32xf32>
    %448 = vector.extract_strided_slice %0 {offsets = [96, 0], sizes = [8, 8], strides = [1, 1]} : vector<128x8xf32> to vector<8x8xf32>
    %cst_90 = arith.constant dense<0.000000e+00> : vector<8x32xf32>
    %449 = tpu.matmul %448, %447, %cst_90 {dimension_numbers = #tpu.dot_dimension_numbers<[1], [0], [0], [1], [0, 0, 1, 1], [], []>} : vector<8x8xf32>, vector<8x32xf32>, vector<8x32xf32> -> vector<8x32xf32>
    %450 = arith.addf %446, %449 : vector<8x32xf32>
    %c200 = arith.constant 200 : index
    %c0_91 = arith.constant 0 : index
    %451 = vector.load %arg2[%c200, %c0_91] : memref<260x32xf32, #tpu.memory_space<vmem>>, vector<8x32xf32>
    %452 = vector.extract_strided_slice %0 {offsets = [104, 0], sizes = [8, 8], strides = [1, 1]} : vector<128x8xf32> to vector<8x8xf32>
    %cst_92 = arith.constant dense<0.000000e+00> : vector<8x32xf32>
    %453 = tpu.matmul %452, %451, %cst_92 {dimension_numbers = #tpu.dot_dimension_numbers<[1], [0], [0], [1], [0, 0, 1, 1], [], []>} : vector<8x8xf32>, vector<8x32xf32>, vector<8x32xf32> -> vector<8x32xf32>
    %454 = arith.addf %450, %453 : vector<8x32xf32>
    %c208 = arith.constant 208 : index
    %c0_93 = arith.constant 0 : index
    %455 = vector.load %arg2[%c208, %c0_93] : memref<260x32xf32, #tpu.memory_space<vmem>>, vector<8x32xf32>
    %456 = vector.extract_strided_slice %0 {offsets = [112, 0], sizes = [8, 8], strides = [1, 1]} : vector<128x8xf32> to vector<8x8xf32>
    %cst_94 = arith.constant dense<0.000000e+00> : vector<8x32xf32>
    %457 = tpu.matmul %456, %455, %cst_94 {dimension_numbers = #tpu.dot_dimension_numbers<[1], [0], [0], [1], [0, 0, 1, 1], [], []>} : vector<8x8xf32>, vector<8x32xf32>, vector<8x32xf32> -> vector<8x32xf32>
    %458 = arith.addf %454, %457 : vector<8x32xf32>
    %c216 = arith.constant 216 : index
    %c0_95 = arith.constant 0 : index
    %459 = vector.load %arg2[%c216, %c0_95] : memref<260x32xf32, #tpu.memory_space<vmem>>, vector<8x32xf32>
    %460 = vector.extract_strided_slice %0 {offsets = [120, 0], sizes = [8, 8], strides = [1, 1]} : vector<128x8xf32> to vector<8x8xf32>
    %cst_96 = arith.constant dense<0.000000e+00> : vector<8x32xf32>
    %461 = tpu.matmul %460, %459, %cst_96 {dimension_numbers = #tpu.dot_dimension_numbers<[1], [0], [0], [1], [0, 0, 1, 1], [], []>} : vector<8x8xf32>, vector<8x32xf32>, vector<8x32xf32> -> vector<8x32xf32>
    %462 = arith.addf %458, %461 : vector<8x32xf32>
    %463 = arith.addf %442, %462 : vector<8x32xf32>
    %c224 = arith.constant 224 : index
    %c0_97 = arith.constant 0 : index
    %464 = vector.load %arg2[%c224, %c0_97] : memref<260x32xf32, #tpu.memory_space<vmem>>, vector<32x32xf32>
    %cst_98 = arith.constant dense<0.000000e+00> : vector<8x32xf32>
    %465 = tpu.matmul %463, %464, %cst_98 {dimension_numbers = #tpu.dot_dimension_numbers<[1], [0], [0], [1], [0, 0, 1, 1], [], []>} : vector<8x32xf32>, vector<32x32xf32>, vector<8x32xf32> -> vector<8x32xf32>
    %c259 = arith.constant 259 : index
    %c0_99 = arith.constant 0 : index
    %466 = vector.load %arg2[%c259, %c0_99] : memref<260x32xf32, #tpu.memory_space<vmem>>, vector<1x32xf32>
    %467 = vector.broadcast %466 : vector<1x32xf32> to vector<8x32xf32>
    %468 = arith.addf %465, %467 : vector<8x32xf32>
    %c0_100 = arith.constant 0 : index
    %c0_101 = arith.constant 0 : index
    %469 = vector.load %arg3[%c0_100, %c0_101] : memref<8x32xf32, #tpu.memory_space<vmem>>, vector<8x32xf32>
    tpu.vector_store %arg3[%c0_100, %c0_101], %468 {strides = array<i32>} : memref<8x32xf32, #tpu.memory_space<vmem>>, vector<8x32xf32>,
    return
  }
}

</mosaic_0001>

<llo_original>
// kernel: lstnet_forward.1
$region0: #{lstnet_forward.1}
  #allocation0 [shape = 'u32[]', space=smem, size = 0x4, offset = 0x4, fixed_abs, tag = 'smem constant byte address 0x4 - core index']
  #allocation1 [shape = 'u32[144,128]{1,0:T(1,128)}', space=vmem, size = 0x12000, scoped, tag = 'internal scratch']
  %s0 = inlined_call_operand.vmem [shape: f32[128,8], index: 0, kind: input, shape index: {}]
  %s1 = inlined_call_operand.vmem [shape: f32[132,96], index: 1, kind: input, shape index: {}]
  %s2 = inlined_call_operand.vmem [shape: f32[260,32], index: 2, kind: input, shape index: {}]
  %s3 = inlined_call_operand.vmem [shape: f32[8,32], index: 3, kind: output, shape index: {}]
  %s4 = sld [smem:[#allocation0]]
  $region22: #{lstnet_forward.1} parent=0
    _
  %s6 = ssub.s32 1, %s4
  %s7 = scalar_select 0, %s6, %s4
  // Predicated region
  $region2: #{lstnet_forward.1} parent=0 // pred_check
    _
  $region3: #{lstnet_forward.1} parent=0 // pred_check_branch
    %9 = sbr.rel (0) target = $region5
  $region4: #{lstnet_forward.1} parent=0 // pred_region
    _
  $region5: #{lstnet_forward.1} parent=0 // pred_fallthru
    _
  // Predicated region
  $region6: #{lstnet_forward.1} parent=0 // pred_check
    _
  $region7: #{lstnet_forward.1} parent=0 // pred_check_branch
    %11 = sbr.rel (0) target = $region9
  $region8: #{lstnet_forward.1} parent=0 // pred_region
    _
  $region9: #{lstnet_forward.1} parent=0 // pred_fallthru
    _
  // Predicated region
  $region10: #{lstnet_forward.1} parent=0 // pred_check
    _
  $region11: #{lstnet_forward.1} parent=0 // pred_check_branch
    %13 = sbr.rel (0) target = $region13
  $region12: #{lstnet_forward.1} parent=0 // pred_region
    _
  $region13: #{lstnet_forward.1} parent=0 // pred_fallthru
    _
  %v14 = vld [vmem:[%s0] sm:$0xff]
  %v15 = vld [vmem:[%s0 + $0x8] sm:$0xff]
  %v16 = vld [vmem:[%s0 + $0x10] sm:$0xff]
  %v17 = vld [vmem:[%s0 + $0x18] sm:$0xff]
  %v18 = vld [vmem:[%s0 + $0x20] sm:$0xff]
  %v19 = vld [vmem:[%s0 + $0x28] sm:$0xff]
  %v20 = vld [vmem:[%s0 + $0x30] sm:$0xff]
  %v21 = vld [vmem:[%s0 + $0x38] sm:$0xff]
  %v22 = vld [vmem:[%s0 + $0x40] sm:$0xff]
  %v23 = vld [vmem:[%s0 + $0x48] sm:$0xff]
  %v24 = vld [vmem:[%s0 + $0x50] sm:$0xff]
  %v25 = vld [vmem:[%s0 + $0x58] sm:$0xff]
  %v26 = vld [vmem:[%s0 + $0x60] sm:$0xff]
  %v27 = vld [vmem:[%s0 + $0x68] sm:$0xff]
  %v28 = vld [vmem:[%s0 + $0x70] sm:$0xff]
  %v29 = vld [vmem:[%s0 + $0x78] sm:$0xff]
  %v30 = vld [vmem:[%s2] sm:$0xff]
  %v31 = vld [vmem:[%s2 + $0x8] sm:$0xff]
  %vm32 = vcmask 64512
  %v34 = vsel %vm32, %v15, 0
  %v37 = vsel %vm32, %v16, 0
  %v40 = vsel %vm32, %v17, 0
  %v43 = vsel %vm32, %v18, 0
  %v46 = vsel %vm32, %v19, 0
  %v49 = vsel %vm32, %v20, 0
  %v52 = vsel %vm32, %v21, 0
  %v55 = vsel %vm32, %v22, 0
  %v58 = vsel %vm32, %v23, 0
  %v61 = vsel %vm32, %v24, 0
  %v64 = vsel %vm32, %v25, 0
  %v67 = vsel %vm32, %v26, 0
  %v70 = vsel %vm32, %v27, 0
  %72 = vmatprep.subr.mxu0 0.0
  %73 = vmatpush1.msra.mxu0 %v31
  %74 = vmatprep.subr.mxu0 0.0
  %75 = vmatpush1.msra.mxu0 0.0
  %76 = vmatprep.subr.mxu0 0.0
  %77 = vmatpush1.msra.mxu0 0.0
  %78 = vmatprep.subr.mxu0 0.0
  %79 = vmatpush1.msra.mxu0 0.0
  %80 = vmatprep.subr.mxu0 0.0
  %81 = vmatpush1.msra.mxu0 0.0
  %82 = vmatprep.subr.mxu0 0.0
  %83 = vmatpush1.msra.mxu0 0.0
  %84 = vmatprep.subr.mxu0 0.0
  %85 = vmatpush1.msra.mxu0 0.0
  %86 = vmatprep.subr.mxu0 0.0
  %87 = vmatpush1.msra.mxu0 0.0
  %88 = vmatprep.subr.mxu0 0.0
  %89 = vmatpush1.msra.mxu0 0.0
  %90 = vmatprep.subr.mxu0 0.0
  %91 = vmatpush1.msra.mxu0 0.0
  %92 = vmatprep.subr.mxu0 0.0
  %93 = vmatpush1.msra.mxu0 0.0
  %94 = vmatprep.subr.mxu0 0.0
  %95 = vmatpush1.msra.mxu0 0.0
  %96 = vmatprep.subr.mxu0 0.0
  %97 = vmatpush1.msra.mxu0 0.0
  %98 = vmatprep.subr.mxu0 0.0
  %99 = vmatpush1.msra.mxu0 0.0
  %100 = vmatprep.subr.mxu0 0.0
  %101 = vmatpush1.msra.mxu0 0.0
  %102 = vmatprep.subr.mxu0 0.0
  %103 = vmatpush1.msra.mxu0 0.0
  %104 = vmatprep.subr.mxu0 0.0
  %105 = vmatpush1.msra.mxu0 0.0
  %106 = vmatprep.subr.mxu0 0.0
  %107 = vmatpush1.msra.mxu0 0.0
  %108 = vmatprep.subr.mxu0 0.0
  %109 = vmatpush1.msra.mxu0 0.0
  %110 = vmatprep.subr.mxu0 0.0
  %111 = vmatpush1.msra.mxu0 0.0
  %112 = vmatprep.subr.mxu0 0.0
  %113 = vmatpush1.msra.mxu0 0.0
  %114 = vmatprep.subr.mxu0 0.0
  %115 = vmatpush1.msra.mxu0 0.0
  %116 = vmatprep.subr.mxu0 0.0
  %117 = vmatpush1.msra.mxu0 0.0
  %118 = vmatprep.subr.mxu0 0.0
  %119 = vmatpush1.msra.mxu0 0.0
  %120 = vmatprep.subr.mxu0 0.0
  %121 = vmatpush1.msra.mxu0 0.0
  %122 = vmatprep.subr.mxu0 0.0
  %123 = vmatpush1.msra.mxu0 0.0
  %124 = vmatprep.subr.mxu0 0.0
  %125 = vmatpush1.msra.mxu0 0.0
  %126 = vmatprep.subr.mxu0 0.0
  %127 = vmatpush1.msra.mxu0 0.0
  %128 = vmatprep.subr.mxu0 0.0
  %129 = vmatpush1.msra.mxu0 0.0
  %130 = vmatprep.subr.mxu0 0.0
  %131 = vmatpush1.msra.mxu0 0.0
  %132 = vmatprep.subr.mxu0 0.0
  %133 = vmatpush1.msra.mxu0 0.0
  %134 = vmatprep.subr.mxu0 0.0
  %135 = vmatpush1.msra.mxu0 0.0
  %136 = vmatprep.mubr.f32.mxu0 0.0
  %137 = vmatmul.mubr.f32.gmra.mrb[0].mxu0 %v34
  %v138 = vpop.f32.mrb[0].mxu0
  %v139 = vadd.f32 0.0, %v138
  %v140 = vpop.f32.mrb[0].mxu0
  %141 = vmatprep.mubr.f32.mxu0 0.0
  %142 = vmatmul.mubr.f32.gmra.mrb[0].mxu0 %v37
  %v143 = vpop.f32.mrb[0].mxu0
  %v144 = vadd.f32 0.0, %v143
  %v145 = vpop.f32.mrb[0].mxu0
  %146 = vmatprep.mubr.f32.mxu0 0.0
  %147 = vmatmul.mubr.f32.gmra.mrb[0].mxu0 %v40
  %v148 = vpop.f32.mrb[0].mxu0
  %v149 = vadd.f32 0.0, %v148
  %v150 = vpop.f32.mrb[0].mxu0
  %151 = vmatprep.mubr.f32.mxu0 0.0
  %152 = vmatmul.mubr.f32.gmra.mrb[0].mxu0 %v43
  %v153 = vpop.f32.mrb[0].mxu0
  %v154 = vadd.f32 0.0, %v153
  %v155 = vpop.f32.mrb[0].mxu0
  %156 = vmatprep.mubr.f32.mxu0 0.0
  %157 = vmatmul.mubr.f32.gmra.mrb[0].mxu0 %v46
  %v158 = vpop.f32.mrb[0].mxu0
  %v159 = vadd.f32 0.0, %v158
  %v160 = vpop.f32.mrb[0].mxu0
  %161 = vmatprep.mubr.f32.mxu0 0.0
  %162 = vmatmul.mubr.f32.gmra.mrb[0].mxu0 %v49
  %v163 = vpop.f32.mrb[0].mxu0
  %v164 = vadd.f32 0.0, %v163
  %v165 = vpop.f32.mrb[0].mxu0
  %166 = vmatprep.mubr.f32.mxu0 0.0
  %167 = vmatmul.mubr.f32.gmra.mrb[0].mxu0 %v52
  %v168 = vpop.f32.mrb[0].mxu0
  %v169 = vadd.f32 0.0, %v168
  %v170 = vpop.f32.mrb[0].mxu0
  %171 = vmatprep.mubr.f32.mxu0 0.0
  %172 = vmatmul.mubr.f32.gmra.mrb[0].mxu0 %v55
  %v173 = vpop.f32.mrb[0].mxu0
  %v174 = vadd.f32 0.0, %v173
  %v175 = vpop.f32.mrb[0].mxu0
  %176 = vmatprep.mubr.f32.mxu0 0.0
  %177 = vmatmul.mubr.f32.gmra.mrb[0].mxu0 %v58
  %v178 = vpop.f32.mrb[0].mxu0
  %v179 = vadd.f32 0.0, %v178
  %v180 = vpop.f32.mrb[0].mxu0
  %181 = vmatprep.mubr.f32.mxu0 0.0
  %182 = vmatmul.mubr.f32.gmra.mrb[0].mxu0 %v61
  %v183 = vpop.f32.mrb[0].mxu0
  %v184 = vadd.f32 0.0, %v183
  %v185 = vpop.f32.mrb[0].mxu0
  %186 = vmatprep.mubr.f32.mxu0 0.0
  %187 = vmatmul.mubr.f32.gmra.mrb[0].mxu0 %v64
  %v188 = vpop.f32.mrb[0].mxu0
  %v189 = vadd.f32 0.0, %v188
  %v190 = vpop.f32.mrb[0].mxu0
  %191 = vmatprep.mubr.f32.mxu0 0.0
  %192 = vmatmul.mubr.f32.gmra.mrb[0].mxu0 %v67
  %v193 = vpop.f32.mrb[0].mxu0
  %v194 = vadd.f32 0.0, %v193
  %v195 = vpop.f32.mrb[0].mxu0
  %196 = vmatprep.mubr.f32.mxu0 0.0
  %197 = vmatmul.mubr.f32.gmra.mrb[0].mxu0 %v70
  %v198 = vpop.f32.mrb[0].mxu0
  %v199 = vadd.f32 0.0, %v198
  %v200 = vpop.f32.mrb[0].mxu0
  %201 = vdwg.mxu0
  %v203 = vsel %vm32, %v14, 0
  %205 = vmatprep.subr.mxu0 0.0
  %206 = vmatpush1.msra.mxu0 %v30
  %207 = vmatprep.subr.mxu0 0.0
  %208 = vmatpush1.msra.mxu0 0.0
  %209 = vmatprep.subr.mxu0 0.0
  %210 = vmatpush1.msra.mxu0 0.0
  %211 = vmatprep.subr.mxu0 0.0
  %212 = vmatpush1.msra.mxu0 0.0
  %213 = vmatprep.subr.mxu0 0.0
  %214 = vmatpush1.msra.mxu0 0.0
  %215 = vmatprep.subr.mxu0 0.0
  %216 = vmatpush1.msra.mxu0 0.0
  %217 = vmatprep.subr.mxu0 0.0
  %218 = vmatpush1.msra.mxu0 0.0
  %219 = vmatprep.subr.mxu0 0.0
  %220 = vmatpush1.msra.mxu0 0.0
  %221 = vmatprep.subr.mxu0 0.0
  %222 = vmatpush1.msra.mxu0 0.0
  %223 = vmatprep.subr.mxu0 0.0
  %224 = vmatpush1.msra.mxu0 0.0
  %225 = vmatprep.subr.mxu0 0.0
  %226 = vmatpush1.msra.mxu0 0.0
  %227 = vmatprep.subr.mxu0 0.0
  %228 = vmatpush1.msra.mxu0 0.0
  %229 = vmatprep.subr.mxu0 0.0
  %230 = vmatpush1.msra.mxu0 0.0
  %231 = vmatprep.subr.mxu0 0.0
  %232 = vmatpush1.msra.mxu0 0.0
  %233 = vmatprep.subr.mxu0 0.0
  %234 = vmatpush1.msra.mxu0 0.0
  %235 = vmatprep.subr.mxu0 0.0
  %236 = vmatpush1.msra.mxu0 0.0
  %237 = vmatprep.subr.mxu0 0.0
  %238 = vmatpush1.msra.mxu0 0.0
  %239 = vmatprep.subr.mxu0 0.0
  %240 = vmatpush1.msra.mxu0 0.0
  %241 = vmatprep.subr.mxu0 0.0
  %242 = vmatpush1.msra.mxu0 0.0
  %243 = vmatprep.subr.mxu0 0.0
  %244 = vmatpush1.msra.mxu0 0.0
  %245 = vmatprep.subr.mxu0 0.0
  %246 = vmatpush1.msra.mxu0 0.0
  %247 = vmatprep.subr.mxu0 0.0
  %248 = vmatpush1.msra.mxu0 0.0
  %249 = vmatprep.subr.mxu0 0.0
  %250 = vmatpush1.msra.mxu0 0.0
  %251 = vmatprep.subr.mxu0 0.0
  %252 = vmatpush1.msra.mxu0 0.0
  %253 = vmatprep.subr.mxu0 0.0
  %254 = vmatpush1.msra.mxu0 0.0
  %255 = vmatprep.subr.mxu0 0.0
  %256 = vmatpush1.msra.mxu0 0.0
  %257 = vmatprep.subr.mxu0 0.0
  %258 = vmatpush1.msra.mxu0 0.0
  %259 = vmatprep.subr.mxu0 0.0
  %260 = vmatpush1.msra.mxu0 0.0
  %261 = vmatprep.subr.mxu0 0.0
  %262 = vmatpush1.msra.mxu0 0.0
  %263 = vmatprep.subr.mxu0 0.0
  %264 = vmatpush1.msra.mxu0 0.0
  %265 = vmatprep.subr.mxu0 0.0
  %266 = vmatpush1.msra.mxu0 0.0
  %267 = vmatprep.subr.mxu0 0.0
  %268 = vmatpush1.msra.mxu0 0.0
  %269 = vmatprep.mubr.f32.mxu0 0.0
  %270 = vmatmul.mubr.f32.gmra.mrb[0].mxu0 %v203
  %v271 = vpop.f32.mrb[0].mxu0
  %v272 = vadd.f32 %v139, %v271
  %v273 = vpop.f32.mrb[0].mxu0
  %274 = vmatprep.mubr.f32.mxu0 0.0
  %275 = vmatmul.mubr.f32.gmra.mrb[0].mxu0 %v34
  %v276 = vpop.f32.mrb[0].mxu0
  %v277 = vadd.f32 %v144, %v276
  %v278 = vpop.f32.mrb[0].mxu0
  %279 = vmatprep.mubr.f32.mxu0 0.0
  %280 = vmatmul.mubr.f32.gmra.mrb[0].mxu0 %v37
  %v281 = vpop.f32.mrb[0].mxu0
  %v282 = vadd.f32 %v149, %v281
  %v283 = vpop.f32.mrb[0].mxu0
  %284 = vmatprep.mubr.f32.mxu0 0.0
  %285 = vmatmul.mubr.f32.gmra.mrb[0].mxu0 %v40
  %v286 = vpop.f32.mrb[0].mxu0
  %v287 = vadd.f32 %v154, %v286
  %v288 = vpop.f32.mrb[0].mxu0
  %289 = vmatprep.mubr.f32.mxu0 0.0
  %290 = vmatmul.mubr.f32.gmra.mrb[0].mxu0 %v43
  %v291 = vpop.f32.mrb[0].mxu0
  %v292 = vadd.f32 %v159, %v291
  %v293 = vpop.f32.mrb[0].mxu0
  %294 = vmatprep.mubr.f32.mxu0 0.0
  %295 = vmatmul.mubr.f32.gmra.mrb[0].mxu0 %v46
  %v296 = vpop.f32.mrb[0].mxu0
  %v297 = vadd.f32 %v164, %v296
  %v298 = vpop.f32.mrb[0].mxu0
  %299 = vmatprep.mubr.f32.mxu0 0.0
  %300 = vmatmul.mubr.f32.gmra.mrb[0].mxu0 %v49
  %v301 = vpop.f32.mrb[0].mxu0
  %v302 = vadd.f32 %v169, %v301
  %v303 = vpop.f32.mrb[0].mxu0
  %304 = vmatprep.mubr.f32.mxu0 0.0
  %305 = vmatmul.mubr.f32.gmra.mrb[0].mxu0 %v52
  %v306 = vpop.f32.mrb[0].mxu0
  %v307 = vadd.f32 %v174, %v306
  %v308 = vpop.f32.mrb[0].mxu0
  %309 = vmatprep.mubr.f32.mxu0 0.0
  %310 = vmatmul.mubr.f32.gmra.mrb[0].mxu0 %v55
  %v311 = vpop.f32.mrb[0].mxu0
  %v312 = vadd.f32 %v179, %v311
  %v313 = vpop.f32.mrb[0].mxu0
  %314 = vmatprep.mubr.f32.mxu0 0.0
  %315 = vmatmul.mubr.f32.gmra.mrb[0].mxu0 %v58
  %v316 = vpop.f32.mrb[0].mxu0
  %v317 = vadd.f32 %v184, %v316
  %v318 = vpop.f32.mrb[0].mxu0
  %319 = vmatprep.mubr.f32.mxu0 0.0
  %320 = vmatmul.mubr.f32.gmra.mrb[0].mxu0 %v61
  %v321 = vpop.f32.mrb[0].mxu0
  %v322 = vadd.f32 %v189, %v321
  %v323 = vpop.f32.mrb[0].mxu0
  %324 = vmatprep.mubr.f32.mxu0 0.0
  %325 = vmatmul.mubr.f32.gmra.mrb[0].mxu0 %v64
  %v326 = vpop.f32.mrb[0].mxu0
  %v327 = vadd.f32 %v194, %v326
  %v328 = vpop.f32.mrb[0].mxu0
  %329 = vmatprep.mubr.f32.mxu0 0.0
  %330 = vmatmul.mubr.f32.gmra.mrb[0].mxu0 %v67
  %v331 = vpop.f32.mrb[0].mxu0
  %v332 = vadd.f32 %v199, %v331
  %v333 = vpop.f32.mrb[0].mxu0
  %334 = vdwg.mxu0
  %v335 = vld [vmem:[%s2 + $0x10] sm:$0xff]
  %v337 = vsel %vm32, %v28, 0
  %339 = vmatprep.subr.mxu0 0.0
  %340 = vmatpush1.msra.mxu0 %v335
  %341 = vmatprep.subr.mxu0 0.0
  %342 = vmatpush1.msra.mxu0 0.0
  %343 = vmatprep.subr.mxu0 0.0
  %344 = vmatpush1.msra.mxu0 0.0
  %345 = vmatprep.subr.mxu0 0.0
  %346 = vmatpush1.msra.mxu0 0.0
  %347 = vmatprep.subr.mxu0 0.0
  %348 = vmatpush1.msra.mxu0 0.0
  %349 = vmatprep.subr.mxu0 0.0
  %350 = vmatpush1.msra.mxu0 0.0
  %351 = vmatprep.subr.mxu0 0.0
  %352 = vmatpush1.msra.mxu0 0.0
  %353 = vmatprep.subr.mxu0 0.0
  %354 = vmatpush1.msra.mxu0 0.0
  %355 = vmatprep.subr.mxu0 0.0
  %356 = vmatpush1.msra.mxu0 0.0
  %357 = vmatprep.subr.mxu0 0.0
  %358 = vmatpush1.msra.mxu0 0.0
  %359 = vmatprep.subr.mxu0 0.0
  %360 = vmatpush1.msra.mxu0 0.0
  %361 = vmatprep.subr.mxu0 0.0
  %362 = vmatpush1.msra.mxu0 0.0
  %363 = vmatprep.subr.mxu0 0.0
  %364 = vmatpush1.msra.mxu0 0.0
  %365 = vmatprep.subr.mxu0 0.0
  %366 = vmatpush1.msra.mxu0 0.0
  %367 = vmatprep.subr.mxu0 0.0
  %368 = vmatpush1.msra.mxu0 0.0
  %369 = vmatprep.subr.mxu0 0.0
  %370 = vmatpush1.msra.mxu0 0.0
  %371 = vmatprep.subr.mxu0 0.0
  %372 = vmatpush1.msra.mxu0 0.0
  %373 = vmatprep.subr.mxu0 0.0
  %374 = vmatpush1.msra.mxu0 0.0
  %375 = vmatprep.subr.mxu0 0.0
  %376 = vmatpush1.msra.mxu0 0.0
  %377 = vmatprep.subr.mxu0 0.0
  %378 = vmatpush1.msra.mxu0 0.0
  %379 = vmatprep.subr.mxu0 0.0
  %380 = vmatpush1.msra.mxu0 0.0
  %381 = vmatprep.subr.mxu0 0.0
  %382 = vmatpush1.msra.mxu0 0.0
  %383 = vmatprep.subr.mxu0 0.0
  %384 = vmatpush1.msra.mxu0 0.0
  %385 = vmatprep.subr.mxu0 0.0
  %386 = vmatpush1.msra.mxu0 0.0
  %387 = vmatprep.subr.mxu0 0.0
  %388 = vmatpush1.msra.mxu0 0.0
  %389 = vmatprep.subr.mxu0 0.0
  %390 = vmatpush1.msra.mxu0 0.0
  %391 = vmatprep.subr.mxu0 0.0
  %392 = vmatpush1.msra.mxu0 0.0
  %393 = vmatprep.subr.mxu0 0.0
  %394 = vmatpush1.msra.mxu0 0.0
  %395 = vmatprep.subr.mxu0 0.0
  %396 = vmatpush1.msra.mxu0 0.0
  %397 = vmatprep.subr.mxu0 0.0
  %398 = vmatpush1.msra.mxu0 0.0
  %399 = vmatprep.subr.mxu0 0.0
  %400 = vmatpush1.msra.mxu0 0.0
  %401 = vmatprep.subr.mxu0 0.0
  %402 = vmatpush1.msra.mxu0 0.0
  %403 = vmatprep.mubr.f32.mxu0 0.0
  %404 = vmatmul.mubr.f32.gmra.mrb[0].mxu0 %v37
  %v405 = vpop.f32.mrb[0].mxu0
  %v406 = vadd.f32 0.0, %v405
  %v407 = vpop.f32.mrb[0].mxu0
  %408 = vmatprep.mubr.f32.mxu0 0.0
  %409 = vmatmul.mubr.f32.gmra.mrb[0].mxu0 %v40
  %v410 = vpop.f32.mrb[0].mxu0
  %v411 = vadd.f32 0.0, %v410
  %v412 = vpop.f32.mrb[0].mxu0
  %413 = vmatprep.mubr.f32.mxu0 0.0
  %414 = vmatmul.mubr.f32.gmra.mrb[0].mxu0 %v43
  %v415 = vpop.f32.mrb[0].mxu0
  %v416 = vadd.f32 0.0, %v415
  %v417 = vpop.f32.mrb[0].mxu0
  %418 = vmatprep.mubr.f32.mxu0 0.0
  %419 = vmatmul.mubr.f32.gmra.mrb[0].mxu0 %v46
  %v420 = vpop.f32.mrb[0].mxu0
  %v421 = vadd.f32 0.0, %v420
  %v422 = vpop.f32.mrb[0].mxu0
  %423 = vmatprep.mubr.f32.mxu0 0.0
  %424 = vmatmul.mubr.f32.gmra.mrb[0].mxu0 %v49
  %v425 = vpop.f32.mrb[0].mxu0
  %v426 = vadd.f32 0.0, %v425
  %v427 = vpop.f32.mrb[0].mxu0
  %428 = vmatprep.mubr.f32.mxu0 0.0
  %429 = vmatmul.mubr.f32.gmra.mrb[0].mxu0 %v52
  %v430 = vpop.f32.mrb[0].mxu0
  %v431 = vadd.f32 0.0, %v430
  %v432 = vpop.f32.mrb[0].mxu0
  %433 = vmatprep.mubr.f32.mxu0 0.0
  %434 = vmatmul.mubr.f32.gmra.mrb[0].mxu0 %v55
  %v435 = vpop.f32.mrb[0].mxu0
  %v436 = vadd.f32 0.0, %v435
  %v437 = vpop.f32.mrb[0].mxu0
  %438 = vmatprep.mubr.f32.mxu0 0.0
  %439 = vmatmul.mubr.f32.gmra.mrb[0].mxu0 %v58
  %v440 = vpop.f32.mrb[0].mxu0
  %v441 = vadd.f32 0.0, %v440
  %v442 = vpop.f32.mrb[0].mxu0
  %443 = vmatprep.mubr.f32.mxu0 0.0
  %444 = vmatmul.mubr.f32.gmra.mrb[0].mxu0 %v61
  %v445 = vpop.f32.mrb[0].mxu0
  %v446 = vadd.f32 0.0, %v445
  %v447 = vpop.f32.mrb[0].mxu0
  %448 = vmatprep.mubr.f32.mxu0 0.0
  %449 = vmatmul.mubr.f32.gmra.mrb[0].mxu0 %v64
  %v450 = vpop.f32.mrb[0].mxu0
  %v451 = vadd.f32 0.0, %v450
  %v452 = vpop.f32.mrb[0].mxu0
  %453 = vmatprep.mubr.f32.mxu0 0.0
  %454 = vmatmul.mubr.f32.gmra.mrb[0].mxu0 %v67
  %v455 = vpop.f32.mrb[0].mxu0
  %v456 = vadd.f32 0.0, %v455
  %v457 = vpop.f32.mrb[0].mxu0
  %458 = vmatprep.mubr.f32.mxu0 0.0
  %459 = vmatmul.mubr.f32.gmra.mrb[0].mxu0 %v70
  %v460 = vpop.f32.mrb[0].mxu0
  %v461 = vadd.f32 0.0, %v460
  %v462 = vpop.f32.mrb[0].mxu0
  %463 = vmatprep.mubr.f32.mxu0 0.0
  %464 = vmatmul.mubr.f32.gmra.mrb[0].mxu0 %v337
  %v465 = vpop.f32.mrb[0].mxu0
  %v466 = vadd.f32 0.0, %v465
  %v467 = vpop.f32.mrb[0].mxu0
  %468 = vdwg.mxu0
  %v469 = vadd.f32 %v272, %v406
  %v470 = vadd.f32 %v277, %v411
  %v471 = vadd.f32 %v282, %v416
  %v472 = vadd.f32 %v287, %v421
  %v473 = vadd.f32 %v292, %v426
  %v474 = vadd.f32 %v297, %v431
  %v475 = vadd.f32 %v302, %v436
  %v476 = vadd.f32 %v307, %v441
  %v477 = vadd.f32 %v312, %v446
  %v478 = vadd.f32 %v317, %v451
  %v479 = vadd.f32 %v322, %v456
  %v480 = vadd.f32 %v327, %v461
  %v481 = vadd.f32 %v332, %v466
  %v482 = vld [vmem:[%s2 + $0x18] sm:$0xff]
  %v484 = vsel %vm32, %v29, 0
  %486 = vmatprep.subr.mxu0 0.0
  %487 = vmatpush1.msra.mxu0 %v482
  %488 = vmatprep.subr.mxu0 0.0
  %489 = vmatpush1.msra.mxu0 0.0
  %490 = vmatprep.subr.mxu0 0.0
  %491 = vmatpush1.msra.mxu0 0.0
  %492 = vmatprep.subr.mxu0 0.0
  %493 = vmatpush1.msra.mxu0 0.0
  %494 = vmatprep.subr.mxu0 0.0
  %495 = vmatpush1.msra.mxu0 0.0
  %496 = vmatprep.subr.mxu0 0.0
  %497 = vmatpush1.msra.mxu0 0.0
  %498 = vmatprep.subr.mxu0 0.0
  %499 = vmatpush1.msra.mxu0 0.0
  %500 = vmatprep.subr.mxu0 0.0
  %501 = vmatpush1.msra.mxu0 0.0
  %502 = vmatprep.subr.mxu0 0.0
  %503 = vmatpush1.msra.mxu0 0.0
  %504 = vmatprep.subr.mxu0 0.0
  %505 = vmatpush1.msra.mxu0 0.0
  %506 = vmatprep.subr.mxu0 0.0
  %507 = vmatpush1.msra.mxu0 0.0
  %508 = vmatprep.subr.mxu0 0.0
  %509 = vmatpush1.msra.mxu0 0.0
  %510 = vmatprep.subr.mxu0 0.0
  %511 = vmatpush1.msra.mxu0 0.0
  %512 = vmatprep.subr.mxu0 0.0
  %513 = vmatpush1.msra.mxu0 0.0
  %514 = vmatprep.subr.mxu0 0.0
  %515 = vmatpush1.msra.mxu0 0.0
  %516 = vmatprep.subr.mxu0 0.0
  %517 = vmatpush1.msra.mxu0 0.0
  %518 = vmatprep.subr.mxu0 0.0
  %519 = vmatpush1.msra.mxu0 0.0
  %520 = vmatprep.subr.mxu0 0.0
  %521 = vmatpush1.msra.mxu0 0.0
  %522 = vmatprep.subr.mxu0 0.0
  %523 = vmatpush1.msra.mxu0 0.0
  %524 = vmatprep.subr.mxu0 0.0
  %525 = vmatpush1.msra.mxu0 0.0
  %526 = vmatprep.subr.mxu0 0.0
  %527 = vmatpush1.msra.mxu0 0.0
  %528 = vmatprep.subr.mxu0 0.0
  %529 = vmatpush1.msra.mxu0 0.0
  %530 = vmatprep.subr.mxu0 0.0
  %531 = vmatpush1.msra.mxu0 0.0
  %532 = vmatprep.subr.mxu0 0.0
  %533 = vmatpush1.msra.mxu0 0.0
  %534 = vmatprep.subr.mxu0 0.0
  %535 = vmatpush1.msra.mxu0 0.0
  %536 = vmatprep.subr.mxu0 0.0
  %537 = vmatpush1.msra.mxu0 0.0
  %538 = vmatprep.subr.mxu0 0.0
  %539 = vmatpush1.msra.mxu0 0.0
  %540 = vmatprep.subr.mxu0 0.0
  %541 = vmatpush1.msra.mxu0 0.0
  %542 = vmatprep.subr.mxu0 0.0
  %543 = vmatpush1.msra.mxu0 0.0
  %544 = vmatprep.subr.mxu0 0.0
  %545 = vmatpush1.msra.mxu0 0.0
  %546 = vmatprep.subr.mxu0 0.0
  %547 = vmatpush1.msra.mxu0 0.0
  %548 = vmatprep.subr.mxu0 0.0
  %549 = vmatpush1.msra.mxu0 0.0
  %550 = vmatprep.mubr.f32.mxu0 0.0
  %551 = vmatmul.mubr.f32.gmra.mrb[0].mxu0 %v40
  %v552 = vpop.f32.mrb[0].mxu0
  %v553 = vadd.f32 0.0, %v552
  %v554 = vpop.f32.mrb[0].mxu0
  %555 = vmatprep.mubr.f32.mxu0 0.0
  %556 = vmatmul.mubr.f32.gmra.mrb[0].mxu0 %v43
  %v557 = vpop.f32.mrb[0].mxu0
  %v558 = vadd.f32 0.0, %v557
  %v559 = vpop.f32.mrb[0].mxu0
  %560 = vmatprep.mubr.f32.mxu0 0.0
  %561 = vmatmul.mubr.f32.gmra.mrb[0].mxu0 %v46
  %v562 = vpop.f32.mrb[0].mxu0
  %v563 = vadd.f32 0.0, %v562
  %v564 = vpop.f32.mrb[0].mxu0
  %565 = vmatprep.mubr.f32.mxu0 0.0
  %566 = vmatmul.mubr.f32.gmra.mrb[0].mxu0 %v49
  %v567 = vpop.f32.mrb[0].mxu0
  %v568 = vadd.f32 0.0, %v567
  %v569 = vpop.f32.mrb[0].mxu0
  %570 = vmatprep.mubr.f32.mxu0 0.0
  %571 = vmatmul.mubr.f32.gmra.mrb[0].mxu0 %v52
  %v572 = vpop.f32.mrb[0].mxu0
  %v573 = vadd.f32 0.0, %v572
  %v574 = vpop.f32.mrb[0].mxu0
  %575 = vmatprep.mubr.f32.mxu0 0.0
  %576 = vmatmul.mubr.f32.gmra.mrb[0].mxu0 %v55
  %v577 = vpop.f32.mrb[0].mxu0
  %v578 = vadd.f32 0.0, %v577
  %v579 = vpop.f32.mrb[0].mxu0
  %580 = vmatprep.mubr.f32.mxu0 0.0
  %581 = vmatmul.mubr.f32.gmra.mrb[0].mxu0 %v58
  %v582 = vpop.f32.mrb[0].mxu0
  %v583 = vadd.f32 0.0, %v582
  %v584 = vpop.f32.mrb[0].mxu0
  %585 = vmatprep.mubr.f32.mxu0 0.0
  %586 = vmatmul.mubr.f32.gmra.mrb[0].mxu0 %v61
  %v587 = vpop.f32.mrb[0].mxu0
  %v588 = vadd.f32 0.0, %v587
  %v589 = vpop.f32.mrb[0].mxu0
  %590 = vmatprep.mubr.f32.mxu0 0.0
  %591 = vmatmul.mubr.f32.gmra.mrb[0].mxu0 %v64
  %v592 = vpop.f32.mrb[0].mxu0
  %v593 = vadd.f32 0.0, %v592
  %v594 = vpop.f32.mrb[0].mxu0
  %595 = vmatprep.mubr.f32.mxu0 0.0
  %596 = vmatmul.mubr.f32.gmra.mrb[0].mxu0 %v67
  %v597 = vpop.f32.mrb[0].mxu0
  %v598 = vadd.f32 0.0, %v597
  %v599 = vpop.f32.mrb[0].mxu0
  %600 = vmatprep.mubr.f32.mxu0 0.0
  %601 = vmatmul.mubr.f32.gmra.mrb[0].mxu0 %v70
  %v602 = vpop.f32.mrb[0].mxu0
  %v603 = vadd.f32 0.0, %v602
  %v604 = vpop.f32.mrb[0].mxu0
  %605 = vmatprep.mubr.f32.mxu0 0.0
  %606 = vmatmul.mubr.f32.gmra.mrb[0].mxu0 %v337
  %v607 = vpop.f32.mrb[0].mxu0
  %v608 = vadd.f32 0.0, %v607
  %v609 = vpop.f32.mrb[0].mxu0
  %610 = vmatprep.mubr.f32.mxu0 0.0
  %611 = vmatmul.mubr.f32.gmra.mrb[0].mxu0 %v484
  %v612 = vpop.f32.mrb[0].mxu0
  %v613 = vadd.f32 0.0, %v612
  %v614 = vpop.f32.mrb[0].mxu0
  %615 = vdwg.mxu0
  %v616 = vadd.f32 %v469, %v553
  %v617 = vadd.f32 %v470, %v558
  %v618 = vadd.f32 %v471, %v563
  %v619 = vadd.f32 %v472, %v568
  %v620 = vadd.f32 %v473, %v573
  %v621 = vadd.f32 %v474, %v578
  %v622 = vadd.f32 %v475, %v583
  %v623 = vadd.f32 %v476, %v588
  %v624 = vadd.f32 %v477, %v593
  %v625 = vadd.f32 %v478, %v598
  %v626 = vadd.f32 %v479, %v603
  %v627 = vadd.f32 %v480, %v608
  %v628 = vadd.f32 %v481, %v613
  %v629 = vld [vmem:[%s2 + $0x100] sm:$0x1]
  %v630 = vlaneseq
  %v631 = vshrl.u32 %v630, 7
  %v632 = vsub.s32 0, %v631
  %v633 = vrot.slane %v629, %v632
  %v634 = vadd.f32 %v616, %v633
  %v635 = vadd.f32 %v617, %v633
  %v636 = vadd.f32 %v618, %v633
  %v637 = vadd.f32 %v619, %v633
  %v638 = vadd.f32 %v620, %v633
  %v639 = vadd.f32 %v621, %v633
  %v640 = vadd.f32 %v622, %v633
  %v641 = vadd.f32 %v623, %v633
  %v642 = vadd.f32 %v624, %v633
  %v643 = vadd.f32 %v625, %v633
  %v644 = vadd.f32 %v626, %v633
  %v645 = vadd.f32 %v627, %v633
  %v646 = vadd.f32 %v628, %v633
  %v647 = vmax.f32 %v634, 0.0
  %v648 = vmax.f32 %v635, 0.0
  %v649 = vmax.f32 %v636, 0.0
  %v650 = vmax.f32 %v637, 0.0
  %v651 = vmax.f32 %v638, 0.0
  %v652 = vmax.f32 %v639, 0.0
  %v653 = vmax.f32 %v640, 0.0
  %v654 = vmax.f32 %v641, 0.0
  %v655 = vmax.f32 %v642, 0.0
  %v656 = vmax.f32 %v643, 0.0
  %v657 = vmax.f32 %v644, 0.0
  %v658 = vmax.f32 %v645, 0.0
  %v659 = vmax.f32 %v646, 0.0
  %v660 = vld [vmem:[%s1] sm:$0xff]
  %v661 = vld [vmem:[%s1 + $0x8] sm:$0xff]
  %v662 = vld [vmem:[%s1 + $0x10] sm:$0xff]
  %v663 = vld [vmem:[%s1 + $0x18] sm:$0xff]
  %v664 = vld [vmem:[%s1 + $0x20] sm:$0xff]
  %v665 = vld [vmem:[%s1 + $0x28] sm:$0xff]
  %v666 = vld [vmem:[%s1 + $0x30] sm:$0xff]
  %v667 = vld [vmem:[%s1 + $0x38] sm:$0xff]
  %v668 = vld [vmem:[%s1 + $0x80] sm:$0x1]
  %v669 = vld [vmem:[%s1 + $0x81] sm:$0x1]
  %v670 = vlaneseq
  %v671 = vshrl.u32 %v670, 7
  %v672 = vsub.s32 0, %v671
  %v673 = vrot.slane %v668, %v672
  %vm674 = vcmask 261120
  %v676 = vsel %vm674, %v647, 0
  %v679 = vsel %vm674, %v648, 0
  %v682 = vsel %vm674, %v649, 0
  %v685 = vsel %vm674, %v650, 0
  %v688 = vsel %vm674, %v651, 0
  %v691 = vsel %vm674, %v652, 0
  %v694 = vsel %vm674, %v653, 0
  %v697 = vsel %vm674, %v654, 0
  %v700 = vsel %vm674, %v655, 0
  %v703 = vsel %vm674, %v656, 0
  %v706 = vsel %vm674, %v657, 0
  %v709 = vsel %vm674, %v658, 0
  %v712 = vsel %vm674, %v659, 0
  %714 = vmatprep.subr.mxu0 0.0
  %715 = vmatpush1.msra.mxu0 %v660
  %716 = vmatprep.subr.mxu0 0.0
  %717 = vmatpush1.msra.mxu0 %v661
  %718 = vmatprep.subr.mxu0 0.0
  %719 = vmatpush1.msra.mxu0 %v662
  %720 = vmatprep.subr.mxu0 0.0
  %721 = vmatpush1.msra.mxu0 %v663
  %722 = vmatprep.subr.mxu0 0.0
  %723 = vmatpush1.msra.mxu0 0.0
  %724 = vmatprep.subr.mxu0 0.0
  %725 = vmatpush1.msra.mxu0 0.0
  %726 = vmatprep.subr.mxu0 0.0
  %727 = vmatpush1.msra.mxu0 0.0
  %728 = vmatprep.subr.mxu0 0.0
  %729 = vmatpush1.msra.mxu0 0.0
  %730 = vmatprep.subr.mxu0 0.0
  %731 = vmatpush1.msra.mxu0 0.0
  %732 = vmatprep.subr.mxu0 0.0
  %733 = vmatpush1.msra.mxu0 0.0
  %734 = vmatprep.subr.mxu0 0.0
  %735 = vmatpush1.msra.mxu0 0.0
  %736 = vmatprep.subr.mxu0 0.0
  %737 = vmatpush1.msra.mxu0 0.0
  %738 = vmatprep.subr.mxu0 0.0
  %739 = vmatpush1.msra.mxu0 0.0
  %740 = vmatprep.subr.mxu0 0.0
  %741 = vmatpush1.msra.mxu0 0.0
  %742 = vmatprep.subr.mxu0 0.0
  %743 = vmatpush1.msra.mxu0 0.0
  %744 = vmatprep.subr.mxu0 0.0
  %745 = vmatpush1.msra.mxu0 0.0
  %746 = vmatprep.subr.mxu0 0.0
  %747 = vmatpush1.msra.mxu0 0.0
  %748 = vmatprep.subr.mxu0 0.0
  %749 = vmatpush1.msra.mxu0 0.0
  %750 = vmatprep.subr.mxu0 0.0
  %751 = vmatpush1.msra.mxu0 0.0
  %752 = vmatprep.subr.mxu0 0.0
  %753 = vmatpush1.msra.mxu0 0.0
  %754 = vmatprep.subr.mxu0 0.0
  %755 = vmatpush1.msra.mxu0 0.0
  %756 = vmatprep.subr.mxu0 0.0
  %757 = vmatpush1.msra.mxu0 0.0
  %758 = vmatprep.subr.mxu0 0.0
  %759 = vmatpush1.msra.mxu0 0.0
  %760 = vmatprep.subr.mxu0 0.0
  %761 = vmatpush1.msra.mxu0 0.0
  %762 = vmatprep.subr.mxu0 0.0
  %763 = vmatpush1.msra.mxu0 0.0
  %764 = vmatprep.subr.mxu0 0.0
  %765 = vmatpush1.msra.mxu0 0.0
  %766 = vmatprep.subr.mxu0 0.0
  %767 = vmatpush1.msra.mxu0 0.0
  %768 = vmatprep.subr.mxu0 0.0
  %769 = vmatpush1.msra.mxu0 0.0
  %770 = vmatprep.subr.mxu0 0.0
  %771 = vmatpush1.msra.mxu0 0.0
  %772 = vmatprep.subr.mxu0 0.0
  %773 = vmatpush1.msra.mxu0 0.0
  %774 = vmatprep.subr.mxu0 0.0
  %775 = vmatpush1.msra.mxu0 0.0
  %776 = vmatprep.subr.mxu0 0.0
  %777 = vmatpush1.msra.mxu0 0.0
  %778 = vmatprep.mubr.f32.mxu0 0.0
  %779 = vmatmul.mubr.f32.gmra.mrb[0].mxu0 %v676
  %v780 = vpop.f32.mrb[0].mxu0
  %v781 = vadd.f32 %v673, %v780
  %v782 = vpop.f32.mrb[0].mxu0
  %783 = vmatprep.mubr.f32.mxu0 0.0
  %784 = vmatmul.mubr.f32.gmra.mrb[0].mxu0 %v679
  %v785 = vpop.f32.mrb[0].mxu0
  %v786 = vadd.f32 %v673, %v785
  %v787 = vpop.f32.mrb[0].mxu0
  %788 = vmatprep.mubr.f32.mxu0 0.0
  %789 = vmatmul.mubr.f32.gmra.mrb[0].mxu0 %v682
  %v790 = vpop.f32.mrb[0].mxu0
  %v791 = vadd.f32 %v673, %v790
  %v792 = vpop.f32.mrb[0].mxu0
  %793 = vmatprep.mubr.f32.mxu0 0.0
  %794 = vmatmul.mubr.f32.gmra.mrb[0].mxu0 %v685
  %v795 = vpop.f32.mrb[0].mxu0
  %v796 = vadd.f32 %v673, %v795
  %v797 = vpop.f32.mrb[0].mxu0
  %798 = vmatprep.mubr.f32.mxu0 0.0
  %799 = vmatmul.mubr.f32.gmra.mrb[0].mxu0 %v688
  %v800 = vpop.f32.mrb[0].mxu0
  %v801 = vadd.f32 %v673, %v800
  %v802 = vpop.f32.mrb[0].mxu0
  %803 = vmatprep.mubr.f32.mxu0 0.0
  %804 = vmatmul.mubr.f32.gmra.mrb[0].mxu0 %v691
  %v805 = vpop.f32.mrb[0].mxu0
  %v806 = vadd.f32 %v673, %v805
  %v807 = vpop.f32.mrb[0].mxu0
  %808 = vmatprep.mubr.f32.mxu0 0.0
  %809 = vmatmul.mubr.f32.gmra.mrb[0].mxu0 %v694
  %v810 = vpop.f32.mrb[0].mxu0
  %v811 = vadd.f32 %v673, %v810
  %v812 = vpop.f32.mrb[0].mxu0
  %813 = vmatprep.mubr.f32.mxu0 0.0
  %814 = vmatmul.mubr.f32.gmra.mrb[0].mxu0 %v697
  %v815 = vpop.f32.mrb[0].mxu0
  %v816 = vadd.f32 %v673, %v815
  %v817 = vpop.f32.mrb[0].mxu0
  %818 = vmatprep.mubr.f32.mxu0 0.0
  %819 = vmatmul.mubr.f32.gmra.mrb[0].mxu0 %v700
  %v820 = vpop.f32.mrb[0].mxu0
  %v821 = vadd.f32 %v673, %v820
  %v822 = vpop.f32.mrb[0].mxu0
  %823 = vmatprep.mubr.f32.mxu0 0.0
  %824 = vmatmul.mubr.f32.gmra.mrb[0].mxu0 %v703
  %v825 = vpop.f32.mrb[0].mxu0
  %v826 = vadd.f32 %v673, %v825
  %v827 = vpop.f32.mrb[0].mxu0
  %828 = vmatprep.mubr.f32.mxu0 0.0
  %829 = vmatmul.mubr.f32.gmra.mrb[0].mxu0 %v706
  %v830 = vpop.f32.mrb[0].mxu0
  %v831 = vadd.f32 %v673, %v830
  %v832 = vpop.f32.mrb[0].mxu0
  %833 = vmatprep.mubr.f32.mxu0 0.0
  %834 = vmatmul.mubr.f32.gmra.mrb[0].mxu0 %v709
  %v835 = vpop.f32.mrb[0].mxu0
  %v836 = vadd.f32 %v673, %v835
  %v837 = vpop.f32.mrb[0].mxu0
  %838 = vmatprep.mubr.f32.mxu0 0.0
  %839 = vmatmul.mubr.f32.gmra.mrb[0].mxu0 %v712
  %v840 = vpop.f32.mrb[0].mxu0
  %v841 = vadd.f32 %v673, %v840
  %v842 = vpop.f32.mrb[0].mxu0
  %843 = vdwg.mxu0
  %v844 = vlaneseq
  %v845 = vshrl.u32 %v844, 7
  %v846 = vsub.s32 0, %v845
  %v847 = vrot.slane %v669, %v846
  %v849 = vsel %vm674, 0.0, 0
  %851 = vmatprep.subr.mxu0 0.0
  %852 = vmatpush1.msra.mxu0 %v664
  %853 = vmatprep.subr.mxu0 0.0
  %854 = vmatpush1.msra.mxu0 %v665
  %855 = vmatprep.subr.mxu0 0.0
  %856 = vmatpush1.msra.mxu0 %v666
  %857 = vmatprep.subr.mxu0 0.0
  %858 = vmatpush1.msra.mxu0 %v667
  %859 = vmatprep.subr.mxu0 0.0
  %860 = vmatpush1.msra.mxu0 0.0
  %861 = vmatprep.subr.mxu0 0.0
  %862 = vmatpush1.msra.mxu0 0.0
  %863 = vmatprep.subr.mxu0 0.0
  %864 = vmatpush1.msra.mxu0 0.0
  %865 = vmatprep.subr.mxu0 0.0
  %866 = vmatpush1.msra.mxu0 0.0
  %867 = vmatprep.subr.mxu0 0.0
  %868 = vmatpush1.msra.mxu0 0.0
  %869 = vmatprep.subr.mxu0 0.0
  %870 = vmatpush1.msra.mxu0 0.0
  %871 = vmatprep.subr.mxu0 0.0
  %872 = vmatpush1.msra.mxu0 0.0
  %873 = vmatprep.subr.mxu0 0.0
  %874 = vmatpush1.msra.mxu0 0.0
  %875 = vmatprep.subr.mxu0 0.0
  %876 = vmatpush1.msra.mxu0 0.0
  %877 = vmatprep.subr.mxu0 0.0
  %878 = vmatpush1.msra.mxu0 0.0
  %879 = vmatprep.subr.mxu0 0.0
  %880 = vmatpush1.msra.mxu0 0.0
  %881 = vmatprep.subr.mxu0 0.0
  %882 = vmatpush1.msra.mxu0 0.0
  %883 = vmatprep.subr.mxu0 0.0
  %884 = vmatpush1.msra.mxu0 0.0
  %885 = vmatprep.subr.mxu0 0.0
  %886 = vmatpush1.msra.mxu0 0.0
  %887 = vmatprep.subr.mxu0 0.0
  %888 = vmatpush1.msra.mxu0 0.0
  %889 = vmatprep.subr.mxu0 0.0
  %890 = vmatpush1.msra.mxu0 0.0
  %891 = vmatprep.subr.mxu0 0.0
  %892 = vmatpush1.msra.mxu0 0.0
  %893 = vmatprep.subr.mxu0 0.0
  %894 = vmatpush1.msra.mxu0 0.0
  %895 = vmatprep.subr.mxu0 0.0
  %896 = vmatpush1.msra.mxu0 0.0
  %897 = vmatprep.subr.mxu0 0.0
  %898 = vmatpush1.msra.mxu0 0.0
  %899 = vmatprep.subr.mxu0 0.0
  %900 = vmatpush1.msra.mxu0 0.0
  %901 = vmatprep.subr.mxu0 0.0
  %902 = vmatpush1.msra.mxu0 0.0
  %903 = vmatprep.subr.mxu0 0.0
  %904 = vmatpush1.msra.mxu0 0.0
  %905 = vmatprep.subr.mxu0 0.0
  %906 = vmatpush1.msra.mxu0 0.0
  %907 = vmatprep.subr.mxu0 0.0
  %908 = vmatpush1.msra.mxu0 0.0
  %909 = vmatprep.subr.mxu0 0.0
  %910 = vmatpush1.msra.mxu0 0.0
  %911 = vmatprep.subr.mxu0 0.0
  %912 = vmatpush1.msra.mxu0 0.0
  %913 = vmatprep.subr.mxu0 0.0
  %914 = vmatpush1.msra.mxu0 0.0
  %915 = vmatprep.mubr.f32.mxu0 0.0
  %916 = vmatmul.mubr.f32.gmra.mrb[0].mxu0 %v849
  %v917 = vpop.f32.mrb[0].mxu0
  %v918 = vadd.f32 %v847, %v917
  %v919 = vpop.f32.mrb[0].mxu0
  %920 = vdwg.mxu0
  %v921 = vadd.f32 %v781, %v918
  %v922 = vxor.u32 %v921, 2147483648
  %v923 = vmul.f32 %v922, 1.442695
  %v924 = vpow.pop %v923
  %v925 = vadd.f32 %v924, 1.0
  %v926 = vrcp.pop %v925
  %v927 = vmul.f32 1.0, %v926
  %929 = vrot.lane.b32.xlu0 %v918, 64
  %v930 = vpop.permute.xlu0 %929
  %v932 = vmul.f32 %v927, %v930
  %934 = vrot.lane.b32.xlu0 %v932, 64
  %v935 = vpop.permute.xlu0 %934
  %v937 = vadd.f32 %v781, %v935
  %v938 = vtanh.pop %v937
  %v939 = vsub.f32 1.0, %v927
  %941 = vrot.lane.b32.xlu0 %v938, 96
  %v942 = vpop.permute.xlu0 %941
  %v944 = vmul.f32 %v939, %v942
  %v945 = vmul.f32 %v927, 0.0
  %v946 = vadd.f32 %v944, %v945
  %948 = vrot.lane.b32.xlu0 %v946, 96
  %v949 = vpop.permute.xlu0 %948
  %v950 = vsel %vm674, %v949, 0
  %952 = vmatprep.subr.mxu0 0.0
  %953 = vmatpush1.msra.mxu0 %v664
  %954 = vmatprep.subr.mxu0 0.0
  %955 = vmatpush1.msra.mxu0 %v665
  %956 = vmatprep.subr.mxu0 0.0
  %957 = vmatpush1.msra.mxu0 %v666
  %958 = vmatprep.subr.mxu0 0.0
  %959 = vmatpush1.msra.mxu0 %v667
  %960 = vmatprep.subr.mxu0 0.0
  %961 = vmatpush1.msra.mxu0 0.0
  %962 = vmatprep.subr.mxu0 0.0
  %963 = vmatpush1.msra.mxu0 0.0
  %964 = vmatprep.subr.mxu0 0.0
  %965 = vmatpush1.msra.mxu0 0.0
  %966 = vmatprep.subr.mxu0 0.0
  %967 = vmatpush1.msra.mxu0 0.0
  %968 = vmatprep.subr.mxu0 0.0
  %969 = vmatpush1.msra.mxu0 0.0
  %970 = vmatprep.subr.mxu0 0.0
  %971 = vmatpush1.msra.mxu0 0.0
  %972 = vmatprep.subr.mxu0 0.0
  %973 = vmatpush1.msra.mxu0 0.0
  %974 = vmatprep.subr.mxu0 0.0
  %975 = vmatpush1.msra.mxu0 0.0
  %976 = vmatprep.subr.mxu0 0.0
  %977 = vmatpush1.msra.mxu0 0.0
  %978 = vmatprep.subr.mxu0 0.0
  %979 = vmatpush1.msra.mxu0 0.0
  %980 = vmatprep.subr.mxu0 0.0
  %981 = vmatpush1.msra.mxu0 0.0
  %982 = vmatprep.subr.mxu0 0.0
  %983 = vmatpush1.msra.mxu0 0.0
  %984 = vmatprep.subr.mxu0 0.0
  %985 = vmatpush1.msra.mxu0 0.0
  %986 = vmatprep.subr.mxu0 0.0
  %987 = vmatpush1.msra.mxu0 0.0
  %988 = vmatprep.subr.mxu0 0.0
  %989 = vmatpush1.msra.mxu0 0.0
  %990 = vmatprep.subr.mxu0 0.0
  %991 = vmatpush1.msra.mxu0 0.0
  %992 = vmatprep.subr.mxu0 0.0
  %993 = vmatpush1.msra.mxu0 0.0
  %994 = vmatprep.subr.mxu0 0.0
  %995 = vmatpush1.msra.mxu0 0.0
  %996 = vmatprep.subr.mxu0 0.0
  %997 = vmatpush1.msra.mxu0 0.0
  %998 = vmatprep.subr.mxu0 0.0
  %999 = vmatpush1.msra.mxu0 0.0
  %1000 = vmatprep.subr.mxu0 0.0
  %1001 = vmatpush1.msra.mxu0 0.0
  %1002 = vmatprep.subr.mxu0 0.0
  %1003 = vmatpush1.msra.mxu0 0.0
  %1004 = vmatprep.subr.mxu0 0.0
  %1005 = vmatpush1.msra.mxu0 0.0
  %1006 = vmatprep.subr.mxu0 0.0
  %1007 = vmatpush1.msra.mxu0 0.0
  %1008 = vmatprep.subr.mxu0 0.0
  %1009 = vmatpush1.msra.mxu0 0.0
  %1010 = vmatprep.subr.mxu0 0.0
  %1011 = vmatpush1.msra.mxu0 0.0
  %1012 = vmatprep.subr.mxu0 0.0
  %1013 = vmatpush1.msra.mxu0 0.0
  %1014 = vmatprep.subr.mxu0 0.0
  %1015 = vmatpush1.msra.mxu0 0.0
  %1016 = vmatprep.mubr.f32.mxu0 0.0
  %1017 = vmatmul.mubr.f32.gmra.mrb[0].mxu0 %v950
  %v1018 = vpop.f32.mrb[0].mxu0
  %v1019 = vadd.f32 %v847, %v1018
  %v1020 = vpop.f32.mrb[0].mxu0
  %1021 = vdwg.mxu0
  %v1022 = vadd.f32 %v786, %v1019
  %v1023 = vxor.u32 %v1022, 2147483648
  %v1024 = vmul.f32 %v1023, 1.442695
  %v1025 = vpow.pop %v1024
  %v1026 = vadd.f32 %v1025, 1.0
  %v1027 = vrcp.pop %v1026
  %v1028 = vmul.f32 1.0, %v1027
  %1030 = vrot.lane.b32.xlu0 %v1019, 64
  %v1031 = vpop.permute.xlu0 %1030
  %v1033 = vmul.f32 %v1028, %v1031
  %1035 = vrot.lane.b32.xlu0 %v1033, 64
  %v1036 = vpop.permute.xlu0 %1035
  %v1038 = vadd.f32 %v786, %v1036
  %v1039 = vtanh.pop %v1038
  %v1040 = vsub.f32 1.0, %v1028
  %1042 = vrot.lane.b32.xlu0 %v1039, 96
  %v1043 = vpop.permute.xlu0 %1042
  %v1045 = vmul.f32 %v1040, %v1043
  %v1046 = vmul.f32 %v1028, %v946
  %v1047 = vadd.f32 %v1045, %v1046
  %1049 = vrot.lane.b32.xlu0 %v1047, 96
  %v1050 = vpop.permute.xlu0 %1049
  %v1051 = vsel %vm674, %v1050, 0
  %1053 = vmatprep.subr.mxu0 0.0
  %1054 = vmatpush1.msra.mxu0 %v664
  %1055 = vmatprep.subr.mxu0 0.0
  %1056 = vmatpush1.msra.mxu0 %v665
  %1057 = vmatprep.subr.mxu0 0.0
  %1058 = vmatpush1.msra.mxu0 %v666
  %1059 = vmatprep.subr.mxu0 0.0
  %1060 = vmatpush1.msra.mxu0 %v667
  %1061 = vmatprep.subr.mxu0 0.0
  %1062 = vmatpush1.msra.mxu0 0.0
  %1063 = vmatprep.subr.mxu0 0.0
  %1064 = vmatpush1.msra.mxu0 0.0
  %1065 = vmatprep.subr.mxu0 0.0
  %1066 = vmatpush1.msra.mxu0 0.0
  %1067 = vmatprep.subr.mxu0 0.0
  %1068 = vmatpush1.msra.mxu0 0.0
  %1069 = vmatprep.subr.mxu0 0.0
  %1070 = vmatpush1.msra.mxu0 0.0
  %1071 = vmatprep.subr.mxu0 0.0
  %1072 = vmatpush1.msra.mxu0 0.0
  %1073 = vmatprep.subr.mxu0 0.0
  %1074 = vmatpush1.msra.mxu0 0.0
  %1075 = vmatprep.subr.mxu0 0.0
  %1076 = vmatpush1.msra.mxu0 0.0
  %1077 = vmatprep.subr.mxu0 0.0
  %1078 = vmatpush1.msra.mxu0 0.0
  %1079 = vmatprep.subr.mxu0 0.0
  %1080 = vmatpush1.msra.mxu0 0.0
  %1081 = vmatprep.subr.mxu0 0.0
  %1082 = vmatpush1.msra.mxu0 0.0
  %1083 = vmatprep.subr.mxu0 0.0
  %1084 = vmatpush1.msra.mxu0 0.0
  %1085 = vmatprep.subr.mxu0 0.0
  %1086 = vmatpush1.msra.mxu0 0.0
  %1087 = vmatprep.subr.mxu0 0.0
  %1088 = vmatpush1.msra.mxu0 0.0
  %1089 = vmatprep.subr.mxu0 0.0
  %1090 = vmatpush1.msra.mxu0 0.0
  %1091 = vmatprep.subr.mxu0 0.0
  %1092 = vmatpush1.msra.mxu0 0.0
  %1093 = vmatprep.subr.mxu0 0.0
  %1094 = vmatpush1.msra.mxu0 0.0
  %1095 = vmatprep.subr.mxu0 0.0
  %1096 = vmatpush1.msra.mxu0 0.0
  %1097 = vmatprep.subr.mxu0 0.0
  %1098 = vmatpush1.msra.mxu0 0.0
  %1099 = vmatprep.subr.mxu0 0.0
  %1100 = vmatpush1.msra.mxu0 0.0
  %1101 = vmatprep.subr.mxu0 0.0
  %1102 = vmatpush1.msra.mxu0 0.0
  %1103 = vmatprep.subr.mxu0 0.0
  %1104 = vmatpush1.msra.mxu0 0.0
  %1105 = vmatprep.subr.mxu0 0.0
  %1106 = vmatpush1.msra.mxu0 0.0
  %1107 = vmatprep.subr.mxu0 0.0
  %1108 = vmatpush1.msra.mxu0 0.0
  %1109 = vmatprep.subr.mxu0 0.0
  %1110 = vmatpush1.msra.mxu0 0.0
  %1111 = vmatprep.subr.mxu0 0.0
  %1112 = vmatpush1.msra.mxu0 0.0
  %1113 = vmatprep.subr.mxu0 0.0
  %1114 = vmatpush1.msra.mxu0 0.0
  %1115 = vmatprep.subr.mxu0 0.0
  %1116 = vmatpush1.msra.mxu0 0.0
  %1117 = vmatprep.mubr.f32.mxu0 0.0
  %1118 = vmatmul.mubr.f32.gmra.mrb[0].mxu0 %v1051
  %v1119 = vpop.f32.mrb[0].mxu0
  %v1120 = vadd.f32 %v847, %v1119
  %v1121 = vpop.f32.mrb[0].mxu0
  %1122 = vdwg.mxu0
  %v1123 = vadd.f32 %v791, %v1120
  %v1124 = vxor.u32 %v1123, 2147483648
  %v1125 = vmul.f32 %v1124, 1.442695
  %v1126 = vpow.pop %v1125
  %v1127 = vadd.f32 %v1126, 1.0
  %v1128 = vrcp.pop %v1127
  %v1129 = vmul.f32 1.0, %v1128
  %1131 = vrot.lane.b32.xlu0 %v1120, 64
  %v1132 = vpop.permute.xlu0 %1131
  %v1134 = vmul.f32 %v1129, %v1132
  %1136 = vrot.lane.b32.xlu0 %v1134, 64
  %v1137 = vpop.permute.xlu0 %1136
  %v1139 = vadd.f32 %v791, %v1137
  %v1140 = vtanh.pop %v1139
  %v1141 = vsub.f32 1.0, %v1129
  %1143 = vrot.lane.b32.xlu0 %v1140, 96
  %v1144 = vpop.permute.xlu0 %1143
  %v1146 = vmul.f32 %v1141, %v1144
  %v1147 = vmul.f32 %v1129, %v1047
  %v1148 = vadd.f32 %v1146, %v1147
  %1150 = vrot.lane.b32.xlu0 %v1148, 96
  %v1151 = vpop.permute.xlu0 %1150
  %v1152 = vsel %vm674, %v1151, 0
  %1154 = vmatprep.subr.mxu0 0.0
  %1155 = vmatpush1.msra.mxu0 %v664
  %1156 = vmatprep.subr.mxu0 0.0
  %1157 = vmatpush1.msra.mxu0 %v665
  %1158 = vmatprep.subr.mxu0 0.0
  %1159 = vmatpush1.msra.mxu0 %v666
  %1160 = vmatprep.subr.mxu0 0.0
  %1161 = vmatpush1.msra.mxu0 %v667
  %1162 = vmatprep.subr.mxu0 0.0
  %1163 = vmatpush1.msra.mxu0 0.0
  %1164 = vmatprep.subr.mxu0 0.0
  %1165 = vmatpush1.msra.mxu0 0.0
  %1166 = vmatprep.subr.mxu0 0.0
  %1167 = vmatpush1.msra.mxu0 0.0
  %1168 = vmatprep.subr.mxu0 0.0
  %1169 = vmatpush1.msra.mxu0 0.0
  %1170 = vmatprep.subr.mxu0 0.0
  %1171 = vmatpush1.msra.mxu0 0.0
  %1172 = vmatprep.subr.mxu0 0.0
  %1173 = vmatpush1.msra.mxu0 0.0
  %1174 = vmatprep.subr.mxu0 0.0
  %1175 = vmatpush1.msra.mxu0 0.0
  %1176 = vmatprep.subr.mxu0 0.0
  %1177 = vmatpush1.msra.mxu0 0.0
  %1178 = vmatprep.subr.mxu0 0.0
  %1179 = vmatpush1.msra.mxu0 0.0
  %1180 = vmatprep.subr.mxu0 0.0
  %1181 = vmatpush1.msra.mxu0 0.0
  %1182 = vmatprep.subr.mxu0 0.0
  %1183 = vmatpush1.msra.mxu0 0.0
  %1184 = vmatprep.subr.mxu0 0.0
  %1185 = vmatpush1.msra.mxu0 0.0
  %1186 = vmatprep.subr.mxu0 0.0
  %1187 = vmatpush1.msra.mxu0 0.0
  %1188 = vmatprep.subr.mxu0 0.0
  %1189 = vmatpush1.msra.mxu0 0.0
  %1190 = vmatprep.subr.mxu0 0.0
  %1191 = vmatpush1.msra.mxu0 0.0
  %1192 = vmatprep.subr.mxu0 0.0
  %1193 = vmatpush1.msra.mxu0 0.0
  %1194 = vmatprep.subr.mxu0 0.0
  %1195 = vmatpush1.msra.mxu0 0.0
  %1196 = vmatprep.subr.mxu0 0.0
  %1197 = vmatpush1.msra.mxu0 0.0
  %1198 = vmatprep.subr.mxu0 0.0
  %1199 = vmatpush1.msra.mxu0 0.0
  %1200 = vmatprep.subr.mxu0 0.0
  %1201 = vmatpush1.msra.mxu0 0.0
  %1202 = vmatprep.subr.mxu0 0.0
  %1203 = vmatpush1.msra.mxu0 0.0
  %1204 = vmatprep.subr.mxu0 0.0
  %1205 = vmatpush1.msra.mxu0 0.0
  %1206 = vmatprep.subr.mxu0 0.0
  %1207 = vmatpush1.msra.mxu0 0.0
  %1208 = vmatprep.subr.mxu0 0.0
  %1209 = vmatpush1.msra.mxu0 0.0
  %1210 = vmatprep.subr.mxu0 0.0
  %1211 = vmatpush1.msra.mxu0 0.0
  %1212 = vmatprep.subr.mxu0 0.0
  %1213 = vmatpush1.msra.mxu0 0.0
  %1214 = vmatprep.subr.mxu0 0.0
  %1215 = vmatpush1.msra.mxu0 0.0
  %1216 = vmatprep.subr.mxu0 0.0
  %1217 = vmatpush1.msra.mxu0 0.0
  %1218 = vmatprep.mubr.f32.mxu0 0.0
  %1219 = vmatmul.mubr.f32.gmra.mrb[0].mxu0 %v1152
  %v1220 = vpop.f32.mrb[0].mxu0
  %v1221 = vadd.f32 %v847, %v1220
  %v1222 = vpop.f32.mrb[0].mxu0
  %1223 = vdwg.mxu0
  %v1224 = vadd.f32 %v796, %v1221
  %v1225 = vxor.u32 %v1224, 2147483648
  %v1226 = vmul.f32 %v1225, 1.442695
  %v1227 = vpow.pop %v1226
  %v1228 = vadd.f32 %v1227, 1.0
  %v1229 = vrcp.pop %v1228
  %v1230 = vmul.f32 1.0, %v1229
  %1232 = vrot.lane.b32.xlu0 %v1221, 64
  %v1233 = vpop.permute.xlu0 %1232
  %v1235 = vmul.f32 %v1230, %v1233
  %1237 = vrot.lane.b32.xlu0 %v1235, 64
  %v1238 = vpop.permute.xlu0 %1237
  %v1240 = vadd.f32 %v796, %v1238
  %v1241 = vtanh.pop %v1240
  %v1242 = vsub.f32 1.0, %v1230
  %1244 = vrot.lane.b32.xlu0 %v1241, 96
  %v1245 = vpop.permute.xlu0 %1244
  %v1247 = vmul.f32 %v1242, %v1245
  %v1248 = vmul.f32 %v1230, %v1148
  %v1249 = vadd.f32 %v1247, %v1248
  %1251 = vrot.lane.b32.xlu0 %v1249, 96
  %v1252 = vpop.permute.xlu0 %1251
  %v1253 = vsel %vm674, %v1252, 0
  %1255 = vmatprep.subr.mxu0 0.0
  %1256 = vmatpush1.msra.mxu0 %v664
  %1257 = vmatprep.subr.mxu0 0.0
  %1258 = vmatpush1.msra.mxu0 %v665
  %1259 = vmatprep.subr.mxu0 0.0
  %1260 = vmatpush1.msra.mxu0 %v666
  %1261 = vmatprep.subr.mxu0 0.0
  %1262 = vmatpush1.msra.mxu0 %v667
  %1263 = vmatprep.subr.mxu0 0.0
  %1264 = vmatpush1.msra.mxu0 0.0
  %1265 = vmatprep.subr.mxu0 0.0
  %1266 = vmatpush1.msra.mxu0 0.0
  %1267 = vmatprep.subr.mxu0 0.0
  %1268 = vmatpush1.msra.mxu0 0.0
  %1269 = vmatprep.subr.mxu0 0.0
  %1270 = vmatpush1.msra.mxu0 0.0
  %1271 = vmatprep.subr.mxu0 0.0
  %1272 = vmatpush1.msra.mxu0 0.0
  %1273 = vmatprep.subr.mxu0 0.0
  %1274 = vmatpush1.msra.mxu0 0.0
  %1275 = vmatprep.subr.mxu0 0.0
  %1276 = vmatpush1.msra.mxu0 0.0
  %1277 = vmatprep.subr.mxu0 0.0
  %1278 = vmatpush1.msra.mxu0 0.0
  %1279 = vmatprep.subr.mxu0 0.0
  %1280 = vmatpush1.msra.mxu0 0.0
  %1281 = vmatprep.subr.mxu0 0.0
  %1282 = vmatpush1.msra.mxu0 0.0
  %1283 = vmatprep.subr.mxu0 0.0
  %1284 = vmatpush1.msra.mxu0 0.0
  %1285 = vmatprep.subr.mxu0 0.0
  %1286 = vmatpush1.msra.mxu0 0.0
  %1287 = vmatprep.subr.mxu0 0.0
  %1288 = vmatpush1.msra.mxu0 0.0
  %1289 = vmatprep.subr.mxu0 0.0
  %1290 = vmatpush1.msra.mxu0 0.0
  %1291 = vmatprep.subr.mxu0 0.0
  %1292 = vmatpush1.msra.mxu0 0.0
  %1293 = vmatprep.subr.mxu0 0.0
  %1294 = vmatpush1.msra.mxu0 0.0
  %1295 = vmatprep.subr.mxu0 0.0
  %1296 = vmatpush1.msra.mxu0 0.0
  %1297 = vmatprep.subr.mxu0 0.0
  %1298 = vmatpush1.msra.mxu0 0.0
  %1299 = vmatprep.subr.mxu0 0.0
  %1300 = vmatpush1.msra.mxu0 0.0
  %1301 = vmatprep.subr.mxu0 0.0
  %1302 = vmatpush1.msra.mxu0 0.0
  %1303 = vmatprep.subr.mxu0 0.0
  %1304 = vmatpush1.msra.mxu0 0.0
  %1305 = vmatprep.subr.mxu0 0.0
  %1306 = vmatpush1.msra.mxu0 0.0
  %1307 = vmatprep.subr.mxu0 0.0
  %1308 = vmatpush1.msra.mxu0 0.0
  %1309 = vmatprep.subr.mxu0 0.0
  %1310 = vmatpush1.msra.mxu0 0.0
  %1311 = vmatprep.subr.mxu0 0.0
  %1312 = vmatpush1.msra.mxu0 0.0
  %1313 = vmatprep.subr.mxu0 0.0
  %1314 = vmatpush1.msra.mxu0 0.0
  %1315 = vmatprep.subr.mxu0 0.0
  %1316 = vmatpush1.msra.mxu0 0.0
  %1317 = vmatprep.subr.mxu0 0.0
  %1318 = vmatpush1.msra.mxu0 0.0
  %1319 = vmatprep.mubr.f32.mxu0 0.0
  %1320 = vmatmul.mubr.f32.gmra.mrb[0].mxu0 %v1253
  %v1321 = vpop.f32.mrb[0].mxu0
  %v1322 = vadd.f32 %v847, %v1321
  %v1323 = vpop.f32.mrb[0].mxu0
  %1324 = vdwg.mxu0
  %v1325 = vadd.f32 %v801, %v1322
  %v1326 = vxor.u32 %v1325, 2147483648
  %v1327 = vmul.f32 %v1326, 1.442695
  %v1328 = vpow.pop %v1327
  %v1329 = vadd.f32 %v1328, 1.0
  %v1330 = vrcp.pop %v1329
  %v1331 = vmul.f32 1.0, %v1330
  %1333 = vrot.lane.b32.xlu0 %v1322, 64
  %v1334 = vpop.permute.xlu0 %1333
  %v1336 = vmul.f32 %v1331, %v1334
  %1338 = vrot.lane.b32.xlu0 %v1336, 64
  %v1339 = vpop.permute.xlu0 %1338
  %v1341 = vadd.f32 %v801, %v1339
  %v1342 = vtanh.pop %v1341
  %v1343 = vsub.f32 1.0, %v1331
  %1345 = vrot.lane.b32.xlu0 %v1342, 96
  %v1346 = vpop.permute.xlu0 %1345
  %v1348 = vmul.f32 %v1343, %v1346
  %v1349 = vmul.f32 %v1331, %v1249
  %v1350 = vadd.f32 %v1348, %v1349
  %1352 = vrot.lane.b32.xlu0 %v1350, 96
  %v1353 = vpop.permute.xlu0 %1352
  %v1354 = vsel %vm674, %v1353, 0
  %1356 = vmatprep.subr.mxu0 0.0
  %1357 = vmatpush1.msra.mxu0 %v664
  %1358 = vmatprep.subr.mxu0 0.0
  %1359 = vmatpush1.msra.mxu0 %v665
  %1360 = vmatprep.subr.mxu0 0.0
  %1361 = vmatpush1.msra.mxu0 %v666
  %1362 = vmatprep.subr.mxu0 0.0
  %1363 = vmatpush1.msra.mxu0 %v667
  %1364 = vmatprep.subr.mxu0 0.0
  %1365 = vmatpush1.msra.mxu0 0.0
  %1366 = vmatprep.subr.mxu0 0.0
  %1367 = vmatpush1.msra.mxu0 0.0
  %1368 = vmatprep.subr.mxu0 0.0
  %1369 = vmatpush1.msra.mxu0 0.0
  %1370 = vmatprep.subr.mxu0 0.0
  %1371 = vmatpush1.msra.mxu0 0.0
  %1372 = vmatprep.subr.mxu0 0.0
  %1373 = vmatpush1.msra.mxu0 0.0
  %1374 = vmatprep.subr.mxu0 0.0
  %1375 = vmatpush1.msra.mxu0 0.0
  %1376 = vmatprep.subr.mxu0 0.0
  %1377 = vmatpush1.msra.mxu0 0.0
  %1378 = vmatprep.subr.mxu0 0.0
  %1379 = vmatpush1.msra.mxu0 0.0
  %1380 = vmatprep.subr.mxu0 0.0
  %1381 = vmatpush1.msra.mxu0 0.0
  %1382 = vmatprep.subr.mxu0 0.0
  %1383 = vmatpush1.msra.mxu0 0.0
  %1384 = vmatprep.subr.mxu0 0.0
  %1385 = vmatpush1.msra.mxu0 0.0
  %1386 = vmatprep.subr.mxu0 0.0
  %1387 = vmatpush1.msra.mxu0 0.0
  %1388 = vmatprep.subr.mxu0 0.0
  %1389 = vmatpush1.msra.mxu0 0.0
  %1390 = vmatprep.subr.mxu0 0.0
  %1391 = vmatpush1.msra.mxu0 0.0
  %1392 = vmatprep.subr.mxu0 0.0
  %1393 = vmatpush1.msra.mxu0 0.0
  %1394 = vmatprep.subr.mxu0 0.0
  %1395 = vmatpush1.msra.mxu0 0.0
  %1396 = vmatprep.subr.mxu0 0.0
  %1397 = vmatpush1.msra.mxu0 0.0
  %1398 = vmatprep.subr.mxu0 0.0
  %1399 = vmatpush1.msra.mxu0 0.0
  %1400 = vmatprep.subr.mxu0 0.0
  %1401 = vmatpush1.msra.mxu0 0.0
  %1402 = vmatprep.subr.mxu0 0.0
  %1403 = vmatpush1.msra.mxu0 0.0
  %1404 = vmatprep.subr.mxu0 0.0
  %1405 = vmatpush1.msra.mxu0 0.0
  %1406 = vmatprep.subr.mxu0 0.0
  %1407 = vmatpush1.msra.mxu0 0.0
  %1408 = vmatprep.subr.mxu0 0.0
  %1409 = vmatpush1.msra.mxu0 0.0
  %1410 = vmatprep.subr.mxu0 0.0
  %1411 = vmatpush1.msra.mxu0 0.0
  %1412 = vmatprep.subr.mxu0 0.0
  %1413 = vmatpush1.msra.mxu0 0.0
  %1414 = vmatprep.subr.mxu0 0.0
  %1415 = vmatpush1.msra.mxu0 0.0
  %1416 = vmatprep.subr.mxu0 0.0
  %1417 = vmatpush1.msra.mxu0 0.0
  %1418 = vmatprep.subr.mxu0 0.0
  %1419 = vmatpush1.msra.mxu0 0.0
  %1420 = vmatprep.mubr.f32.mxu0 0.0
  %1421 = vmatmul.mubr.f32.gmra.mrb[0].mxu0 %v1354
  %v1422 = vpop.f32.mrb[0].mxu0
  %v1423 = vadd.f32 %v847, %v1422
  %v1424 = vpop.f32.mrb[0].mxu0
  %1425 = vdwg.mxu0
  %v1426 = vadd.f32 %v806, %v1423
  %v1427 = vxor.u32 %v1426, 2147483648
  %v1428 = vmul.f32 %v1427, 1.442695
  %v1429 = vpow.pop %v1428
  %v1430 = vadd.f32 %v1429, 1.0
  %v1431 = vrcp.pop %v1430
  %v1432 = vmul.f32 1.0, %v1431
  %1434 = vrot.lane.b32.xlu0 %v1423, 64
  %v1435 = vpop.permute.xlu0 %1434
  %v1437 = vmul.f32 %v1432, %v1435
  %1439 = vrot.lane.b32.xlu0 %v1437, 64
  %v1440 = vpop.permute.xlu0 %1439
  %v1442 = vadd.f32 %v806, %v1440
  %v1443 = vtanh.pop %v1442
  %v1444 = vsub.f32 1.0, %v1432
  %1446 = vrot.lane.b32.xlu0 %v1443, 96
  %v1447 = vpop.permute.xlu0 %1446
  %v1449 = vmul.f32 %v1444, %v1447
  %v1450 = vmul.f32 %v1432, %v1350
  %v1451 = vadd.f32 %v1449, %v1450
  %1453 = vrot.lane.b32.xlu0 %v1451, 96
  %v1454 = vpop.permute.xlu0 %1453
  %v1455 = vsel %vm674, %v1454, 0
  %1457 = vmatprep.subr.mxu0 0.0
  %1458 = vmatpush1.msra.mxu0 %v664
  %1459 = vmatprep.subr.mxu0 0.0
  %1460 = vmatpush1.msra.mxu0 %v665
  %1461 = vmatprep.subr.mxu0 0.0
  %1462 = vmatpush1.msra.mxu0 %v666
  %1463 = vmatprep.subr.mxu0 0.0
  %1464 = vmatpush1.msra.mxu0 %v667
  %1465 = vmatprep.subr.mxu0 0.0
  %1466 = vmatpush1.msra.mxu0 0.0
  %1467 = vmatprep.subr.mxu0 0.0
  %1468 = vmatpush1.msra.mxu0 0.0
  %1469 = vmatprep.subr.mxu0 0.0
  %1470 = vmatpush1.msra.mxu0 0.0
  %1471 = vmatprep.subr.mxu0 0.0
  %1472 = vmatpush1.msra.mxu0 0.0
  %1473 = vmatprep.subr.mxu0 0.0
  %1474 = vmatpush1.msra.mxu0 0.0
  %1475 = vmatprep.subr.mxu0 0.0
  %1476 = vmatpush1.msra.mxu0 0.0
  %1477 = vmatprep.subr.mxu0 0.0
  %1478 = vmatpush1.msra.mxu0 0.0
  %1479 = vmatprep.subr.mxu0 0.0
  %1480 = vmatpush1.msra.mxu0 0.0
  %1481 = vmatprep.subr.mxu0 0.0
  %1482 = vmatpush1.msra.mxu0 0.0
  %1483 = vmatprep.subr.mxu0 0.0
  %1484 = vmatpush1.msra.mxu0 0.0
  %1485 = vmatprep.subr.mxu0 0.0
  %1486 = vmatpush1.msra.mxu0 0.0
  %1487 = vmatprep.subr.mxu0 0.0
  %1488 = vmatpush1.msra.mxu0 0.0
  %1489 = vmatprep.subr.mxu0 0.0
  %1490 = vmatpush1.msra.mxu0 0.0
  %1491 = vmatprep.subr.mxu0 0.0
  %1492 = vmatpush1.msra.mxu0 0.0
  %1493 = vmatprep.subr.mxu0 0.0
  %1494 = vmatpush1.msra.mxu0 0.0
  %1495 = vmatprep.subr.mxu0 0.0
  %1496 = vmatpush1.msra.mxu0 0.0
  %1497 = vmatprep.subr.mxu0 0.0
  %1498 = vmatpush1.msra.mxu0 0.0
  %1499 = vmatprep.subr.mxu0 0.0
  %1500 = vmatpush1.msra.mxu0 0.0
  %1501 = vmatprep.subr.mxu0 0.0
  %1502 = vmatpush1.msra.mxu0 0.0
  %1503 = vmatprep.subr.mxu0 0.0
  %1504 = vmatpush1.msra.mxu0 0.0
  %1505 = vmatprep.subr.mxu0 0.0
  %1506 = vmatpush1.msra.mxu0 0.0
  %1507 = vmatprep.subr.mxu0 0.0
  %1508 = vmatpush1.msra.mxu0 0.0
  %1509 = vmatprep.subr.mxu0 0.0
  %1510 = vmatpush1.msra.mxu0 0.0
  %1511 = vmatprep.subr.mxu0 0.0
  %1512 = vmatpush1.msra.mxu0 0.0
  %1513 = vmatprep.subr.mxu0 0.0
  %1514 = vmatpush1.msra.mxu0 0.0
  %1515 = vmatprep.subr.mxu0 0.0
  %1516 = vmatpush1.msra.mxu0 0.0
  %1517 = vmatprep.subr.mxu0 0.0
  %1518 = vmatpush1.msra.mxu0 0.0
  %1519 = vmatprep.subr.mxu0 0.0
  %1520 = vmatpush1.msra.mxu0 0.0
  %1521 = vmatprep.mubr.f32.mxu0 0.0
  %1522 = vmatmul.mubr.f32.gmra.mrb[0].mxu0 %v1455
  %v1523 = vpop.f32.mrb[0].mxu0
  %v1524 = vadd.f32 %v847, %v1523
  %v1525 = vpop.f32.mrb[0].mxu0
  %1526 = vdwg.mxu0
  %v1527 = vadd.f32 %v811, %v1524
  %v1528 = vxor.u32 %v1527, 2147483648
  %v1529 = vmul.f32 %v1528, 1.442695
  %v1530 = vpow.pop %v1529
  %v1531 = vadd.f32 %v1530, 1.0
  %v1532 = vrcp.pop %v1531
  %v1533 = vmul.f32 1.0, %v1532
  %1535 = vrot.lane.b32.xlu0 %v1524, 64
  %v1536 = vpop.permute.xlu0 %1535
  %v1538 = vmul.f32 %v1533, %v1536
  %1540 = vrot.lane.b32.xlu0 %v1538, 64
  %v1541 = vpop.permute.xlu0 %1540
  %v1543 = vadd.f32 %v811, %v1541
  %v1544 = vtanh.pop %v1543
  %v1545 = vsub.f32 1.0, %v1533
  %1547 = vrot.lane.b32.xlu0 %v1544, 96
  %v1548 = vpop.permute.xlu0 %1547
  %v1550 = vmul.f32 %v1545, %v1548
  %v1551 = vmul.f32 %v1533, %v1451
  %v1552 = vadd.f32 %v1550, %v1551
  %1554 = vrot.lane.b32.xlu0 %v1552, 96
  %v1555 = vpop.permute.xlu0 %1554
  %v1556 = vsel %vm674, %v1555, 0
  %1558 = vmatprep.subr.mxu0 0.0
  %1559 = vmatpush1.msra.mxu0 %v664
  %1560 = vmatprep.subr.mxu0 0.0
  %1561 = vmatpush1.msra.mxu0 %v665
  %1562 = vmatprep.subr.mxu0 0.0
  %1563 = vmatpush1.msra.mxu0 %v666
  %1564 = vmatprep.subr.mxu0 0.0
  %1565 = vmatpush1.msra.mxu0 %v667
  %1566 = vmatprep.subr.mxu0 0.0
  %1567 = vmatpush1.msra.mxu0 0.0
  %1568 = vmatprep.subr.mxu0 0.0
  %1569 = vmatpush1.msra.mxu0 0.0
  %1570 = vmatprep.subr.mxu0 0.0
  %1571 = vmatpush1.msra.mxu0 0.0
  %1572 = vmatprep.subr.mxu0 0.0
  %1573 = vmatpush1.msra.mxu0 0.0
  %1574 = vmatprep.subr.mxu0 0.0
  %1575 = vmatpush1.msra.mxu0 0.0
  %1576 = vmatprep.subr.mxu0 0.0
  %1577 = vmatpush1.msra.mxu0 0.0
  %1578 = vmatprep.subr.mxu0 0.0
  %1579 = vmatpush1.msra.mxu0 0.0
  %1580 = vmatprep.subr.mxu0 0.0
  %1581 = vmatpush1.msra.mxu0 0.0
  %1582 = vmatprep.subr.mxu0 0.0
  %1583 = vmatpush1.msra.mxu0 0.0
  %1584 = vmatprep.subr.mxu0 0.0
  %1585 = vmatpush1.msra.mxu0 0.0
  %1586 = vmatprep.subr.mxu0 0.0
  %1587 = vmatpush1.msra.mxu0 0.0
  %1588 = vmatprep.subr.mxu0 0.0
  %1589 = vmatpush1.msra.mxu0 0.0
  %1590 = vmatprep.subr.mxu0 0.0
  %1591 = vmatpush1.msra.mxu0 0.0
  %1592 = vmatprep.subr.mxu0 0.0
  %1593 = vmatpush1.msra.mxu0 0.0
  %1594 = vmatprep.subr.mxu0 0.0
  %1595 = vmatpush1.msra.mxu0 0.0
  %1596 = vmatprep.subr.mxu0 0.0
  %1597 = vmatpush1.msra.mxu0 0.0
  %1598 = vmatprep.subr.mxu0 0.0
  %1599 = vmatpush1.msra.mxu0 0.0
  %1600 = vmatprep.subr.mxu0 0.0
  %1601 = vmatpush1.msra.mxu0 0.0
  %1602 = vmatprep.subr.mxu0 0.0
  %1603 = vmatpush1.msra.mxu0 0.0
  %1604 = vmatprep.subr.mxu0 0.0
  %1605 = vmatpush1.msra.mxu0 0.0
  %1606 = vmatprep.subr.mxu0 0.0
  %1607 = vmatpush1.msra.mxu0 0.0
  %1608 = vmatprep.subr.mxu0 0.0
  %1609 = vmatpush1.msra.mxu0 0.0
  %1610 = vmatprep.subr.mxu0 0.0
  %1611 = vmatpush1.msra.mxu0 0.0
  %1612 = vmatprep.subr.mxu0 0.0
  %1613 = vmatpush1.msra.mxu0 0.0
  %1614 = vmatprep.subr.mxu0 0.0
  %1615 = vmatpush1.msra.mxu0 0.0
  %1616 = vmatprep.subr.mxu0 0.0
  %1617 = vmatpush1.msra.mxu0 0.0
  %1618 = vmatprep.subr.mxu0 0.0
  %1619 = vmatpush1.msra.mxu0 0.0
  %1620 = vmatprep.subr.mxu0 0.0
  %1621 = vmatpush1.msra.mxu0 0.0
  %1622 = vmatprep.mubr.f32.mxu0 0.0
  %1623 = vmatmul.mubr.f32.gmra.mrb[0].mxu0 %v1556
  %v1624 = vpop.f32.mrb[0].mxu0
  %v1625 = vadd.f32 %v847, %v1624
  %v1626 = vpop.f32.mrb[0].mxu0
  %1627 = vdwg.mxu0
  %v1628 = vadd.f32 %v816, %v1625
  %v1629 = vxor.u32 %v1628, 2147483648
  %v1630 = vmul.f32 %v1629, 1.442695
  %v1631 = vpow.pop %v1630
  %v1632 = vadd.f32 %v1631, 1.0
  %v1633 = vrcp.pop %v1632
  %v1634 = vmul.f32 1.0, %v1633
  %1636 = vrot.lane.b32.xlu0 %v1625, 64
  %v1637 = vpop.permute.xlu0 %1636
  %v1639 = vmul.f32 %v1634, %v1637
  %1641 = vrot.lane.b32.xlu0 %v1639, 64
  %v1642 = vpop.permute.xlu0 %1641
  %v1644 = vadd.f32 %v816, %v1642
  %v1645 = vtanh.pop %v1644
  %v1646 = vsub.f32 1.0, %v1634
  %1648 = vrot.lane.b32.xlu0 %v1645, 96
  %v1649 = vpop.permute.xlu0 %1648
  %v1651 = vmul.f32 %v1646, %v1649
  %v1652 = vmul.f32 %v1634, %v1552
  %v1653 = vadd.f32 %v1651, %v1652
  %1655 = vrot.lane.b32.xlu0 %v1653, 96
  %v1656 = vpop.permute.xlu0 %1655
  %v1657 = vsel %vm674, %v1656, 0
  %1659 = vmatprep.subr.mxu0 0.0
  %1660 = vmatpush1.msra.mxu0 %v664
  %1661 = vmatprep.subr.mxu0 0.0
  %1662 = vmatpush1.msra.mxu0 %v665
  %1663 = vmatprep.subr.mxu0 0.0
  %1664 = vmatpush1.msra.mxu0 %v666
  %1665 = vmatprep.subr.mxu0 0.0
  %1666 = vmatpush1.msra.mxu0 %v667
  %1667 = vmatprep.subr.mxu0 0.0
  %1668 = vmatpush1.msra.mxu0 0.0
  %1669 = vmatprep.subr.mxu0 0.0
  %1670 = vmatpush1.msra.mxu0 0.0
  %1671 = vmatprep.subr.mxu0 0.0
  %1672 = vmatpush1.msra.mxu0 0.0
  %1673 = vmatprep.subr.mxu0 0.0
  %1674 = vmatpush1.msra.mxu0 0.0
  %1675 = vmatprep.subr.mxu0 0.0
  %1676 = vmatpush1.msra.mxu0 0.0
  %1677 = vmatprep.subr.mxu0 0.0
  %1678 = vmatpush1.msra.mxu0 0.0
  %1679 = vmatprep.subr.mxu0 0.0
  %1680 = vmatpush1.msra.mxu0 0.0
  %1681 = vmatprep.subr.mxu0 0.0
  %1682 = vmatpush1.msra.mxu0 0.0
  %1683 = vmatprep.subr.mxu0 0.0
  %1684 = vmatpush1.msra.mxu0 0.0
  %1685 = vmatprep.subr.mxu0 0.0
  %1686 = vmatpush1.msra.mxu0 0.0
  %1687 = vmatprep.subr.mxu0 0.0
  %1688 = vmatpush1.msra.mxu0 0.0
  %1689 = vmatprep.subr.mxu0 0.0
  %1690 = vmatpush1.msra.mxu0 0.0
  %1691 = vmatprep.subr.mxu0 0.0
  %1692 = vmatpush1.msra.mxu0 0.0
  %1693 = vmatprep.subr.mxu0 0.0
  %1694 = vmatpush1.msra.mxu0 0.0
  %1695 = vmatprep.subr.mxu0 0.0
  %1696 = vmatpush1.msra.mxu0 0.0
  %1697 = vmatprep.subr.mxu0 0.0
  %1698 = vmatpush1.msra.mxu0 0.0
  %1699 = vmatprep.subr.mxu0 0.0
  %1700 = vmatpush1.msra.mxu0 0.0
  %1701 = vmatprep.subr.mxu0 0.0
  %1702 = vmatpush1.msra.mxu0 0.0
  %1703 = vmatprep.subr.mxu0 0.0
  %1704 = vmatpush1.msra.mxu0 0.0
  %1705 = vmatprep.subr.mxu0 0.0
  %1706 = vmatpush1.msra.mxu0 0.0
  %1707 = vmatprep.subr.mxu0 0.0
  %1708 = vmatpush1.msra.mxu0 0.0
  %1709 = vmatprep.subr.mxu0 0.0
  %1710 = vmatpush1.msra.mxu0 0.0
  %1711 = vmatprep.subr.mxu0 0.0
  %1712 = vmatpush1.msra.mxu0 0.0
  %1713 = vmatprep.subr.mxu0 0.0
  %1714 = vmatpush1.msra.mxu0 0.0
  %1715 = vmatprep.subr.mxu0 0.0
  %1716 = vmatpush1.msra.mxu0 0.0
  %1717 = vmatprep.subr.mxu0 0.0
  %1718 = vmatpush1.msra.mxu0 0.0
  %1719 = vmatprep.subr.mxu0 0.0
  %1720 = vmatpush1.msra.mxu0 0.0
  %1721 = vmatprep.subr.mxu0 0.0
  %1722 = vmatpush1.msra.mxu0 0.0
  %1723 = vmatprep.mubr.f32.mxu0 0.0
  %1724 = vmatmul.mubr.f32.gmra.mrb[0].mxu0 %v1657
  %v1725 = vpop.f32.mrb[0].mxu0
  %v1726 = vadd.f32 %v847, %v1725
  %v1727 = vpop.f32.mrb[0].mxu0
  %1728 = vdwg.mxu0
  %v1729 = vadd.f32 %v821, %v1726
  %v1730 = vxor.u32 %v1729, 2147483648
  %v1731 = vmul.f32 %v1730, 1.442695
  %v1732 = vpow.pop %v1731
  %v1733 = vadd.f32 %v1732, 1.0
  %v1734 = vrcp.pop %v1733
  %v1735 = vmul.f32 1.0, %v1734
  %1737 = vrot.lane.b32.xlu0 %v1726, 64
  %v1738 = vpop.permute.xlu0 %1737
  %v1740 = vmul.f32 %v1735, %v1738
  %1742 = vrot.lane.b32.xlu0 %v1740, 64
  %v1743 = vpop.permute.xlu0 %1742
  %v1745 = vadd.f32 %v821, %v1743
  %v1746 = vtanh.pop %v1745
  %v1747 = vsub.f32 1.0, %v1735
  %1749 = vrot.lane.b32.xlu0 %v1746, 96
  %v1750 = vpop.permute.xlu0 %1749
  %v1752 = vmul.f32 %v1747, %v1750
  %v1753 = vmul.f32 %v1735, %v1653
  %v1754 = vadd.f32 %v1752, %v1753
  %1756 = vrot.lane.b32.xlu0 %v1754, 96
  %v1757 = vpop.permute.xlu0 %1756
  %v1758 = vsel %vm674, %v1757, 0
  %1760 = vmatprep.subr.mxu0 0.0
  %1761 = vmatpush1.msra.mxu0 %v664
  %1762 = vmatprep.subr.mxu0 0.0
  %1763 = vmatpush1.msra.mxu0 %v665
  %1764 = vmatprep.subr.mxu0 0.0
  %1765 = vmatpush1.msra.mxu0 %v666
  %1766 = vmatprep.subr.mxu0 0.0
  %1767 = vmatpush1.msra.mxu0 %v667
  %1768 = vmatprep.subr.mxu0 0.0
  %1769 = vmatpush1.msra.mxu0 0.0
  %1770 = vmatprep.subr.mxu0 0.0
  %1771 = vmatpush1.msra.mxu0 0.0
  %1772 = vmatprep.subr.mxu0 0.0
  %1773 = vmatpush1.msra.mxu0 0.0
  %1774 = vmatprep.subr.mxu0 0.0
  %1775 = vmatpush1.msra.mxu0 0.0
  %1776 = vmatprep.subr.mxu0 0.0
  %1777 = vmatpush1.msra.mxu0 0.0
  %1778 = vmatprep.subr.mxu0 0.0
  %1779 = vmatpush1.msra.mxu0 0.0
  %1780 = vmatprep.subr.mxu0 0.0
  %1781 = vmatpush1.msra.mxu0 0.0
  %1782 = vmatprep.subr.mxu0 0.0
  %1783 = vmatpush1.msra.mxu0 0.0
  %1784 = vmatprep.subr.mxu0 0.0
  %1785 = vmatpush1.msra.mxu0 0.0
  %1786 = vmatprep.subr.mxu0 0.0
  %1787 = vmatpush1.msra.mxu0 0.0
  %1788 = vmatprep.subr.mxu0 0.0
  %1789 = vmatpush1.msra.mxu0 0.0
  %1790 = vmatprep.subr.mxu0 0.0
  %1791 = vmatpush1.msra.mxu0 0.0
  %1792 = vmatprep.subr.mxu0 0.0
  %1793 = vmatpush1.msra.mxu0 0.0
  %1794 = vmatprep.subr.mxu0 0.0
  %1795 = vmatpush1.msra.mxu0 0.0
  %1796 = vmatprep.subr.mxu0 0.0
  %1797 = vmatpush1.msra.mxu0 0.0
  %1798 = vmatprep.subr.mxu0 0.0
  %1799 = vmatpush1.msra.mxu0 0.0
  %1800 = vmatprep.subr.mxu0 0.0
  %1801 = vmatpush1.msra.mxu0 0.0
  %1802 = vmatprep.subr.mxu0 0.0
  %1803 = vmatpush1.msra.mxu0 0.0
  %1804 = vmatprep.subr.mxu0 0.0
  %1805 = vmatpush1.msra.mxu0 0.0
  %1806 = vmatprep.subr.mxu0 0.0
  %1807 = vmatpush1.msra.mxu0 0.0
  %1808 = vmatprep.subr.mxu0 0.0
  %1809 = vmatpush1.msra.mxu0 0.0
  %1810 = vmatprep.subr.mxu0 0.0
  %1811 = vmatpush1.msra.mxu0 0.0
  %1812 = vmatprep.subr.mxu0 0.0
  %1813 = vmatpush1.msra.mxu0 0.0
  %1814 = vmatprep.subr.mxu0 0.0
  %1815 = vmatpush1.msra.mxu0 0.0
  %1816 = vmatprep.subr.mxu0 0.0
  %1817 = vmatpush1.msra.mxu0 0.0
  %1818 = vmatprep.subr.mxu0 0.0
  %1819 = vmatpush1.msra.mxu0 0.0
  %1820 = vmatprep.subr.mxu0 0.0
  %1821 = vmatpush1.msra.mxu0 0.0
  %1822 = vmatprep.subr.mxu0 0.0
  %1823 = vmatpush1.msra.mxu0 0.0
  %1824 = vmatprep.mubr.f32.mxu0 0.0
  %1825 = vmatmul.mubr.f32.gmra.mrb[0].mxu0 %v1758
  %v1826 = vpop.f32.mrb[0].mxu0
  %v1827 = vadd.f32 %v847, %v1826
  %v1828 = vpop.f32.mrb[0].mxu0
  %1829 = vdwg.mxu0
  %v1830 = vadd.f32 %v826, %v1827
  %v1831 = vxor.u32 %v1830, 2147483648
  %v1832 = vmul.f32 %v1831, 1.442695
  %v1833 = vpow.pop %v1832
  %v1834 = vadd.f32 %v1833, 1.0
  %v1835 = vrcp.pop %v1834
  %v1836 = vmul.f32 1.0, %v1835
  %1838 = vrot.lane.b32.xlu0 %v1827, 64
  %v1839 = vpop.permute.xlu0 %1838
  %v1841 = vmul.f32 %v1836, %v1839
  %1843 = vrot.lane.b32.xlu0 %v1841, 64
  %v1844 = vpop.permute.xlu0 %1843
  %v1846 = vadd.f32 %v826, %v1844
  %v1847 = vtanh.pop %v1846
  %v1848 = vsub.f32 1.0, %v1836
  %1850 = vrot.lane.b32.xlu0 %v1847, 96
  %v1851 = vpop.permute.xlu0 %1850
  %v1853 = vmul.f32 %v1848, %v1851
  %v1854 = vmul.f32 %v1836, %v1754
  %v1855 = vadd.f32 %v1853, %v1854
  %1857 = vrot.lane.b32.xlu0 %v1855, 96
  %v1858 = vpop.permute.xlu0 %1857
  %v1859 = vsel %vm674, %v1858, 0
  %1861 = vmatprep.subr.mxu0 0.0
  %1862 = vmatpush1.msra.mxu0 %v664
  %1863 = vmatprep.subr.mxu0 0.0
  %1864 = vmatpush1.msra.mxu0 %v665
  %1865 = vmatprep.subr.mxu0 0.0
  %1866 = vmatpush1.msra.mxu0 %v666
  %1867 = vmatprep.subr.mxu0 0.0
  %1868 = vmatpush1.msra.mxu0 %v667
  %1869 = vmatprep.subr.mxu0 0.0
  %1870 = vmatpush1.msra.mxu0 0.0
  %1871 = vmatprep.subr.mxu0 0.0
  %1872 = vmatpush1.msra.mxu0 0.0
  %1873 = vmatprep.subr.mxu0 0.0
  %1874 = vmatpush1.msra.mxu0 0.0
  %1875 = vmatprep.subr.mxu0 0.0
  %1876 = vmatpush1.msra.mxu0 0.0
  %1877 = vmatprep.subr.mxu0 0.0
  %1878 = vmatpush1.msra.mxu0 0.0
  %1879 = vmatprep.subr.mxu0 0.0
  %1880 = vmatpush1.msra.mxu0 0.0
  %1881 = vmatprep.subr.mxu0 0.0
  %1882 = vmatpush1.msra.mxu0 0.0
  %1883 = vmatprep.subr.mxu0 0.0
  %1884 = vmatpush1.msra.mxu0 0.0
  %1885 = vmatprep.subr.mxu0 0.0
  %1886 = vmatpush1.msra.mxu0 0.0
  %1887 = vmatprep.subr.mxu0 0.0
  %1888 = vmatpush1.msra.mxu0 0.0
  %1889 = vmatprep.subr.mxu0 0.0
  %1890 = vmatpush1.msra.mxu0 0.0
  %1891 = vmatprep.subr.mxu0 0.0
  %1892 = vmatpush1.msra.mxu0 0.0
  %1893 = vmatprep.subr.mxu0 0.0
  %1894 = vmatpush1.msra.mxu0 0.0
  %1895 = vmatprep.subr.mxu0 0.0
  %1896 = vmatpush1.msra.mxu0 0.0
  %1897 = vmatprep.subr.mxu0 0.0
  %1898 = vmatpush1.msra.mxu0 0.0
  %1899 = vmatprep.subr.mxu0 0.0
  %1900 = vmatpush1.msra.mxu0 0.0
  %1901 = vmatprep.subr.mxu0 0.0
  %1902 = vmatpush1.msra.mxu0 0.0
  %1903 = vmatprep.subr.mxu0 0.0
  %1904 = vmatpush1.msra.mxu0 0.0
  %1905 = vmatprep.subr.mxu0 0.0
  %1906 = vmatpush1.msra.mxu0 0.0
  %1907 = vmatprep.subr.mxu0 0.0
  %1908 = vmatpush1.msra.mxu0 0.0
  %1909 = vmatprep.subr.mxu0 0.0
  %1910 = vmatpush1.msra.mxu0 0.0
  %1911 = vmatprep.subr.mxu0 0.0
  %1912 = vmatpush1.msra.mxu0 0.0
  %1913 = vmatprep.subr.mxu0 0.0
  %1914 = vmatpush1.msra.mxu0 0.0
  %1915 = vmatprep.subr.mxu0 0.0
  %1916 = vmatpush1.msra.mxu0 0.0
  %1917 = vmatprep.subr.mxu0 0.0
  %1918 = vmatpush1.msra.mxu0 0.0
  %1919 = vmatprep.subr.mxu0 0.0
  %1920 = vmatpush1.msra.mxu0 0.0
  %1921 = vmatprep.subr.mxu0 0.0
  %1922 = vmatpush1.msra.mxu0 0.0
  %1923 = vmatprep.subr.mxu0 0.0
  %1924 = vmatpush1.msra.mxu0 0.0
  %1925 = vmatprep.mubr.f32.mxu0 0.0
  %1926 = vmatmul.mubr.f32.gmra.mrb[0].mxu0 %v1859
  %v1927 = vpop.f32.mrb[0].mxu0
  %v1928 = vadd.f32 %v847, %v1927
  %v1929 = vpop.f32.mrb[0].mxu0
  %1930 = vdwg.mxu0
  %v1931 = vadd.f32 %v831, %v1928
  %v1932 = vxor.u32 %v1931, 2147483648
  %v1933 = vmul.f32 %v1932, 1.442695
  %v1934 = vpow.pop %v1933
  %v1935 = vadd.f32 %v1934, 1.0
  %v1936 = vrcp.pop %v1935
  %v1937 = vmul.f32 1.0, %v1936
  %1939 = vrot.lane.b32.xlu0 %v1928, 64
  %v1940 = vpop.permute.xlu0 %1939
  %v1942 = vmul.f32 %v1937, %v1940
  %1944 = vrot.lane.b32.xlu0 %v1942, 64
  %v1945 = vpop.permute.xlu0 %1944
  %v1947 = vadd.f32 %v831, %v1945
  %v1948 = vtanh.pop %v1947
  %v1949 = vsub.f32 1.0, %v1937
  %1951 = vrot.lane.b32.xlu0 %v1948, 96
  %v1952 = vpop.permute.xlu0 %1951
  %v1954 = vmul.f32 %v1949, %v1952
  %v1955 = vmul.f32 %v1937, %v1855
  %v1956 = vadd.f32 %v1954, %v1955
  %1958 = vrot.lane.b32.xlu0 %v1956, 96
  %v1959 = vpop.permute.xlu0 %1958
  %v1960 = vsel %vm674, %v1959, 0
  %1962 = vmatprep.subr.mxu0 0.0
  %1963 = vmatpush1.msra.mxu0 %v664
  %1964 = vmatprep.subr.mxu0 0.0
  %1965 = vmatpush1.msra.mxu0 %v665
  %1966 = vmatprep.subr.mxu0 0.0
  %1967 = vmatpush1.msra.mxu0 %v666
  %1968 = vmatprep.subr.mxu0 0.0
  %1969 = vmatpush1.msra.mxu0 %v667
  %1970 = vmatprep.subr.mxu0 0.0
  %1971 = vmatpush1.msra.mxu0 0.0
  %1972 = vmatprep.subr.mxu0 0.0
  %1973 = vmatpush1.msra.mxu0 0.0
  %1974 = vmatprep.subr.mxu0 0.0
  %1975 = vmatpush1.msra.mxu0 0.0
  %1976 = vmatprep.subr.mxu0 0.0
  %1977 = vmatpush1.msra.mxu0 0.0
  %1978 = vmatprep.subr.mxu0 0.0
  %1979 = vmatpush1.msra.mxu0 0.0
  %1980 = vmatprep.subr.mxu0 0.0
  %1981 = vmatpush1.msra.mxu0 0.0
  %1982 = vmatprep.subr.mxu0 0.0
  %1983 = vmatpush1.msra.mxu0 0.0
  %1984 = vmatprep.subr.mxu0 0.0
  %1985 = vmatpush1.msra.mxu0 0.0
  %1986 = vmatprep.subr.mxu0 0.0
  %1987 = vmatpush1.msra.mxu0 0.0
  %1988 = vmatprep.subr.mxu0 0.0
  %1989 = vmatpush1.msra.mxu0 0.0
  %1990 = vmatprep.subr.mxu0 0.0
  %1991 = vmatpush1.msra.mxu0 0.0
  %1992 = vmatprep.subr.mxu0 0.0
  %1993 = vmatpush1.msra.mxu0 0.0
  %1994 = vmatprep.subr.mxu0 0.0
  %1995 = vmatpush1.msra.mxu0 0.0
  %1996 = vmatprep.subr.mxu0 0.0
  %1997 = vmatpush1.msra.mxu0 0.0
  %1998 = vmatprep.subr.mxu0 0.0
  %1999 = vmatpush1.msra.mxu0 0.0
  %2000 = vmatprep.subr.mxu0 0.0
  %2001 = vmatpush1.msra.mxu0 0.0
  %2002 = vmatprep.subr.mxu0 0.0
  %2003 = vmatpush1.msra.mxu0 0.0
  %2004 = vmatprep.subr.mxu0 0.0
  %2005 = vmatpush1.msra.mxu0 0.0
  %2006 = vmatprep.subr.mxu0 0.0
  %2007 = vmatpush1.msra.mxu0 0.0
  %2008 = vmatprep.subr.mxu0 0.0
  %2009 = vmatpush1.msra.mxu0 0.0
  %2010 = vmatprep.subr.mxu0 0.0
  %2011 = vmatpush1.msra.mxu0 0.0
  %2012 = vmatprep.subr.mxu0 0.0
  %2013 = vmatpush1.msra.mxu0 0.0
  %2014 = vmatprep.subr.mxu0 0.0
  %2015 = vmatpush1.msra.mxu0 0.0
  %2016 = vmatprep.subr.mxu0 0.0
  %2017 = vmatpush1.msra.mxu0 0.0
  %2018 = vmatprep.subr.mxu0 0.0
  %2019 = vmatpush1.msra.mxu0 0.0
  %2020 = vmatprep.subr.mxu0 0.0
  %2021 = vmatpush1.msra.mxu0 0.0
  %2022 = vmatprep.subr.mxu0 0.0
  %2023 = vmatpush1.msra.mxu0 0.0
  %2024 = vmatprep.subr.mxu0 0.0
  %2025 = vmatpush1.msra.mxu0 0.0
  %2026 = vmatprep.mubr.f32.mxu0 0.0
  %2027 = vmatmul.mubr.f32.gmra.mrb[0].mxu0 %v1960
  %v2028 = vpop.f32.mrb[0].mxu0
  %v2029 = vadd.f32 %v847, %v2028
  %v2030 = vpop.f32.mrb[0].mxu0
  %2031 = vdwg.mxu0
  %v2032 = vadd.f32 %v836, %v2029
  %v2033 = vxor.u32 %v2032, 2147483648
  %v2034 = vmul.f32 %v2033, 1.442695
  %v2035 = vpow.pop %v2034
  %v2036 = vadd.f32 %v2035, 1.0
  %v2037 = vrcp.pop %v2036
  %v2038 = vmul.f32 1.0, %v2037
  %2040 = vrot.lane.b32.xlu0 %v2029, 64
  %v2041 = vpop.permute.xlu0 %2040
  %v2043 = vmul.f32 %v2038, %v2041
  %2045 = vrot.lane.b32.xlu0 %v2043, 64
  %v2046 = vpop.permute.xlu0 %2045
  %v2048 = vadd.f32 %v836, %v2046
  %v2049 = vtanh.pop %v2048
  %v2050 = vsub.f32 1.0, %v2038
  %2052 = vrot.lane.b32.xlu0 %v2049, 96
  %v2053 = vpop.permute.xlu0 %2052
  %v2055 = vmul.f32 %v2050, %v2053
  %v2056 = vmul.f32 %v2038, %v1956
  %v2057 = vadd.f32 %v2055, %v2056
  %2059 = vrot.lane.b32.xlu0 %v2057, 96
  %v2060 = vpop.permute.xlu0 %2059
  %v2061 = vsel %vm674, %v2060, 0
  %2063 = vmatprep.subr.mxu0 0.0
  %2064 = vmatpush1.msra.mxu0 %v664
  %2065 = vmatprep.subr.mxu0 0.0
  %2066 = vmatpush1.msra.mxu0 %v665
  %2067 = vmatprep.subr.mxu0 0.0
  %2068 = vmatpush1.msra.mxu0 %v666
  %2069 = vmatprep.subr.mxu0 0.0
  %2070 = vmatpush1.msra.mxu0 %v667
  %2071 = vmatprep.subr.mxu0 0.0
  %2072 = vmatpush1.msra.mxu0 0.0
  %2073 = vmatprep.subr.mxu0 0.0
  %2074 = vmatpush1.msra.mxu0 0.0
  %2075 = vmatprep.subr.mxu0 0.0
  %2076 = vmatpush1.msra.mxu0 0.0
  %2077 = vmatprep.subr.mxu0 0.0
  %2078 = vmatpush1.msra.mxu0 0.0
  %2079 = vmatprep.subr.mxu0 0.0
  %2080 = vmatpush1.msra.mxu0 0.0
  %2081 = vmatprep.subr.mxu0 0.0
  %2082 = vmatpush1.msra.mxu0 0.0
  %2083 = vmatprep.subr.mxu0 0.0
  %2084 = vmatpush1.msra.mxu0 0.0
  %2085 = vmatprep.subr.mxu0 0.0
  %2086 = vmatpush1.msra.mxu0 0.0
  %2087 = vmatprep.subr.mxu0 0.0
  %2088 = vmatpush1.msra.mxu0 0.0
  %2089 = vmatprep.subr.mxu0 0.0
  %2090 = vmatpush1.msra.mxu0 0.0
  %2091 = vmatprep.subr.mxu0 0.0
  %2092 = vmatpush1.msra.mxu0 0.0
  %2093 = vmatprep.subr.mxu0 0.0
  %2094 = vmatpush1.msra.mxu0 0.0
  %2095 = vmatprep.subr.mxu0 0.0
  %2096 = vmatpush1.msra.mxu0 0.0
  %2097 = vmatprep.subr.mxu0 0.0
  %2098 = vmatpush1.msra.mxu0 0.0
  %2099 = vmatprep.subr.mxu0 0.0
  %2100 = vmatpush1.msra.mxu0 0.0
  %2101 = vmatprep.subr.mxu0 0.0
  %2102 = vmatpush1.msra.mxu0 0.0
  %2103 = vmatprep.subr.mxu0 0.0
  %2104 = vmatpush1.msra.mxu0 0.0
  %2105 = vmatprep.subr.mxu0 0.0
  %2106 = vmatpush1.msra.mxu0 0.0
  %2107 = vmatprep.subr.mxu0 0.0
  %2108 = vmatpush1.msra.mxu0 0.0
  %2109 = vmatprep.subr.mxu0 0.0
  %2110 = vmatpush1.msra.mxu0 0.0
  %2111 = vmatprep.subr.mxu0 0.0
  %2112 = vmatpush1.msra.mxu0 0.0
  %2113 = vmatprep.subr.mxu0 0.0
  %2114 = vmatpush1.msra.mxu0 0.0
  %2115 = vmatprep.subr.mxu0 0.0
  %2116 = vmatpush1.msra.mxu0 0.0
  %2117 = vmatprep.subr.mxu0 0.0
  %2118 = vmatpush1.msra.mxu0 0.0
  %2119 = vmatprep.subr.mxu0 0.0
  %2120 = vmatpush1.msra.mxu0 0.0
  %2121 = vmatprep.subr.mxu0 0.0
  %2122 = vmatpush1.msra.mxu0 0.0
  %2123 = vmatprep.subr.mxu0 0.0
  %2124 = vmatpush1.msra.mxu0 0.0
  %2125 = vmatprep.subr.mxu0 0.0
  %2126 = vmatpush1.msra.mxu0 0.0
  %2127 = vmatprep.mubr.f32.mxu0 0.0
  %2128 = vmatmul.mubr.f32.gmra.mrb[0].mxu0 %v2061
  %v2129 = vpop.f32.mrb[0].mxu0
  %v2130 = vadd.f32 %v847, %v2129
  %v2131 = vpop.f32.mrb[0].mxu0
  %2132 = vdwg.mxu0
  %v2133 = vadd.f32 %v841, %v2130
  %v2134 = vxor.u32 %v2133, 2147483648
  %v2135 = vmul.f32 %v2134, 1.442695
  %v2136 = vpow.pop %v2135
  %v2137 = vadd.f32 %v2136, 1.0
  %v2138 = vrcp.pop %v2137
  %v2139 = vmul.f32 1.0, %v2138
  %2141 = vrot.lane.b32.xlu0 %v2130, 64
  %v2142 = vpop.permute.xlu0 %2141
  %v2144 = vmul.f32 %v2139, %v2142
  %2146 = vrot.lane.b32.xlu0 %v2144, 64
  %v2147 = vpop.permute.xlu0 %2146
  %v2149 = vadd.f32 %v841, %v2147
  %v2150 = vtanh.pop %v2149
  %v2151 = vsub.f32 1.0, %v2139
  %2153 = vrot.lane.b32.xlu0 %v2150, 96
  %v2154 = vpop.permute.xlu0 %2153
  %v2156 = vmul.f32 %v2151, %v2154
  %v2157 = vmul.f32 %v2139, %v2057
  %v2158 = vadd.f32 %v2156, %v2157
  %v2159 = vld [vmem:[%s1 + $0x40] sm:$0xff]
  %v2160 = vld [vmem:[%s1 + $0x48] sm:$0xff]
  %v2161 = vld [vmem:[%s1 + $0x50] sm:$0xff]
  %v2162 = vld [vmem:[%s1 + $0x58] sm:$0xff]
  %v2163 = vld [vmem:[%s1 + $0x60] sm:$0xff]
  %v2164 = vld [vmem:[%s1 + $0x68] sm:$0xff]
  %v2165 = vld [vmem:[%s1 + $0x70] sm:$0xff]
  %v2166 = vld [vmem:[%s1 + $0x78] sm:$0xff]
  %v2167 = vld [vmem:[%s1 + $0x82] sm:$0x1]
  %v2168 = vld [vmem:[%s1 + $0x83] sm:$0x1]
  %v2169 = vlaneseq
  %v2170 = vshrl.u32 %v2169, 7
  %v2171 = vsub.s32 0, %v2170
  %v2172 = vrot.slane %v2167, %v2171
  %2173 = vmatprep.subr.mxu0 0.0
  %2174 = vmatpush1.msra.mxu0 %v2159
  %2175 = vmatprep.subr.mxu0 0.0
  %2176 = vmatpush1.msra.mxu0 %v2160
  %2177 = vmatprep.subr.mxu0 0.0
  %2178 = vmatpush1.msra.mxu0 %v2161
  %2179 = vmatprep.subr.mxu0 0.0
  %2180 = vmatpush1.msra.mxu0 %v2162
  %2181 = vmatprep.subr.mxu0 0.0
  %2182 = vmatpush1.msra.mxu0 0.0
  %2183 = vmatprep.subr.mxu0 0.0
  %2184 = vmatpush1.msra.mxu0 0.0
  %2185 = vmatprep.subr.mxu0 0.0
  %2186 = vmatpush1.msra.mxu0 0.0
  %2187 = vmatprep.subr.mxu0 0.0
  %2188 = vmatpush1.msra.mxu0 0.0
  %2189 = vmatprep.subr.mxu0 0.0
  %2190 = vmatpush1.msra.mxu0 0.0
  %2191 = vmatprep.subr.mxu0 0.0
  %2192 = vmatpush1.msra.mxu0 0.0
  %2193 = vmatprep.subr.mxu0 0.0
  %2194 = vmatpush1.msra.mxu0 0.0
  %2195 = vmatprep.subr.mxu0 0.0
  %2196 = vmatpush1.msra.mxu0 0.0
  %2197 = vmatprep.subr.mxu0 0.0
  %2198 = vmatpush1.msra.mxu0 0.0
  %2199 = vmatprep.subr.mxu0 0.0
  %2200 = vmatpush1.msra.mxu0 0.0
  %2201 = vmatprep.subr.mxu0 0.0
  %2202 = vmatpush1.msra.mxu0 0.0
  %2203 = vmatprep.subr.mxu0 0.0
  %2204 = vmatpush1.msra.mxu0 0.0
  %2205 = vmatprep.subr.mxu0 0.0
  %2206 = vmatpush1.msra.mxu0 0.0
  %2207 = vmatprep.subr.mxu0 0.0
  %2208 = vmatpush1.msra.mxu0 0.0
  %2209 = vmatprep.subr.mxu0 0.0
  %2210 = vmatpush1.msra.mxu0 0.0
  %2211 = vmatprep.subr.mxu0 0.0
  %2212 = vmatpush1.msra.mxu0 0.0
  %2213 = vmatprep.subr.mxu0 0.0
  %2214 = vmatpush1.msra.mxu0 0.0
  %2215 = vmatprep.subr.mxu0 0.0
  %2216 = vmatpush1.msra.mxu0 0.0
  %2217 = vmatprep.subr.mxu0 0.0
  %2218 = vmatpush1.msra.mxu0 0.0
  %2219 = vmatprep.subr.mxu0 0.0
  %2220 = vmatpush1.msra.mxu0 0.0
  %2221 = vmatprep.subr.mxu0 0.0
  %2222 = vmatpush1.msra.mxu0 0.0
  %2223 = vmatprep.subr.mxu0 0.0
  %2224 = vmatpush1.msra.mxu0 0.0
  %2225 = vmatprep.subr.mxu0 0.0
  %2226 = vmatpush1.msra.mxu0 0.0
  %2227 = vmatprep.subr.mxu0 0.0
  %2228 = vmatpush1.msra.mxu0 0.0
  %2229 = vmatprep.subr.mxu0 0.0
  %2230 = vmatpush1.msra.mxu0 0.0
  %2231 = vmatprep.subr.mxu0 0.0
  %2232 = vmatpush1.msra.mxu0 0.0
  %2233 = vmatprep.subr.mxu0 0.0
  %2234 = vmatpush1.msra.mxu0 0.0
  %2235 = vmatprep.subr.mxu0 0.0
  %2236 = vmatpush1.msra.mxu0 0.0
  %2237 = vmatprep.mubr.f32.mxu0 0.0
  %2238 = vmatmul.mubr.f32.gmra.mrb[0].mxu0 %v679
  %v2239 = vpop.f32.mrb[0].mxu0
  %v2240 = vadd.f32 %v2172, %v2239
  %v2241 = vpop.f32.mrb[0].mxu0
  %2242 = vmatprep.mubr.f32.mxu0 0.0
  %2243 = vmatmul.mubr.f32.gmra.mrb[0].mxu0 %v682
  %v2244 = vpop.f32.mrb[0].mxu0
  %v2245 = vadd.f32 %v2172, %v2244
  %v2246 = vpop.f32.mrb[0].mxu0
  %2247 = vmatprep.mubr.f32.mxu0 0.0
  %2248 = vmatmul.mubr.f32.gmra.mrb[0].mxu0 %v685
  %v2249 = vpop.f32.mrb[0].mxu0
  %v2250 = vadd.f32 %v2172, %v2249
  %v2251 = vpop.f32.mrb[0].mxu0
  %2252 = vmatprep.mubr.f32.mxu0 0.0
  %2253 = vmatmul.mubr.f32.gmra.mrb[0].mxu0 %v688
  %v2254 = vpop.f32.mrb[0].mxu0
  %v2255 = vadd.f32 %v2172, %v2254
  %v2256 = vpop.f32.mrb[0].mxu0
  %2257 = vmatprep.mubr.f32.mxu0 0.0
  %2258 = vmatmul.mubr.f32.gmra.mrb[0].mxu0 %v691
  %v2259 = vpop.f32.mrb[0].mxu0
  %v2260 = vadd.f32 %v2172, %v2259
  %v2261 = vpop.f32.mrb[0].mxu0
  %2262 = vmatprep.mubr.f32.mxu0 0.0
  %2263 = vmatmul.mubr.f32.gmra.mrb[0].mxu0 %v694
  %v2264 = vpop.f32.mrb[0].mxu0
  %v2265 = vadd.f32 %v2172, %v2264
  %v2266 = vpop.f32.mrb[0].mxu0
  %2267 = vmatprep.mubr.f32.mxu0 0.0
  %2268 = vmatmul.mubr.f32.gmra.mrb[0].mxu0 %v697
  %v2269 = vpop.f32.mrb[0].mxu0
  %v2270 = vadd.f32 %v2172, %v2269
  %v2271 = vpop.f32.mrb[0].mxu0
  %2272 = vmatprep.mubr.f32.mxu0 0.0
  %2273 = vmatmul.mubr.f32.gmra.mrb[0].mxu0 %v700
  %v2274 = vpop.f32.mrb[0].mxu0
  %v2275 = vadd.f32 %v2172, %v2274
  %v2276 = vpop.f32.mrb[0].mxu0
  %2277 = vmatprep.mubr.f32.mxu0 0.0
  %2278 = vmatmul.mubr.f32.gmra.mrb[0].mxu0 %v703
  %v2279 = vpop.f32.mrb[0].mxu0
  %v2280 = vadd.f32 %v2172, %v2279
  %v2281 = vpop.f32.mrb[0].mxu0
  %2282 = vmatprep.mubr.f32.mxu0 0.0
  %2283 = vmatmul.mubr.f32.gmra.mrb[0].mxu0 %v706
  %v2284 = vpop.f32.mrb[0].mxu0
  %v2285 = vadd.f32 %v2172, %v2284
  %v2286 = vpop.f32.mrb[0].mxu0
  %2287 = vmatprep.mubr.f32.mxu0 0.0
  %2288 = vmatmul.mubr.f32.gmra.mrb[0].mxu0 %v709
  %v2289 = vpop.f32.mrb[0].mxu0
  %v2290 = vadd.f32 %v2172, %v2289
  %v2291 = vpop.f32.mrb[0].mxu0
  %2292 = vmatprep.mubr.f32.mxu0 0.0
  %2293 = vmatmul.mubr.f32.gmra.mrb[0].mxu0 %v712
  %v2294 = vpop.f32.mrb[0].mxu0
  %v2295 = vadd.f32 %v2172, %v2294
  %v2296 = vpop.f32.mrb[0].mxu0
  %2297 = vdwg.mxu0
  %v2298 = vlaneseq
  %v2299 = vshrl.u32 %v2298, 7
  %v2300 = vsub.s32 0, %v2299
  %v2301 = vrot.slane %v2168, %v2300
  %2302 = vmatprep.subr.mxu0 0.0
  %2303 = vmatpush1.msra.mxu0 %v2163
  %2304 = vmatprep.subr.mxu0 0.0
  %2305 = vmatpush1.msra.mxu0 %v2164
  %2306 = vmatprep.subr.mxu0 0.0
  %2307 = vmatpush1.msra.mxu0 %v2165
  %2308 = vmatprep.subr.mxu0 0.0
  %2309 = vmatpush1.msra.mxu0 %v2166
  %2310 = vmatprep.subr.mxu0 0.0
  %2311 = vmatpush1.msra.mxu0 0.0
  %2312 = vmatprep.subr.mxu0 0.0
  %2313 = vmatpush1.msra.mxu0 0.0
  %2314 = vmatprep.subr.mxu0 0.0
  %2315 = vmatpush1.msra.mxu0 0.0
  %2316 = vmatprep.subr.mxu0 0.0
  %2317 = vmatpush1.msra.mxu0 0.0
  %2318 = vmatprep.subr.mxu0 0.0
  %2319 = vmatpush1.msra.mxu0 0.0
  %2320 = vmatprep.subr.mxu0 0.0
  %2321 = vmatpush1.msra.mxu0 0.0
  %2322 = vmatprep.subr.mxu0 0.0
  %2323 = vmatpush1.msra.mxu0 0.0
  %2324 = vmatprep.subr.mxu0 0.0
  %2325 = vmatpush1.msra.mxu0 0.0
  %2326 = vmatprep.subr.mxu0 0.0
  %2327 = vmatpush1.msra.mxu0 0.0
  %2328 = vmatprep.subr.mxu0 0.0
  %2329 = vmatpush1.msra.mxu0 0.0
  %2330 = vmatprep.subr.mxu0 0.0
  %2331 = vmatpush1.msra.mxu0 0.0
  %2332 = vmatprep.subr.mxu0 0.0
  %2333 = vmatpush1.msra.mxu0 0.0
  %2334 = vmatprep.subr.mxu0 0.0
  %2335 = vmatpush1.msra.mxu0 0.0
  %2336 = vmatprep.subr.mxu0 0.0
  %2337 = vmatpush1.msra.mxu0 0.0
  %2338 = vmatprep.subr.mxu0 0.0
  %2339 = vmatpush1.msra.mxu0 0.0
  %2340 = vmatprep.subr.mxu0 0.0
  %2341 = vmatpush1.msra.mxu0 0.0
  %2342 = vmatprep.subr.mxu0 0.0
  %2343 = vmatpush1.msra.mxu0 0.0
  %2344 = vmatprep.subr.mxu0 0.0
  %2345 = vmatpush1.msra.mxu0 0.0
  %2346 = vmatprep.subr.mxu0 0.0
  %2347 = vmatpush1.msra.mxu0 0.0
  %2348 = vmatprep.subr.mxu0 0.0
  %2349 = vmatpush1.msra.mxu0 0.0
  %2350 = vmatprep.subr.mxu0 0.0
  %2351 = vmatpush1.msra.mxu0 0.0
  %2352 = vmatprep.subr.mxu0 0.0
  %2353 = vmatpush1.msra.mxu0 0.0
  %2354 = vmatprep.subr.mxu0 0.0
  %2355 = vmatpush1.msra.mxu0 0.0
  %2356 = vmatprep.subr.mxu0 0.0
  %2357 = vmatpush1.msra.mxu0 0.0
  %2358 = vmatprep.subr.mxu0 0.0
  %2359 = vmatpush1.msra.mxu0 0.0
  %2360 = vmatprep.subr.mxu0 0.0
  %2361 = vmatpush1.msra.mxu0 0.0
  %2362 = vmatprep.subr.mxu0 0.0
  %2363 = vmatpush1.msra.mxu0 0.0
  %2364 = vmatprep.subr.mxu0 0.0
  %2365 = vmatpush1.msra.mxu0 0.0
  %2366 = vmatprep.mubr.f32.mxu0 0.0
  %2367 = vmatmul.mubr.f32.gmra.mrb[0].mxu0 %v849
  %v2368 = vpop.f32.mrb[0].mxu0
  %v2369 = vadd.f32 %v2301, %v2368
  %v2370 = vpop.f32.mrb[0].mxu0
  %2371 = vmatprep.mubr.f32.mxu0 0.0
  %2372 = vmatmul.mubr.f32.gmra.mrb[0].mxu0 %v849
  %v2373 = vpop.f32.mrb[0].mxu0
  %v2374 = vadd.f32 %v2301, %v2373
  %v2375 = vpop.f32.mrb[0].mxu0
  %2376 = vmatprep.mubr.f32.mxu0 0.0
  %2377 = vmatmul.mubr.f32.gmra.mrb[0].mxu0 %v849
  %v2378 = vpop.f32.mrb[0].mxu0
  %v2379 = vadd.f32 %v2301, %v2378
  %v2380 = vpop.f32.mrb[0].mxu0
  %2381 = vmatprep.mubr.f32.mxu0 0.0
  %2382 = vmatmul.mubr.f32.gmra.mrb[0].mxu0 %v849
  %v2383 = vpop.f32.mrb[0].mxu0
  %v2384 = vadd.f32 %v2301, %v2383
  %v2385 = vpop.f32.mrb[0].mxu0
  %2386 = vdwg.mxu0
  %v2387 = vadd.f32 %v2240, %v2369
  %v2388 = vadd.f32 %v2245, %v2374
  %v2389 = vadd.f32 %v2250, %v2379
  %v2390 = vadd.f32 %v2255, %v2384
  %v2391 = vxor.u32 %v2387, 2147483648
  %v2392 = vxor.u32 %v2388, 2147483648
  %v2393 = vxor.u32 %v2389, 2147483648
  %v2394 = vxor.u32 %v2390, 2147483648
  %v2395 = vmul.f32 %v2391, 1.442695
  %v2396 = vpow.pop %v2395
  %v2397 = vmul.f32 %v2392, 1.442695
  %v2398 = vpow.pop %v2397
  %v2399 = vmul.f32 %v2393, 1.442695
  %v2400 = vpow.pop %v2399
  %v2401 = vmul.f32 %v2394, 1.442695
  %v2402 = vpow.pop %v2401
  %v2403 = vadd.f32 %v2396, 1.0
  %v2404 = vadd.f32 %v2398, 1.0
  %v2405 = vadd.f32 %v2400, 1.0
  %v2406 = vadd.f32 %v2402, 1.0
  %v2407 = vrcp.pop %v2403
  %v2408 = vmul.f32 1.0, %v2407
  %v2409 = vrcp.pop %v2404
  %v2410 = vmul.f32 1.0, %v2409
  %v2411 = vrcp.pop %v2405
  %v2412 = vmul.f32 1.0, %v2411
  %v2413 = vrcp.pop %v2406
  %v2414 = vmul.f32 1.0, %v2413
  %2419 = vrot.lane.b32.xlu0 %v2369, 64
  %v2420 = vpop.permute.xlu0 %2419
  %2421 = vrot.lane.b32.xlu0 %v2374, 64
  %v2422 = vpop.permute.xlu0 %2421
  %2423 = vrot.lane.b32.xlu0 %v2379, 64
  %v2424 = vpop.permute.xlu0 %2423
  %2425 = vrot.lane.b32.xlu0 %v2384, 64
  %v2426 = vpop.permute.xlu0 %2425
  %v2431 = vmul.f32 %v2408, %v2420
  %v2432 = vmul.f32 %v2410, %v2422
  %v2433 = vmul.f32 %v2412, %v2424
  %v2434 = vmul.f32 %v2414, %v2426
  %2439 = vrot.lane.b32.xlu0 %v2431, 64
  %v2440 = vpop.permute.xlu0 %2439
  %2441 = vrot.lane.b32.xlu0 %v2432, 64
  %v2442 = vpop.permute.xlu0 %2441
  %2443 = vrot.lane.b32.xlu0 %v2433, 64
  %v2444 = vpop.permute.xlu0 %2443
  %2445 = vrot.lane.b32.xlu0 %v2434, 64
  %v2446 = vpop.permute.xlu0 %2445
  %v2451 = vadd.f32 %v2240, %v2440
  %v2452 = vadd.f32 %v2245, %v2442
  %v2453 = vadd.f32 %v2250, %v2444
  %v2454 = vadd.f32 %v2255, %v2446
  %v2455 = vtanh.pop %v2451
  %v2456 = vtanh.pop %v2452
  %v2457 = vtanh.pop %v2453
  %v2458 = vtanh.pop %v2454
  %v2459 = vsub.f32 1.0, %v2408
  %v2460 = vsub.f32 1.0, %v2410
  %v2461 = vsub.f32 1.0, %v2412
  %v2462 = vsub.f32 1.0, %v2414
  %2467 = vrot.lane.b32.xlu0 %v2455, 96
  %v2468 = vpop.permute.xlu0 %2467
  %2469 = vrot.lane.b32.xlu0 %v2456, 96
  %v2470 = vpop.permute.xlu0 %2469
  %2471 = vrot.lane.b32.xlu0 %v2457, 96
  %v2472 = vpop.permute.xlu0 %2471
  %2473 = vrot.lane.b32.xlu0 %v2458, 96
  %v2474 = vpop.permute.xlu0 %2473
  %v2479 = vmul.f32 %v2459, %v2468
  %v2480 = vmul.f32 %v2460, %v2470
  %v2481 = vmul.f32 %v2461, %v2472
  %v2482 = vmul.f32 %v2462, %v2474
  %v2483 = vmul.f32 %v2408, 0.0
  %v2484 = vmul.f32 %v2410, 0.0
  %v2485 = vmul.f32 %v2412, 0.0
  %v2486 = vmul.f32 %v2414, 0.0
  %v2487 = vadd.f32 %v2479, %v2483
  %v2488 = vadd.f32 %v2480, %v2484
  %v2489 = vadd.f32 %v2481, %v2485
  %v2490 = vadd.f32 %v2482, %v2486
  %2495 = vrot.lane.b32.xlu0 %v2487, 96
  %v2496 = vpop.permute.xlu0 %2495
  %2497 = vrot.lane.b32.xlu0 %v2488, 96
  %v2498 = vpop.permute.xlu0 %2497
  %2499 = vrot.lane.b32.xlu0 %v2489, 96
  %v2500 = vpop.permute.xlu0 %2499
  %2501 = vrot.lane.b32.xlu0 %v2490, 96
  %v2502 = vpop.permute.xlu0 %2501
  %v2503 = vsel %vm674, %v2496, 0
  %v2505 = vsel %vm674, %v2498, 0
  %v2507 = vsel %vm674, %v2500, 0
  %v2509 = vsel %vm674, %v2502, 0
  %2511 = vmatprep.subr.mxu0 0.0
  %2512 = vmatpush1.msra.mxu0 %v2163
  %2513 = vmatprep.subr.mxu0 0.0
  %2514 = vmatpush1.msra.mxu0 %v2164
  %2515 = vmatprep.subr.mxu0 0.0
  %2516 = vmatpush1.msra.mxu0 %v2165
  %2517 = vmatprep.subr.mxu0 0.0
  %2518 = vmatpush1.msra.mxu0 %v2166
  %2519 = vmatprep.subr.mxu0 0.0
  %2520 = vmatpush1.msra.mxu0 0.0
  %2521 = vmatprep.subr.mxu0 0.0
  %2522 = vmatpush1.msra.mxu0 0.0
  %2523 = vmatprep.subr.mxu0 0.0
  %2524 = vmatpush1.msra.mxu0 0.0
  %2525 = vmatprep.subr.mxu0 0.0
  %2526 = vmatpush1.msra.mxu0 0.0
  %2527 = vmatprep.subr.mxu0 0.0
  %2528 = vmatpush1.msra.mxu0 0.0
  %2529 = vmatprep.subr.mxu0 0.0
  %2530 = vmatpush1.msra.mxu0 0.0
  %2531 = vmatprep.subr.mxu0 0.0
  %2532 = vmatpush1.msra.mxu0 0.0
  %2533 = vmatprep.subr.mxu0 0.0
  %2534 = vmatpush1.msra.mxu0 0.0
  %2535 = vmatprep.subr.mxu0 0.0
  %2536 = vmatpush1.msra.mxu0 0.0
  %2537 = vmatprep.subr.mxu0 0.0
  %2538 = vmatpush1.msra.mxu0 0.0
  %2539 = vmatprep.subr.mxu0 0.0
  %2540 = vmatpush1.msra.mxu0 0.0
  %2541 = vmatprep.subr.mxu0 0.0
  %2542 = vmatpush1.msra.mxu0 0.0
  %2543 = vmatprep.subr.mxu0 0.0
  %2544 = vmatpush1.msra.mxu0 0.0
  %2545 = vmatprep.subr.mxu0 0.0
  %2546 = vmatpush1.msra.mxu0 0.0
  %2547 = vmatprep.subr.mxu0 0.0
  %2548 = vmatpush1.msra.mxu0 0.0
  %2549 = vmatprep.subr.mxu0 0.0
  %2550 = vmatpush1.msra.mxu0 0.0
  %2551 = vmatprep.subr.mxu0 0.0
  %2552 = vmatpush1.msra.mxu0 0.0
  %2553 = vmatprep.subr.mxu0 0.0
  %2554 = vmatpush1.msra.mxu0 0.0
  %2555 = vmatprep.subr.mxu0 0.0
  %2556 = vmatpush1.msra.mxu0 0.0
  %2557 = vmatprep.subr.mxu0 0.0
  %2558 = vmatpush1.msra.mxu0 0.0
  %2559 = vmatprep.subr.mxu0 0.0
  %2560 = vmatpush1.msra.mxu0 0.0
  %2561 = vmatprep.subr.mxu0 0.0
  %2562 = vmatpush1.msra.mxu0 0.0
  %2563 = vmatprep.subr.mxu0 0.0
  %2564 = vmatpush1.msra.mxu0 0.0
  %2565 = vmatprep.subr.mxu0 0.0
  %2566 = vmatpush1.msra.mxu0 0.0
  %2567 = vmatprep.subr.mxu0 0.0
  %2568 = vmatpush1.msra.mxu0 0.0
  %2569 = vmatprep.subr.mxu0 0.0
  %2570 = vmatpush1.msra.mxu0 0.0
  %2571 = vmatprep.subr.mxu0 0.0
  %2572 = vmatpush1.msra.mxu0 0.0
  %2573 = vmatprep.subr.mxu0 0.0
  %2574 = vmatpush1.msra.mxu0 0.0
  %2575 = vmatprep.mubr.f32.mxu0 0.0
  %2576 = vmatmul.mubr.f32.gmra.mrb[0].mxu0 %v2503
  %v2577 = vpop.f32.mrb[0].mxu0
  %v2578 = vadd.f32 %v2301, %v2577
  %v2579 = vpop.f32.mrb[0].mxu0
  %2580 = vmatprep.mubr.f32.mxu0 0.0
  %2581 = vmatmul.mubr.f32.gmra.mrb[0].mxu0 %v2505
  %v2582 = vpop.f32.mrb[0].mxu0
  %v2583 = vadd.f32 %v2301, %v2582
  %v2584 = vpop.f32.mrb[0].mxu0
  %2585 = vmatprep.mubr.f32.mxu0 0.0
  %2586 = vmatmul.mubr.f32.gmra.mrb[0].mxu0 %v2507
  %v2587 = vpop.f32.mrb[0].mxu0
  %v2588 = vadd.f32 %v2301, %v2587
  %v2589 = vpop.f32.mrb[0].mxu0
  %2590 = vmatprep.mubr.f32.mxu0 0.0
  %2591 = vmatmul.mubr.f32.gmra.mrb[0].mxu0 %v2509
  %v2592 = vpop.f32.mrb[0].mxu0
  %v2593 = vadd.f32 %v2301, %v2592
  %v2594 = vpop.f32.mrb[0].mxu0
  %2595 = vdwg.mxu0
  %v2596 = vadd.f32 %v2260, %v2578
  %v2597 = vadd.f32 %v2265, %v2583
  %v2598 = vadd.f32 %v2270, %v2588
  %v2599 = vadd.f32 %v2275, %v2593
  %v2600 = vxor.u32 %v2596, 2147483648
  %v2601 = vxor.u32 %v2597, 2147483648
  %v2602 = vxor.u32 %v2598, 2147483648
  %v2603 = vxor.u32 %v2599, 2147483648
  %v2604 = vmul.f32 %v2600, 1.442695
  %v2605 = vpow.pop %v2604
  %v2606 = vmul.f32 %v2601, 1.442695
  %v2607 = vpow.pop %v2606
  %v2608 = vmul.f32 %v2602, 1.442695
  %v2609 = vpow.pop %v2608
  %v2610 = vmul.f32 %v2603, 1.442695
  %v2611 = vpow.pop %v2610
  %v2612 = vadd.f32 %v2605, 1.0
  %v2613 = vadd.f32 %v2607, 1.0
  %v2614 = vadd.f32 %v2609, 1.0
  %v2615 = vadd.f32 %v2611, 1.0
  %v2616 = vrcp.pop %v2612
  %v2617 = vmul.f32 1.0, %v2616
  %v2618 = vrcp.pop %v2613
  %v2619 = vmul.f32 1.0, %v2618
  %v2620 = vrcp.pop %v2614
  %v2621 = vmul.f32 1.0, %v2620
  %v2622 = vrcp.pop %v2615
  %v2623 = vmul.f32 1.0, %v2622
  %2628 = vrot.lane.b32.xlu0 %v2578, 64
  %v2629 = vpop.permute.xlu0 %2628
  %2630 = vrot.lane.b32.xlu0 %v2583, 64
  %v2631 = vpop.permute.xlu0 %2630
  %2632 = vrot.lane.b32.xlu0 %v2588, 64
  %v2633 = vpop.permute.xlu0 %2632
  %2634 = vrot.lane.b32.xlu0 %v2593, 64
  %v2635 = vpop.permute.xlu0 %2634
  %v2640 = vmul.f32 %v2617, %v2629
  %v2641 = vmul.f32 %v2619, %v2631
  %v2642 = vmul.f32 %v2621, %v2633
  %v2643 = vmul.f32 %v2623, %v2635
  %2648 = vrot.lane.b32.xlu0 %v2640, 64
  %v2649 = vpop.permute.xlu0 %2648
  %2650 = vrot.lane.b32.xlu0 %v2641, 64
  %v2651 = vpop.permute.xlu0 %2650
  %2652 = vrot.lane.b32.xlu0 %v2642, 64
  %v2653 = vpop.permute.xlu0 %2652
  %2654 = vrot.lane.b32.xlu0 %v2643, 64
  %v2655 = vpop.permute.xlu0 %2654
  %v2660 = vadd.f32 %v2260, %v2649
  %v2661 = vadd.f32 %v2265, %v2651
  %v2662 = vadd.f32 %v2270, %v2653
  %v2663 = vadd.f32 %v2275, %v2655
  %v2664 = vtanh.pop %v2660
  %v2665 = vtanh.pop %v2661
  %v2666 = vtanh.pop %v2662
  %v2667 = vtanh.pop %v2663
  %v2668 = vsub.f32 1.0, %v2617
  %v2669 = vsub.f32 1.0, %v2619
  %v2670 = vsub.f32 1.0, %v2621
  %v2671 = vsub.f32 1.0, %v2623
  %2676 = vrot.lane.b32.xlu0 %v2664, 96
  %v2677 = vpop.permute.xlu0 %2676
  %2678 = vrot.lane.b32.xlu0 %v2665, 96
  %v2679 = vpop.permute.xlu0 %2678
  %2680 = vrot.lane.b32.xlu0 %v2666, 96
  %v2681 = vpop.permute.xlu0 %2680
  %2682 = vrot.lane.b32.xlu0 %v2667, 96
  %v2683 = vpop.permute.xlu0 %2682
  %v2688 = vmul.f32 %v2668, %v2677
  %v2689 = vmul.f32 %v2669, %v2679
  %v2690 = vmul.f32 %v2670, %v2681
  %v2691 = vmul.f32 %v2671, %v2683
  %v2692 = vmul.f32 %v2617, %v2487
  %v2693 = vmul.f32 %v2619, %v2488
  %v2694 = vmul.f32 %v2621, %v2489
  %v2695 = vmul.f32 %v2623, %v2490
  %v2696 = vadd.f32 %v2688, %v2692
  %v2697 = vadd.f32 %v2689, %v2693
  %v2698 = vadd.f32 %v2690, %v2694
  %v2699 = vadd.f32 %v2691, %v2695
  %2704 = vrot.lane.b32.xlu0 %v2696, 96
  %v2705 = vpop.permute.xlu0 %2704
  %2706 = vrot.lane.b32.xlu0 %v2697, 96
  %v2707 = vpop.permute.xlu0 %2706
  %2708 = vrot.lane.b32.xlu0 %v2698, 96
  %v2709 = vpop.permute.xlu0 %2708
  %2710 = vrot.lane.b32.xlu0 %v2699, 96
  %v2711 = vpop.permute.xlu0 %2710
  %v2712 = vsel %vm674, %v2705, 0
  %v2714 = vsel %vm674, %v2707, 0
  %v2716 = vsel %vm674, %v2709, 0
  %v2718 = vsel %vm674, %v2711, 0
  %2720 = vmatprep.subr.mxu0 0.0
  %2721 = vmatpush1.msra.mxu0 %v2163
  %2722 = vmatprep.subr.mxu0 0.0
  %2723 = vmatpush1.msra.mxu0 %v2164
  %2724 = vmatprep.subr.mxu0 0.0
  %2725 = vmatpush1.msra.mxu0 %v2165
  %2726 = vmatprep.subr.mxu0 0.0
  %2727 = vmatpush1.msra.mxu0 %v2166
  %2728 = vmatprep.subr.mxu0 0.0
  %2729 = vmatpush1.msra.mxu0 0.0
  %2730 = vmatprep.subr.mxu0 0.0
  %2731 = vmatpush1.msra.mxu0 0.0
  %2732 = vmatprep.subr.mxu0 0.0
  %2733 = vmatpush1.msra.mxu0 0.0
  %2734 = vmatprep.subr.mxu0 0.0
  %2735 = vmatpush1.msra.mxu0 0.0
  %2736 = vmatprep.subr.mxu0 0.0
  %2737 = vmatpush1.msra.mxu0 0.0
  %2738 = vmatprep.subr.mxu0 0.0
  %2739 = vmatpush1.msra.mxu0 0.0
  %2740 = vmatprep.subr.mxu0 0.0
  %2741 = vmatpush1.msra.mxu0 0.0
  %2742 = vmatprep.subr.mxu0 0.0
  %2743 = vmatpush1.msra.mxu0 0.0
  %2744 = vmatprep.subr.mxu0 0.0
  %2745 = vmatpush1.msra.mxu0 0.0
  %2746 = vmatprep.subr.mxu0 0.0
  %2747 = vmatpush1.msra.mxu0 0.0
  %2748 = vmatprep.subr.mxu0 0.0
  %2749 = vmatpush1.msra.mxu0 0.0
  %2750 = vmatprep.subr.mxu0 0.0
  %2751 = vmatpush1.msra.mxu0 0.0
  %2752 = vmatprep.subr.mxu0 0.0
  %2753 = vmatpush1.msra.mxu0 0.0
  %2754 = vmatprep.subr.mxu0 0.0
  %2755 = vmatpush1.msra.mxu0 0.0
  %2756 = vmatprep.subr.mxu0 0.0
  %2757 = vmatpush1.msra.mxu0 0.0
  %2758 = vmatprep.subr.mxu0 0.0
  %2759 = vmatpush1.msra.mxu0 0.0
  %2760 = vmatprep.subr.mxu0 0.0
  %2761 = vmatpush1.msra.mxu0 0.0
  %2762 = vmatprep.subr.mxu0 0.0
  %2763 = vmatpush1.msra.mxu0 0.0
  %2764 = vmatprep.subr.mxu0 0.0
  %2765 = vmatpush1.msra.mxu0 0.0
  %2766 = vmatprep.subr.mxu0 0.0
  %2767 = vmatpush1.msra.mxu0 0.0
  %2768 = vmatprep.subr.mxu0 0.0
  %2769 = vmatpush1.msra.mxu0 0.0
  %2770 = vmatprep.subr.mxu0 0.0
  %2771 = vmatpush1.msra.mxu0 0.0
  %2772 = vmatprep.subr.mxu0 0.0
  %2773 = vmatpush1.msra.mxu0 0.0
  %2774 = vmatprep.subr.mxu0 0.0
  %2775 = vmatpush1.msra.mxu0 0.0
  %2776 = vmatprep.subr.mxu0 0.0
  %2777 = vmatpush1.msra.mxu0 0.0
  %2778 = vmatprep.subr.mxu0 0.0
  %2779 = vmatpush1.msra.mxu0 0.0
  %2780 = vmatprep.subr.mxu0 0.0
  %2781 = vmatpush1.msra.mxu0 0.0
  %2782 = vmatprep.subr.mxu0 0.0
  %2783 = vmatpush1.msra.mxu0 0.0
  %2784 = vmatprep.mubr.f32.mxu0 0.0
  %2785 = vmatmul.mubr.f32.gmra.mrb[0].mxu0 %v2712
  %v2786 = vpop.f32.mrb[0].mxu0
  %v2787 = vadd.f32 %v2301, %v2786
  %v2788 = vpop.f32.mrb[0].mxu0
  %2789 = vmatprep.mubr.f32.mxu0 0.0
  %2790 = vmatmul.mubr.f32.gmra.mrb[0].mxu0 %v2714
  %v2791 = vpop.f32.mrb[0].mxu0
  %v2792 = vadd.f32 %v2301, %v2791
  %v2793 = vpop.f32.mrb[0].mxu0
  %2794 = vmatprep.mubr.f32.mxu0 0.0
  %2795 = vmatmul.mubr.f32.gmra.mrb[0].mxu0 %v2716
  %v2796 = vpop.f32.mrb[0].mxu0
  %v2797 = vadd.f32 %v2301, %v2796
  %v2798 = vpop.f32.mrb[0].mxu0
  %2799 = vmatprep.mubr.f32.mxu0 0.0
  %2800 = vmatmul.mubr.f32.gmra.mrb[0].mxu0 %v2718
  %v2801 = vpop.f32.mrb[0].mxu0
  %v2802 = vadd.f32 %v2301, %v2801
  %v2803 = vpop.f32.mrb[0].mxu0
  %2804 = vdwg.mxu0
  %v2805 = vadd.f32 %v2280, %v2787
  %v2806 = vadd.f32 %v2285, %v2792
  %v2807 = vadd.f32 %v2290, %v2797
  %v2808 = vadd.f32 %v2295, %v2802
  %v2809 = vxor.u32 %v2805, 2147483648
  %v2810 = vxor.u32 %v2806, 2147483648
  %v2811 = vxor.u32 %v2807, 2147483648
  %v2812 = vxor.u32 %v2808, 2147483648
  %v2813 = vmul.f32 %v2809, 1.442695
  %v2814 = vpow.pop %v2813
  %v2815 = vmul.f32 %v2810, 1.442695
  %v2816 = vpow.pop %v2815
  %v2817 = vmul.f32 %v2811, 1.442695
  %v2818 = vpow.pop %v2817
  %v2819 = vmul.f32 %v2812, 1.442695
  %v2820 = vpow.pop %v2819
  %v2821 = vadd.f32 %v2814, 1.0
  %v2822 = vadd.f32 %v2816, 1.0
  %v2823 = vadd.f32 %v2818, 1.0
  %v2824 = vadd.f32 %v2820, 1.0
  %v2825 = vrcp.pop %v2821
  %v2826 = vmul.f32 1.0, %v2825
  %v2827 = vrcp.pop %v2822
  %v2828 = vmul.f32 1.0, %v2827
  %v2829 = vrcp.pop %v2823
  %v2830 = vmul.f32 1.0, %v2829
  %v2831 = vrcp.pop %v2824
  %v2832 = vmul.f32 1.0, %v2831
  %2837 = vrot.lane.b32.xlu0 %v2787, 64
  %v2838 = vpop.permute.xlu0 %2837
  %2839 = vrot.lane.b32.xlu0 %v2792, 64
  %v2840 = vpop.permute.xlu0 %2839
  %2841 = vrot.lane.b32.xlu0 %v2797, 64
  %v2842 = vpop.permute.xlu0 %2841
  %2843 = vrot.lane.b32.xlu0 %v2802, 64
  %v2844 = vpop.permute.xlu0 %2843
  %v2849 = vmul.f32 %v2826, %v2838
  %v2850 = vmul.f32 %v2828, %v2840
  %v2851 = vmul.f32 %v2830, %v2842
  %v2852 = vmul.f32 %v2832, %v2844
  %2857 = vrot.lane.b32.xlu0 %v2849, 64
  %v2858 = vpop.permute.xlu0 %2857
  %2859 = vrot.lane.b32.xlu0 %v2850, 64
  %v2860 = vpop.permute.xlu0 %2859
  %2861 = vrot.lane.b32.xlu0 %v2851, 64
  %v2862 = vpop.permute.xlu0 %2861
  %2863 = vrot.lane.b32.xlu0 %v2852, 64
  %v2864 = vpop.permute.xlu0 %2863
  %v2869 = vadd.f32 %v2280, %v2858
  %v2870 = vadd.f32 %v2285, %v2860
  %v2871 = vadd.f32 %v2290, %v2862
  %v2872 = vadd.f32 %v2295, %v2864
  %v2873 = vtanh.pop %v2869
  %v2874 = vtanh.pop %v2870
  %v2875 = vtanh.pop %v2871
  %v2876 = vtanh.pop %v2872
  %v2877 = vsub.f32 1.0, %v2826
  %v2878 = vsub.f32 1.0, %v2828
  %v2879 = vsub.f32 1.0, %v2830
  %v2880 = vsub.f32 1.0, %v2832
  %2885 = vrot.lane.b32.xlu0 %v2873, 96
  %v2886 = vpop.permute.xlu0 %2885
  %2887 = vrot.lane.b32.xlu0 %v2874, 96
  %v2888 = vpop.permute.xlu0 %2887
  %2889 = vrot.lane.b32.xlu0 %v2875, 96
  %v2890 = vpop.permute.xlu0 %2889
  %2891 = vrot.lane.b32.xlu0 %v2876, 96
  %v2892 = vpop.permute.xlu0 %2891
  %v2897 = vmul.f32 %v2877, %v2886
  %v2898 = vmul.f32 %v2878, %v2888
  %v2899 = vmul.f32 %v2879, %v2890
  %v2900 = vmul.f32 %v2880, %v2892
  %v2901 = vmul.f32 %v2826, %v2696
  %v2902 = vmul.f32 %v2828, %v2697
  %v2903 = vmul.f32 %v2830, %v2698
  %v2904 = vmul.f32 %v2832, %v2699
  %v2905 = vadd.f32 %v2897, %v2901
  %v2906 = vadd.f32 %v2898, %v2902
  %v2907 = vadd.f32 %v2899, %v2903
  %v2908 = vadd.f32 %v2900, %v2904
  %v2909 = vld [vmem:[%s2 + $0x20] sm:$0xff]
  %v2910 = vld [vmem:[%s2 + $0x28] sm:$0xff]
  %v2911 = vld [vmem:[%s2 + $0x30] sm:$0xff]
  %v2912 = vld [vmem:[%s2 + $0x38] sm:$0xff]
  %v2913 = vld [vmem:[%s2 + $0x101] sm:$0x1]
  %v2914 = vlaneseq
  %v2915 = vshrl.u32 %v2914, 7
  %v2916 = vsub.s32 0, %v2915
  %v2917 = vrot.slane %v2913, %v2916
  %2919 = vrot.lane.b32.xlu0 %v2158, 96
  %v2920 = vpop.permute.xlu0 %2919
  %v2921 = vsel %vm674, %v2920, 0
  %2923 = vmatprep.subr.mxu0 0.0
  %2924 = vmatpush1.msra.mxu0 %v2909
  %2925 = vmatprep.subr.mxu0 0.0
  %2926 = vmatpush1.msra.mxu0 %v2910
  %2927 = vmatprep.subr.mxu0 0.0
  %2928 = vmatpush1.msra.mxu0 %v2911
  %2929 = vmatprep.subr.mxu0 0.0
  %2930 = vmatpush1.msra.mxu0 %v2912
  %2931 = vmatprep.subr.mxu0 0.0
  %2932 = vmatpush1.msra.mxu0 0.0
  %2933 = vmatprep.subr.mxu0 0.0
  %2934 = vmatpush1.msra.mxu0 0.0
  %2935 = vmatprep.subr.mxu0 0.0
  %2936 = vmatpush1.msra.mxu0 0.0
  %2937 = vmatprep.subr.mxu0 0.0
  %2938 = vmatpush1.msra.mxu0 0.0
  %2939 = vmatprep.subr.mxu0 0.0
  %2940 = vmatpush1.msra.mxu0 0.0
  %2941 = vmatprep.subr.mxu0 0.0
  %2942 = vmatpush1.msra.mxu0 0.0
  %2943 = vmatprep.subr.mxu0 0.0
  %2944 = vmatpush1.msra.mxu0 0.0
  %2945 = vmatprep.subr.mxu0 0.0
  %2946 = vmatpush1.msra.mxu0 0.0
  %2947 = vmatprep.subr.mxu0 0.0
  %2948 = vmatpush1.msra.mxu0 0.0
  %2949 = vmatprep.subr.mxu0 0.0
  %2950 = vmatpush1.msra.mxu0 0.0
  %2951 = vmatprep.subr.mxu0 0.0
  %2952 = vmatpush1.msra.mxu0 0.0
  %2953 = vmatprep.subr.mxu0 0.0
  %2954 = vmatpush1.msra.mxu0 0.0
  %2955 = vmatprep.subr.mxu0 0.0
  %2956 = vmatpush1.msra.mxu0 0.0
  %2957 = vmatprep.subr.mxu0 0.0
  %2958 = vmatpush1.msra.mxu0 0.0
  %2959 = vmatprep.subr.mxu0 0.0
  %2960 = vmatpush1.msra.mxu0 0.0
  %2961 = vmatprep.subr.mxu0 0.0
  %2962 = vmatpush1.msra.mxu0 0.0
  %2963 = vmatprep.subr.mxu0 0.0
  %2964 = vmatpush1.msra.mxu0 0.0
  %2965 = vmatprep.subr.mxu0 0.0
  %2966 = vmatpush1.msra.mxu0 0.0
  %2967 = vmatprep.subr.mxu0 0.0
  %2968 = vmatpush1.msra.mxu0 0.0
  %2969 = vmatprep.subr.mxu0 0.0
  %2970 = vmatpush1.msra.mxu0 0.0
  %2971 = vmatprep.subr.mxu0 0.0
  %2972 = vmatpush1.msra.mxu0 0.0
  %2973 = vmatprep.subr.mxu0 0.0
  %2974 = vmatpush1.msra.mxu0 0.0
  %2975 = vmatprep.subr.mxu0 0.0
  %2976 = vmatpush1.msra.mxu0 0.0
  %2977 = vmatprep.subr.mxu0 0.0
  %2978 = vmatpush1.msra.mxu0 0.0
  %2979 = vmatprep.subr.mxu0 0.0
  %2980 = vmatpush1.msra.mxu0 0.0
  %2981 = vmatprep.subr.mxu0 0.0
  %2982 = vmatpush1.msra.mxu0 0.0
  %2983 = vmatprep.subr.mxu0 0.0
  %2984 = vmatpush1.msra.mxu0 0.0
  %2985 = vmatprep.subr.mxu0 0.0
  %2986 = vmatpush1.msra.mxu0 0.0
  %2987 = vmatprep.mubr.f32.mxu0 0.0
  %2988 = vmatmul.mubr.f32.gmra.mrb[0].mxu0 %v2921
  %v2989 = vpop.f32.mrb[0].mxu0
  %v2990 = vadd.f32 %v2917, %v2989
  %v2991 = vpop.f32.mrb[0].mxu0
  %2992 = vdwg.mxu0
  %v2993 = vld [vmem:[%s2 + $0x40] sm:$0xff]
  %v2994 = vld [vmem:[%s2 + $0x48] sm:$0xff]
  %v2995 = vld [vmem:[%s2 + $0x50] sm:$0xff]
  %v2996 = vld [vmem:[%s2 + $0x58] sm:$0xff]
  %2998 = vrot.lane.b32.xlu0 %v2905, 96
  %v2999 = vpop.permute.xlu0 %2998
  %v3000 = vsel %vm674, %v2999, 0
  %3002 = vmatprep.subr.mxu0 0.0
  %3003 = vmatpush1.msra.mxu0 %v2993
  %3004 = vmatprep.subr.mxu0 0.0
  %3005 = vmatpush1.msra.mxu0 %v2994
  %3006 = vmatprep.subr.mxu0 0.0
  %3007 = vmatpush1.msra.mxu0 %v2995
  %3008 = vmatprep.subr.mxu0 0.0
  %3009 = vmatpush1.msra.mxu0 %v2996
  %3010 = vmatprep.subr.mxu0 0.0
  %3011 = vmatpush1.msra.mxu0 0.0
  %3012 = vmatprep.subr.mxu0 0.0
  %3013 = vmatpush1.msra.mxu0 0.0
  %3014 = vmatprep.subr.mxu0 0.0
  %3015 = vmatpush1.msra.mxu0 0.0
  %3016 = vmatprep.subr.mxu0 0.0
  %3017 = vmatpush1.msra.mxu0 0.0
  %3018 = vmatprep.subr.mxu0 0.0
  %3019 = vmatpush1.msra.mxu0 0.0
  %3020 = vmatprep.subr.mxu0 0.0
  %3021 = vmatpush1.msra.mxu0 0.0
  %3022 = vmatprep.subr.mxu0 0.0
  %3023 = vmatpush1.msra.mxu0 0.0
  %3024 = vmatprep.subr.mxu0 0.0
  %3025 = vmatpush1.msra.mxu0 0.0
  %3026 = vmatprep.subr.mxu0 0.0
  %3027 = vmatpush1.msra.mxu0 0.0
  %3028 = vmatprep.subr.mxu0 0.0
  %3029 = vmatpush1.msra.mxu0 0.0
  %3030 = vmatprep.subr.mxu0 0.0
  %3031 = vmatpush1.msra.mxu0 0.0
  %3032 = vmatprep.subr.mxu0 0.0
  %3033 = vmatpush1.msra.mxu0 0.0
  %3034 = vmatprep.subr.mxu0 0.0
  %3035 = vmatpush1.msra.mxu0 0.0
  %3036 = vmatprep.subr.mxu0 0.0
  %3037 = vmatpush1.msra.mxu0 0.0
  %3038 = vmatprep.subr.mxu0 0.0
  %3039 = vmatpush1.msra.mxu0 0.0
  %3040 = vmatprep.subr.mxu0 0.0
  %3041 = vmatpush1.msra.mxu0 0.0
  %3042 = vmatprep.subr.mxu0 0.0
  %3043 = vmatpush1.msra.mxu0 0.0
  %3044 = vmatprep.subr.mxu0 0.0
  %3045 = vmatpush1.msra.mxu0 0.0
  %3046 = vmatprep.subr.mxu0 0.0
  %3047 = vmatpush1.msra.mxu0 0.0
  %3048 = vmatprep.subr.mxu0 0.0
  %3049 = vmatpush1.msra.mxu0 0.0
  %3050 = vmatprep.subr.mxu0 0.0
  %3051 = vmatpush1.msra.mxu0 0.0
  %3052 = vmatprep.subr.mxu0 0.0
  %3053 = vmatpush1.msra.mxu0 0.0
  %3054 = vmatprep.subr.mxu0 0.0
  %3055 = vmatpush1.msra.mxu0 0.0
  %3056 = vmatprep.subr.mxu0 0.0
  %3057 = vmatpush1.msra.mxu0 0.0
  %3058 = vmatprep.subr.mxu0 0.0
  %3059 = vmatpush1.msra.mxu0 0.0
  %3060 = vmatprep.subr.mxu0 0.0
  %3061 = vmatpush1.msra.mxu0 0.0
  %3062 = vmatprep.subr.mxu0 0.0
  %3063 = vmatpush1.msra.mxu0 0.0
  %3064 = vmatprep.subr.mxu0 0.0
  %3065 = vmatpush1.msra.mxu0 0.0
  %3066 = vmatprep.mubr.f32.mxu0 0.0
  %3067 = vmatmul.mubr.f32.gmra.mrb[0].mxu0 %v3000
  %v3068 = vpop.f32.mrb[0].mxu0
  %v3069 = vadd.f32 0.0, %v3068
  %v3070 = vpop.f32.mrb[0].mxu0
  %3071 = vdwg.mxu0
  %v3072 = vadd.f32 %v2990, %v3069
  %v3073 = vld [vmem:[%s2 + $0x60] sm:$0xff]
  %v3074 = vld [vmem:[%s2 + $0x68] sm:$0xff]
  %v3075 = vld [vmem:[%s2 + $0x70] sm:$0xff]
  %v3076 = vld [vmem:[%s2 + $0x78] sm:$0xff]
  %3078 = vrot.lane.b32.xlu0 %v2906, 96
  %v3079 = vpop.permute.xlu0 %3078
  %v3080 = vsel %vm674, %v3079, 0
  %3082 = vmatprep.subr.mxu0 0.0
  %3083 = vmatpush1.msra.mxu0 %v3073
  %3084 = vmatprep.subr.mxu0 0.0
  %3085 = vmatpush1.msra.mxu0 %v3074
  %3086 = vmatprep.subr.mxu0 0.0
  %3087 = vmatpush1.msra.mxu0 %v3075
  %3088 = vmatprep.subr.mxu0 0.0
  %3089 = vmatpush1.msra.mxu0 %v3076
  %3090 = vmatprep.subr.mxu0 0.0
  %3091 = vmatpush1.msra.mxu0 0.0
  %3092 = vmatprep.subr.mxu0 0.0
  %3093 = vmatpush1.msra.mxu0 0.0
  %3094 = vmatprep.subr.mxu0 0.0
  %3095 = vmatpush1.msra.mxu0 0.0
  %3096 = vmatprep.subr.mxu0 0.0
  %3097 = vmatpush1.msra.mxu0 0.0
  %3098 = vmatprep.subr.mxu0 0.0
  %3099 = vmatpush1.msra.mxu0 0.0
  %3100 = vmatprep.subr.mxu0 0.0
  %3101 = vmatpush1.msra.mxu0 0.0
  %3102 = vmatprep.subr.mxu0 0.0
  %3103 = vmatpush1.msra.mxu0 0.0
  %3104 = vmatprep.subr.mxu0 0.0
  %3105 = vmatpush1.msra.mxu0 0.0
  %3106 = vmatprep.subr.mxu0 0.0
  %3107 = vmatpush1.msra.mxu0 0.0
  %3108 = vmatprep.subr.mxu0 0.0
  %3109 = vmatpush1.msra.mxu0 0.0
  %3110 = vmatprep.subr.mxu0 0.0
  %3111 = vmatpush1.msra.mxu0 0.0
  %3112 = vmatprep.subr.mxu0 0.0
  %3113 = vmatpush1.msra.mxu0 0.0
  %3114 = vmatprep.subr.mxu0 0.0
  %3115 = vmatpush1.msra.mxu0 0.0
  %3116 = vmatprep.subr.mxu0 0.0
  %3117 = vmatpush1.msra.mxu0 0.0
  %3118 = vmatprep.subr.mxu0 0.0
  %3119 = vmatpush1.msra.mxu0 0.0
  %3120 = vmatprep.subr.mxu0 0.0
  %3121 = vmatpush1.msra.mxu0 0.0
  %3122 = vmatprep.subr.mxu0 0.0
  %3123 = vmatpush1.msra.mxu0 0.0
  %3124 = vmatprep.subr.mxu0 0.0
  %3125 = vmatpush1.msra.mxu0 0.0
  %3126 = vmatprep.subr.mxu0 0.0
  %3127 = vmatpush1.msra.mxu0 0.0
  %3128 = vmatprep.subr.mxu0 0.0
  %3129 = vmatpush1.msra.mxu0 0.0
  %3130 = vmatprep.subr.mxu0 0.0
  %3131 = vmatpush1.msra.mxu0 0.0
  %3132 = vmatprep.subr.mxu0 0.0
  %3133 = vmatpush1.msra.mxu0 0.0
  %3134 = vmatprep.subr.mxu0 0.0
  %3135 = vmatpush1.msra.mxu0 0.0
  %3136 = vmatprep.subr.mxu0 0.0
  %3137 = vmatpush1.msra.mxu0 0.0
  %3138 = vmatprep.subr.mxu0 0.0
  %3139 = vmatpush1.msra.mxu0 0.0
  %3140 = vmatprep.subr.mxu0 0.0
  %3141 = vmatpush1.msra.mxu0 0.0
  %3142 = vmatprep.subr.mxu0 0.0
  %3143 = vmatpush1.msra.mxu0 0.0
  %3144 = vmatprep.subr.mxu0 0.0
  %3145 = vmatpush1.msra.mxu0 0.0
  %3146 = vmatprep.mubr.f32.mxu0 0.0
  %3147 = vmatmul.mubr.f32.gmra.mrb[0].mxu0 %v3080
  %v3148 = vpop.f32.mrb[0].mxu0
  %v3149 = vadd.f32 0.0, %v3148
  %v3150 = vpop.f32.mrb[0].mxu0
  %3151 = vdwg.mxu0
  %v3152 = vadd.f32 %v3072, %v3149
  %v3153 = vld [vmem:[%s2 + $0x80] sm:$0xff]
  %v3154 = vld [vmem:[%s2 + $0x88] sm:$0xff]
  %v3155 = vld [vmem:[%s2 + $0x90] sm:$0xff]
  %v3156 = vld [vmem:[%s2 + $0x98] sm:$0xff]
  %3158 = vrot.lane.b32.xlu0 %v2907, 96
  %v3159 = vpop.permute.xlu0 %3158
  %v3160 = vsel %vm674, %v3159, 0
  %3162 = vmatprep.subr.mxu0 0.0
  %3163 = vmatpush1.msra.mxu0 %v3153
  %3164 = vmatprep.subr.mxu0 0.0
  %3165 = vmatpush1.msra.mxu0 %v3154
  %3166 = vmatprep.subr.mxu0 0.0
  %3167 = vmatpush1.msra.mxu0 %v3155
  %3168 = vmatprep.subr.mxu0 0.0
  %3169 = vmatpush1.msra.mxu0 %v3156
  %3170 = vmatprep.subr.mxu0 0.0
  %3171 = vmatpush1.msra.mxu0 0.0
  %3172 = vmatprep.subr.mxu0 0.0
  %3173 = vmatpush1.msra.mxu0 0.0
  %3174 = vmatprep.subr.mxu0 0.0
  %3175 = vmatpush1.msra.mxu0 0.0
  %3176 = vmatprep.subr.mxu0 0.0
  %3177 = vmatpush1.msra.mxu0 0.0
  %3178 = vmatprep.subr.mxu0 0.0
  %3179 = vmatpush1.msra.mxu0 0.0
  %3180 = vmatprep.subr.mxu0 0.0
  %3181 = vmatpush1.msra.mxu0 0.0
  %3182 = vmatprep.subr.mxu0 0.0
  %3183 = vmatpush1.msra.mxu0 0.0
  %3184 = vmatprep.subr.mxu0 0.0
  %3185 = vmatpush1.msra.mxu0 0.0
  %3186 = vmatprep.subr.mxu0 0.0
  %3187 = vmatpush1.msra.mxu0 0.0
  %3188 = vmatprep.subr.mxu0 0.0
  %3189 = vmatpush1.msra.mxu0 0.0
  %3190 = vmatprep.subr.mxu0 0.0
  %3191 = vmatpush1.msra.mxu0 0.0
  %3192 = vmatprep.subr.mxu0 0.0
  %3193 = vmatpush1.msra.mxu0 0.0
  %3194 = vmatprep.subr.mxu0 0.0
  %3195 = vmatpush1.msra.mxu0 0.0
  %3196 = vmatprep.subr.mxu0 0.0
  %3197 = vmatpush1.msra.mxu0 0.0
  %3198 = vmatprep.subr.mxu0 0.0
  %3199 = vmatpush1.msra.mxu0 0.0
  %3200 = vmatprep.subr.mxu0 0.0
  %3201 = vmatpush1.msra.mxu0 0.0
  %3202 = vmatprep.subr.mxu0 0.0
  %3203 = vmatpush1.msra.mxu0 0.0
  %3204 = vmatprep.subr.mxu0 0.0
  %3205 = vmatpush1.msra.mxu0 0.0
  %3206 = vmatprep.subr.mxu0 0.0
  %3207 = vmatpush1.msra.mxu0 0.0
  %3208 = vmatprep.subr.mxu0 0.0
  %3209 = vmatpush1.msra.mxu0 0.0
  %3210 = vmatprep.subr.mxu0 0.0
  %3211 = vmatpush1.msra.mxu0 0.0
  %3212 = vmatprep.subr.mxu0 0.0
  %3213 = vmatpush1.msra.mxu0 0.0
  %3214 = vmatprep.subr.mxu0 0.0
  %3215 = vmatpush1.msra.mxu0 0.0
  %3216 = vmatprep.subr.mxu0 0.0
  %3217 = vmatpush1.msra.mxu0 0.0
  %3218 = vmatprep.subr.mxu0 0.0
  %3219 = vmatpush1.msra.mxu0 0.0
  %3220 = vmatprep.subr.mxu0 0.0
  %3221 = vmatpush1.msra.mxu0 0.0
  %3222 = vmatprep.subr.mxu0 0.0
  %3223 = vmatpush1.msra.mxu0 0.0
  %3224 = vmatprep.subr.mxu0 0.0
  %3225 = vmatpush1.msra.mxu0 0.0
  %3226 = vmatprep.mubr.f32.mxu0 0.0
  %3227 = vmatmul.mubr.f32.gmra.mrb[0].mxu0 %v3160
  %v3228 = vpop.f32.mrb[0].mxu0
  %v3229 = vadd.f32 0.0, %v3228
  %v3230 = vpop.f32.mrb[0].mxu0
  %3231 = vdwg.mxu0
  %v3232 = vadd.f32 %v3152, %v3229
  %v3233 = vld [vmem:[%s2 + $0xa0] sm:$0xff]
  %v3234 = vld [vmem:[%s2 + $0xa8] sm:$0xff]
  %v3235 = vld [vmem:[%s2 + $0xb0] sm:$0xff]
  %v3236 = vld [vmem:[%s2 + $0xb8] sm:$0xff]
  %3238 = vrot.lane.b32.xlu0 %v2908, 96
  %v3239 = vpop.permute.xlu0 %3238
  %v3240 = vsel %vm674, %v3239, 0
  %3242 = vmatprep.subr.mxu0 0.0
  %3243 = vmatpush1.msra.mxu0 %v3233
  %3244 = vmatprep.subr.mxu0 0.0
  %3245 = vmatpush1.msra.mxu0 %v3234
  %3246 = vmatprep.subr.mxu0 0.0
  %3247 = vmatpush1.msra.mxu0 %v3235
  %3248 = vmatprep.subr.mxu0 0.0
  %3249 = vmatpush1.msra.mxu0 %v3236
  %3250 = vmatprep.subr.mxu0 0.0
  %3251 = vmatpush1.msra.mxu0 0.0
  %3252 = vmatprep.subr.mxu0 0.0
  %3253 = vmatpush1.msra.mxu0 0.0
  %3254 = vmatprep.subr.mxu0 0.0
  %3255 = vmatpush1.msra.mxu0 0.0
  %3256 = vmatprep.subr.mxu0 0.0
  %3257 = vmatpush1.msra.mxu0 0.0
  %3258 = vmatprep.subr.mxu0 0.0
  %3259 = vmatpush1.msra.mxu0 0.0
  %3260 = vmatprep.subr.mxu0 0.0
  %3261 = vmatpush1.msra.mxu0 0.0
  %3262 = vmatprep.subr.mxu0 0.0
  %3263 = vmatpush1.msra.mxu0 0.0
  %3264 = vmatprep.subr.mxu0 0.0
  %3265 = vmatpush1.msra.mxu0 0.0
  %3266 = vmatprep.subr.mxu0 0.0
  %3267 = vmatpush1.msra.mxu0 0.0
  %3268 = vmatprep.subr.mxu0 0.0
  %3269 = vmatpush1.msra.mxu0 0.0
  %3270 = vmatprep.subr.mxu0 0.0
  %3271 = vmatpush1.msra.mxu0 0.0
  %3272 = vmatprep.subr.mxu0 0.0
  %3273 = vmatpush1.msra.mxu0 0.0
  %3274 = vmatprep.subr.mxu0 0.0
  %3275 = vmatpush1.msra.mxu0 0.0
  %3276 = vmatprep.subr.mxu0 0.0
  %3277 = vmatpush1.msra.mxu0 0.0
  %3278 = vmatprep.subr.mxu0 0.0
  %3279 = vmatpush1.msra.mxu0 0.0
  %3280 = vmatprep.subr.mxu0 0.0
  %3281 = vmatpush1.msra.mxu0 0.0
  %3282 = vmatprep.subr.mxu0 0.0
  %3283 = vmatpush1.msra.mxu0 0.0
  %3284 = vmatprep.subr.mxu0 0.0
  %3285 = vmatpush1.msra.mxu0 0.0
  %3286 = vmatprep.subr.mxu0 0.0
  %3287 = vmatpush1.msra.mxu0 0.0
  %3288 = vmatprep.subr.mxu0 0.0
  %3289 = vmatpush1.msra.mxu0 0.0
  %3290 = vmatprep.subr.mxu0 0.0
  %3291 = vmatpush1.msra.mxu0 0.0
  %3292 = vmatprep.subr.mxu0 0.0
  %3293 = vmatpush1.msra.mxu0 0.0
  %3294 = vmatprep.subr.mxu0 0.0
  %3295 = vmatpush1.msra.mxu0 0.0
  %3296 = vmatprep.subr.mxu0 0.0
  %3297 = vmatpush1.msra.mxu0 0.0
  %3298 = vmatprep.subr.mxu0 0.0
  %3299 = vmatpush1.msra.mxu0 0.0
  %3300 = vmatprep.subr.mxu0 0.0
  %3301 = vmatpush1.msra.mxu0 0.0
  %3302 = vmatprep.subr.mxu0 0.0
  %3303 = vmatpush1.msra.mxu0 0.0
  %3304 = vmatprep.subr.mxu0 0.0
  %3305 = vmatpush1.msra.mxu0 0.0
  %3306 = vmatprep.mubr.f32.mxu0 0.0
  %3307 = vmatmul.mubr.f32.gmra.mrb[0].mxu0 %v3240
  %v3308 = vpop.f32.mrb[0].mxu0
  %v3309 = vadd.f32 0.0, %v3308
  %v3310 = vpop.f32.mrb[0].mxu0
  %3311 = vdwg.mxu0
  %v3312 = vadd.f32 %v3232, %v3309
  %v3313 = vld [vmem:[%s2 + $0x102] sm:$0x1]
  %v3314 = vlaneseq
  %v3315 = vshrl.u32 %v3314, 7
  %v3316 = vsub.s32 0, %v3315
  %v3317 = vrot.slane %v3313, %v3316
  %v3318 = vadd.f32 %v3317, 0.0
  %v3319 = vld [vmem:[%s2 + $0xc0] sm:$0xff]
  %3320 = vmatprep.subr.mxu0 0.0
  %3321 = vmatpush1.msra.mxu0 %v3319
  %3322 = vmatprep.subr.mxu0 0.0
  %3323 = vmatpush1.msra.mxu0 0.0
  %3324 = vmatprep.subr.mxu0 0.0
  %3325 = vmatpush1.msra.mxu0 0.0
  %3326 = vmatprep.subr.mxu0 0.0
  %3327 = vmatpush1.msra.mxu0 0.0
  %3328 = vmatprep.subr.mxu0 0.0
  %3329 = vmatpush1.msra.mxu0 0.0
  %3330 = vmatprep.subr.mxu0 0.0
  %3331 = vmatpush1.msra.mxu0 0.0
  %3332 = vmatprep.subr.mxu0 0.0
  %3333 = vmatpush1.msra.mxu0 0.0
  %3334 = vmatprep.subr.mxu0 0.0
  %3335 = vmatpush1.msra.mxu0 0.0
  %3336 = vmatprep.subr.mxu0 0.0
  %3337 = vmatpush1.msra.mxu0 0.0
  %3338 = vmatprep.subr.mxu0 0.0
  %3339 = vmatpush1.msra.mxu0 0.0
  %3340 = vmatprep.subr.mxu0 0.0
  %3341 = vmatpush1.msra.mxu0 0.0
  %3342 = vmatprep.subr.mxu0 0.0
  %3343 = vmatpush1.msra.mxu0 0.0
  %3344 = vmatprep.subr.mxu0 0.0
  %3345 = vmatpush1.msra.mxu0 0.0
  %3346 = vmatprep.subr.mxu0 0.0
  %3347 = vmatpush1.msra.mxu0 0.0
  %3348 = vmatprep.subr.mxu0 0.0
  %3349 = vmatpush1.msra.mxu0 0.0
  %3350 = vmatprep.subr.mxu0 0.0
  %3351 = vmatpush1.msra.mxu0 0.0
  %3352 = vmatprep.subr.mxu0 0.0
  %3353 = vmatpush1.msra.mxu0 0.0
  %3354 = vmatprep.subr.mxu0 0.0
  %3355 = vmatpush1.msra.mxu0 0.0
  %3356 = vmatprep.subr.mxu0 0.0
  %3357 = vmatpush1.msra.mxu0 0.0
  %3358 = vmatprep.subr.mxu0 0.0
  %3359 = vmatpush1.msra.mxu0 0.0
  %3360 = vmatprep.subr.mxu0 0.0
  %3361 = vmatpush1.msra.mxu0 0.0
  %3362 = vmatprep.subr.mxu0 0.0
  %3363 = vmatpush1.msra.mxu0 0.0
  %3364 = vmatprep.subr.mxu0 0.0
  %3365 = vmatpush1.msra.mxu0 0.0
  %3366 = vmatprep.subr.mxu0 0.0
  %3367 = vmatpush1.msra.mxu0 0.0
  %3368 = vmatprep.subr.mxu0 0.0
  %3369 = vmatpush1.msra.mxu0 0.0
  %3370 = vmatprep.subr.mxu0 0.0
  %3371 = vmatpush1.msra.mxu0 0.0
  %3372 = vmatprep.subr.mxu0 0.0
  %3373 = vmatpush1.msra.mxu0 0.0
  %3374 = vmatprep.subr.mxu0 0.0
  %3375 = vmatpush1.msra.mxu0 0.0
  %3376 = vmatprep.subr.mxu0 0.0
  %3377 = vmatpush1.msra.mxu0 0.0
  %3378 = vmatprep.subr.mxu0 0.0
  %3379 = vmatpush1.msra.mxu0 0.0
  %3380 = vmatprep.subr.mxu0 0.0
  %3381 = vmatpush1.msra.mxu0 0.0
  %3382 = vmatprep.subr.mxu0 0.0
  %3383 = vmatpush1.msra.mxu0 0.0
  %3384 = vmatprep.mubr.f32.mxu0 0.0
  %3385 = vmatmul.mubr.f32.gmra.mrb[0].mxu0 %v67
  %v3386 = vpop.f32.mrb[0].mxu0
  %v3387 = vadd.f32 0.0, %v3386
  %v3388 = vpop.f32.mrb[0].mxu0
  %3389 = vdwg.mxu0
  %v3390 = vadd.f32 %v3318, %v3387
  %v3391 = vld [vmem:[%s2 + $0xc8] sm:$0xff]
  %3392 = vmatprep.subr.mxu0 0.0
  %3393 = vmatpush1.msra.mxu0 %v3391
  %3394 = vmatprep.subr.mxu0 0.0
  %3395 = vmatpush1.msra.mxu0 0.0
  %3396 = vmatprep.subr.mxu0 0.0
  %3397 = vmatpush1.msra.mxu0 0.0
  %3398 = vmatprep.subr.mxu0 0.0
  %3399 = vmatpush1.msra.mxu0 0.0
  %3400 = vmatprep.subr.mxu0 0.0
  %3401 = vmatpush1.msra.mxu0 0.0
  %3402 = vmatprep.subr.mxu0 0.0
  %3403 = vmatpush1.msra.mxu0 0.0
  %3404 = vmatprep.subr.mxu0 0.0
  %3405 = vmatpush1.msra.mxu0 0.0
  %3406 = vmatprep.subr.mxu0 0.0
  %3407 = vmatpush1.msra.mxu0 0.0
  %3408 = vmatprep.subr.mxu0 0.0
  %3409 = vmatpush1.msra.mxu0 0.0
  %3410 = vmatprep.subr.mxu0 0.0
  %3411 = vmatpush1.msra.mxu0 0.0
  %3412 = vmatprep.subr.mxu0 0.0
  %3413 = vmatpush1.msra.mxu0 0.0
  %3414 = vmatprep.subr.mxu0 0.0
  %3415 = vmatpush1.msra.mxu0 0.0
  %3416 = vmatprep.subr.mxu0 0.0
  %3417 = vmatpush1.msra.mxu0 0.0
  %3418 = vmatprep.subr.mxu0 0.0
  %3419 = vmatpush1.msra.mxu0 0.0
  %3420 = vmatprep.subr.mxu0 0.0
  %3421 = vmatpush1.msra.mxu0 0.0
  %3422 = vmatprep.subr.mxu0 0.0
  %3423 = vmatpush1.msra.mxu0 0.0
  %3424 = vmatprep.subr.mxu0 0.0
  %3425 = vmatpush1.msra.mxu0 0.0
  %3426 = vmatprep.subr.mxu0 0.0
  %3427 = vmatpush1.msra.mxu0 0.0
  %3428 = vmatprep.subr.mxu0 0.0
  %3429 = vmatpush1.msra.mxu0 0.0
  %3430 = vmatprep.subr.mxu0 0.0
  %3431 = vmatpush1.msra.mxu0 0.0
  %3432 = vmatprep.subr.mxu0 0.0
  %3433 = vmatpush1.msra.mxu0 0.0
  %3434 = vmatprep.subr.mxu0 0.0
  %3435 = vmatpush1.msra.mxu0 0.0
  %3436 = vmatprep.subr.mxu0 0.0
  %3437 = vmatpush1.msra.mxu0 0.0
  %3438 = vmatprep.subr.mxu0 0.0
  %3439 = vmatpush1.msra.mxu0 0.0
  %3440 = vmatprep.subr.mxu0 0.0
  %3441 = vmatpush1.msra.mxu0 0.0
  %3442 = vmatprep.subr.mxu0 0.0
  %3443 = vmatpush1.msra.mxu0 0.0
  %3444 = vmatprep.subr.mxu0 0.0
  %3445 = vmatpush1.msra.mxu0 0.0
  %3446 = vmatprep.subr.mxu0 0.0
  %3447 = vmatpush1.msra.mxu0 0.0
  %3448 = vmatprep.subr.mxu0 0.0
  %3449 = vmatpush1.msra.mxu0 0.0
  %3450 = vmatprep.subr.mxu0 0.0
  %3451 = vmatpush1.msra.mxu0 0.0
  %3452 = vmatprep.subr.mxu0 0.0
  %3453 = vmatpush1.msra.mxu0 0.0
  %3454 = vmatprep.subr.mxu0 0.0
  %3455 = vmatpush1.msra.mxu0 0.0
  %3456 = vmatprep.mubr.f32.mxu0 0.0
  %3457 = vmatmul.mubr.f32.gmra.mrb[0].mxu0 %v70
  %v3458 = vpop.f32.mrb[0].mxu0
  %v3459 = vadd.f32 0.0, %v3458
  %v3460 = vpop.f32.mrb[0].mxu0
  %3461 = vdwg.mxu0
  %v3462 = vadd.f32 %v3390, %v3459
  %v3463 = vld [vmem:[%s2 + $0xd0] sm:$0xff]
  %3464 = vmatprep.subr.mxu0 0.0
  %3465 = vmatpush1.msra.mxu0 %v3463
  %3466 = vmatprep.subr.mxu0 0.0
  %3467 = vmatpush1.msra.mxu0 0.0
  %3468 = vmatprep.subr.mxu0 0.0
  %3469 = vmatpush1.msra.mxu0 0.0
  %3470 = vmatprep.subr.mxu0 0.0
  %3471 = vmatpush1.msra.mxu0 0.0
  %3472 = vmatprep.subr.mxu0 0.0
  %3473 = vmatpush1.msra.mxu0 0.0
  %3474 = vmatprep.subr.mxu0 0.0
  %3475 = vmatpush1.msra.mxu0 0.0
  %3476 = vmatprep.subr.mxu0 0.0
  %3477 = vmatpush1.msra.mxu0 0.0
  %3478 = vmatprep.subr.mxu0 0.0
  %3479 = vmatpush1.msra.mxu0 0.0
  %3480 = vmatprep.subr.mxu0 0.0
  %3481 = vmatpush1.msra.mxu0 0.0
  %3482 = vmatprep.subr.mxu0 0.0
  %3483 = vmatpush1.msra.mxu0 0.0
  %3484 = vmatprep.subr.mxu0 0.0
  %3485 = vmatpush1.msra.mxu0 0.0
  %3486 = vmatprep.subr.mxu0 0.0
  %3487 = vmatpush1.msra.mxu0 0.0
  %3488 = vmatprep.subr.mxu0 0.0
  %3489 = vmatpush1.msra.mxu0 0.0
  %3490 = vmatprep.subr.mxu0 0.0
  %3491 = vmatpush1.msra.mxu0 0.0
  %3492 = vmatprep.subr.mxu0 0.0
  %3493 = vmatpush1.msra.mxu0 0.0
  %3494 = vmatprep.subr.mxu0 0.0
  %3495 = vmatpush1.msra.mxu0 0.0
  %3496 = vmatprep.subr.mxu0 0.0
  %3497 = vmatpush1.msra.mxu0 0.0
  %3498 = vmatprep.subr.mxu0 0.0
  %3499 = vmatpush1.msra.mxu0 0.0
  %3500 = vmatprep.subr.mxu0 0.0
  %3501 = vmatpush1.msra.mxu0 0.0
  %3502 = vmatprep.subr.mxu0 0.0
  %3503 = vmatpush1.msra.mxu0 0.0
  %3504 = vmatprep.subr.mxu0 0.0
  %3505 = vmatpush1.msra.mxu0 0.0
  %3506 = vmatprep.subr.mxu0 0.0
  %3507 = vmatpush1.msra.mxu0 0.0
  %3508 = vmatprep.subr.mxu0 0.0
  %3509 = vmatpush1.msra.mxu0 0.0
  %3510 = vmatprep.subr.mxu0 0.0
  %3511 = vmatpush1.msra.mxu0 0.0
  %3512 = vmatprep.subr.mxu0 0.0
  %3513 = vmatpush1.msra.mxu0 0.0
  %3514 = vmatprep.subr.mxu0 0.0
  %3515 = vmatpush1.msra.mxu0 0.0
  %3516 = vmatprep.subr.mxu0 0.0
  %3517 = vmatpush1.msra.mxu0 0.0
  %3518 = vmatprep.subr.mxu0 0.0
  %3519 = vmatpush1.msra.mxu0 0.0
  %3520 = vmatprep.subr.mxu0 0.0
  %3521 = vmatpush1.msra.mxu0 0.0
  %3522 = vmatprep.subr.mxu0 0.0
  %3523 = vmatpush1.msra.mxu0 0.0
  %3524 = vmatprep.subr.mxu0 0.0
  %3525 = vmatpush1.msra.mxu0 0.0
  %3526 = vmatprep.subr.mxu0 0.0
  %3527 = vmatpush1.msra.mxu0 0.0
  %3528 = vmatprep.mubr.f32.mxu0 0.0
  %3529 = vmatmul.mubr.f32.gmra.mrb[0].mxu0 %v337
  %v3530 = vpop.f32.mrb[0].mxu0
  %v3531 = vadd.f32 0.0, %v3530
  %v3532 = vpop.f32.mrb[0].mxu0
  %3533 = vdwg.mxu0
  %v3534 = vadd.f32 %v3462, %v3531
  %v3535 = vld [vmem:[%s2 + $0xd8] sm:$0xff]
  %3536 = vmatprep.subr.mxu0 0.0
  %3537 = vmatpush1.msra.mxu0 %v3535
  %3538 = vmatprep.subr.mxu0 0.0
  %3539 = vmatpush1.msra.mxu0 0.0
  %3540 = vmatprep.subr.mxu0 0.0
  %3541 = vmatpush1.msra.mxu0 0.0
  %3542 = vmatprep.subr.mxu0 0.0
  %3543 = vmatpush1.msra.mxu0 0.0
  %3544 = vmatprep.subr.mxu0 0.0
  %3545 = vmatpush1.msra.mxu0 0.0
  %3546 = vmatprep.subr.mxu0 0.0
  %3547 = vmatpush1.msra.mxu0 0.0
  %3548 = vmatprep.subr.mxu0 0.0
  %3549 = vmatpush1.msra.mxu0 0.0
  %3550 = vmatprep.subr.mxu0 0.0
  %3551 = vmatpush1.msra.mxu0 0.0
  %3552 = vmatprep.subr.mxu0 0.0
  %3553 = vmatpush1.msra.mxu0 0.0
  %3554 = vmatprep.subr.mxu0 0.0
  %3555 = vmatpush1.msra.mxu0 0.0
  %3556 = vmatprep.subr.mxu0 0.0
  %3557 = vmatpush1.msra.mxu0 0.0
  %3558 = vmatprep.subr.mxu0 0.0
  %3559 = vmatpush1.msra.mxu0 0.0
  %3560 = vmatprep.subr.mxu0 0.0
  %3561 = vmatpush1.msra.mxu0 0.0
  %3562 = vmatprep.subr.mxu0 0.0
  %3563 = vmatpush1.msra.mxu0 0.0
  %3564 = vmatprep.subr.mxu0 0.0
  %3565 = vmatpush1.msra.mxu0 0.0
  %3566 = vmatprep.subr.mxu0 0.0
  %3567 = vmatpush1.msra.mxu0 0.0
  %3568 = vmatprep.subr.mxu0 0.0
  %3569 = vmatpush1.msra.mxu0 0.0
  %3570 = vmatprep.subr.mxu0 0.0
  %3571 = vmatpush1.msra.mxu0 0.0
  %3572 = vmatprep.subr.mxu0 0.0
  %3573 = vmatpush1.msra.mxu0 0.0
  %3574 = vmatprep.subr.mxu0 0.0
  %3575 = vmatpush1.msra.mxu0 0.0
  %3576 = vmatprep.subr.mxu0 0.0
  %3577 = vmatpush1.msra.mxu0 0.0
  %3578 = vmatprep.subr.mxu0 0.0
  %3579 = vmatpush1.msra.mxu0 0.0
  %3580 = vmatprep.subr.mxu0 0.0
  %3581 = vmatpush1.msra.mxu0 0.0
  %3582 = vmatprep.subr.mxu0 0.0
  %3583 = vmatpush1.msra.mxu0 0.0
  %3584 = vmatprep.subr.mxu0 0.0
  %3585 = vmatpush1.msra.mxu0 0.0
  %3586 = vmatprep.subr.mxu0 0.0
  %3587 = vmatpush1.msra.mxu0 0.0
  %3588 = vmatprep.subr.mxu0 0.0
  %3589 = vmatpush1.msra.mxu0 0.0
  %3590 = vmatprep.subr.mxu0 0.0
  %3591 = vmatpush1.msra.mxu0 0.0
  %3592 = vmatprep.subr.mxu0 0.0
  %3593 = vmatpush1.msra.mxu0 0.0
  %3594 = vmatprep.subr.mxu0 0.0
  %3595 = vmatpush1.msra.mxu0 0.0
  %3596 = vmatprep.subr.mxu0 0.0
  %3597 = vmatpush1.msra.mxu0 0.0
  %3598 = vmatprep.subr.mxu0 0.0
  %3599 = vmatpush1.msra.mxu0 0.0
  %3600 = vmatprep.mubr.f32.mxu0 0.0
  %3601 = vmatmul.mubr.f32.gmra.mrb[0].mxu0 %v484
  %v3602 = vpop.f32.mrb[0].mxu0
  %v3603 = vadd.f32 0.0, %v3602
  %v3604 = vpop.f32.mrb[0].mxu0
  %3605 = vdwg.mxu0
  %v3606 = vadd.f32 %v3534, %v3603
  %v3607 = vadd.f32 %v3312, %v3606
  %v3608 = vld [vmem:[%s2 + $0xe0] sm:$0xff]
  %v3609 = vld [vmem:[%s2 + $0xe8] sm:$0xff]
  %v3610 = vld [vmem:[%s2 + $0xf0] sm:$0xff]
  %v3611 = vld [vmem:[%s2 + $0xf8] sm:$0xff]
  %v3612 = vld [vmem:[%s2 + $0x103] sm:$0x1]
  %v3613 = vlaneseq
  %v3614 = vshrl.u32 %v3613, 7
  %v3615 = vsub.s32 0, %v3614
  %v3616 = vrot.slane %v3612, %v3615
  %v3618 = vsel %vm674, %v3607, 0
  %3620 = vmatprep.subr.mxu0 0.0
  %3621 = vmatpush1.msra.mxu0 %v3608
  %3622 = vmatprep.subr.mxu0 0.0
  %3623 = vmatpush1.msra.mxu0 %v3609
  %3624 = vmatprep.subr.mxu0 0.0
  %3625 = vmatpush1.msra.mxu0 %v3610
  %3626 = vmatprep.subr.mxu0 0.0
  %3627 = vmatpush1.msra.mxu0 %v3611
  %3628 = vmatprep.subr.mxu0 0.0
  %3629 = vmatpush1.msra.mxu0 0.0
  %3630 = vmatprep.subr.mxu0 0.0
  %3631 = vmatpush1.msra.mxu0 0.0
  %3632 = vmatprep.subr.mxu0 0.0
  %3633 = vmatpush1.msra.mxu0 0.0
  %3634 = vmatprep.subr.mxu0 0.0
  %3635 = vmatpush1.msra.mxu0 0.0
  %3636 = vmatprep.subr.mxu0 0.0
  %3637 = vmatpush1.msra.mxu0 0.0
  %3638 = vmatprep.subr.mxu0 0.0
  %3639 = vmatpush1.msra.mxu0 0.0
  %3640 = vmatprep.subr.mxu0 0.0
  %3641 = vmatpush1.msra.mxu0 0.0
  %3642 = vmatprep.subr.mxu0 0.0
  %3643 = vmatpush1.msra.mxu0 0.0
  %3644 = vmatprep.subr.mxu0 0.0
  %3645 = vmatpush1.msra.mxu0 0.0
  %3646 = vmatprep.subr.mxu0 0.0
  %3647 = vmatpush1.msra.mxu0 0.0
  %3648 = vmatprep.subr.mxu0 0.0
  %3649 = vmatpush1.msra.mxu0 0.0
  %3650 = vmatprep.subr.mxu0 0.0
  %3651 = vmatpush1.msra.mxu0 0.0
  %3652 = vmatprep.subr.mxu0 0.0
  %3653 = vmatpush1.msra.mxu0 0.0
  %3654 = vmatprep.subr.mxu0 0.0
  %3655 = vmatpush1.msra.mxu0 0.0
  %3656 = vmatprep.subr.mxu0 0.0
  %3657 = vmatpush1.msra.mxu0 0.0
  %3658 = vmatprep.subr.mxu0 0.0
  %3659 = vmatpush1.msra.mxu0 0.0
  %3660 = vmatprep.subr.mxu0 0.0
  %3661 = vmatpush1.msra.mxu0 0.0
  %3662 = vmatprep.subr.mxu0 0.0
  %3663 = vmatpush1.msra.mxu0 0.0
  %3664 = vmatprep.subr.mxu0 0.0
  %3665 = vmatpush1.msra.mxu0 0.0
  %3666 = vmatprep.subr.mxu0 0.0
  %3667 = vmatpush1.msra.mxu0 0.0
  %3668 = vmatprep.subr.mxu0 0.0
  %3669 = vmatpush1.msra.mxu0 0.0
  %3670 = vmatprep.subr.mxu0 0.0
  %3671 = vmatpush1.msra.mxu0 0.0
  %3672 = vmatprep.subr.mxu0 0.0
  %3673 = vmatpush1.msra.mxu0 0.0
  %3674 = vmatprep.subr.mxu0 0.0
  %3675 = vmatpush1.msra.mxu0 0.0
  %3676 = vmatprep.subr.mxu0 0.0
  %3677 = vmatpush1.msra.mxu0 0.0
  %3678 = vmatprep.subr.mxu0 0.0
  %3679 = vmatpush1.msra.mxu0 0.0
  %3680 = vmatprep.subr.mxu0 0.0
  %3681 = vmatpush1.msra.mxu0 0.0
  %3682 = vmatprep.subr.mxu0 0.0
  %3683 = vmatpush1.msra.mxu0 0.0
  %3684 = vmatprep.mubr.f32.mxu0 0.0
  %3685 = vmatmul.mubr.f32.gmra.mrb[0].mxu0 %v3618
  %v3686 = vpop.f32.mrb[0].mxu0
  %v3687 = vadd.f32 %v3616, %v3686
  %v3688 = vpop.f32.mrb[0].mxu0
  %3689 = vdwg.mxu0
  %3690 = vst.msk [vmem:[%s3] sm:$0xff] %vm674, %v3687
  // Predicated region
  $region14: #{lstnet_forward.1} parent=0 // pred_check
    _
  $region15: #{lstnet_forward.1} parent=0 // pred_check_branch
    %3692 = sbr.rel (0) target = $region17
  $region16: #{lstnet_forward.1} parent=0 // pred_region
    _
  $region17: #{lstnet_forward.1} parent=0 // pred_fallthru
    _
  // Predicated region
  $region18: #{lstnet_forward.1} parent=0 // pred_check
    _
  $region19: #{lstnet_forward.1} parent=0 // pred_check_branch
    %3694 = sbr.rel (0) target = $region21
  $region20: #{lstnet_forward.1} parent=0 // pred_region
    _
  $region21: #{lstnet_forward.1} parent=0 // pred_fallthru
    _

</llo_original>
